<compile_context>
chip_gen: v7x
topology: tpu7x:2x2x1
jax: 0.10.0
libtpu: 0.0.40
codegen_flags: <defaults>
</compile_context>

<pallas_src>
import functools

import numpy as np
import jax
import jax.numpy as jnp
from jax.experimental import pallas as pl
from jax.experimental.pallas import tpu as pltpu


def _gwc_kernel(*refs, num_groups, cat_channels, disp_tile, compute_dtype,
                precision):
    """One (batch, h-tile, disparity-tile) block of the cost volume.

    refs (cat_channels > 0):  gmat, col_idx, ref_g, tgt_g, ref_c, tgt_c, out
    refs (cat_channels == 0): gmat, col_idx, ref_g, tgt_g, out

    Feature refs are (C, TH*W) with the H*W plane flattened onto lanes;
    out ref is (num_groups + 2*cat_channels, TD, TH*W), disparities
    [pid(2)*TD, pid(2)*TD + TD).
    """
    if cat_channels > 0:
        gmat_ref, col_ref, ref_g_ref, tgt_g_ref, ref_c_ref, tgt_c_ref, out_ref = refs
    else:
        gmat_ref, col_ref, ref_g_ref, tgt_g_ref, out_ref = refs
        ref_c_ref = tgt_c_ref = None

    g = num_groups
    c = cat_channels
    d_base = pl.program_id(2) * disp_tile

    # ---- d-invariant work, hoisted out of the disparity loop ----
    gmat = gmat_ref[...]                              # (G, C) 1/cpg averaging
    col = col_ref[...]                                # (1, L) image column idx
    ref_g = ref_g_ref[...].astype(compute_dtype)      # (C, L)
    tgt_g = tgt_g_ref[...].astype(compute_dtype)
    if c > 0:
        ref_c = ref_c_ref[...].astype(out_ref.dtype)  # (Cc, L)
        tgt_c = tgt_c_ref[...].astype(out_ref.dtype)
        zero_c = jnp.zeros((), out_ref.dtype)

    # Shift the target features right by the block-base disparity once
    # (dynamic lane roll); inside the block each next disparity is a cheap
    # static shift-by-1.  Wrapped lanes always land in the masked w < d region.
    tgt_g = pltpu.roll(tgt_g, shift=d_base, axis=1)
    if c > 0:
        tgt_c = pltpu.roll(tgt_c, shift=d_base, axis=1)

    for td in range(disp_tile):
        if td > 0:
            tgt_g = pltpu.roll(tgt_g, shift=1, axis=1)
            if c > 0:
                tgt_c = pltpu.roll(tgt_c, shift=1, axis=1)
        d = d_base + td
        valid = col >= d                              # (1, L) -> bcast over C

        # Group-wise correlation: elementwise product on the VPU, per-group
        # mean as a tiny MXU matmul (f32 accumulation).
        prod = ref_g * tgt_g                          # (C, L)
        corr = jnp.dot(gmat, prod, preferred_element_type=jnp.float32,
                       precision=precision)           # (G, L)
        corr = jnp.where(valid, corr, 0.0)
        out_ref[0:g, td, :] = corr.astype(out_ref.dtype)

        if c > 0:
            out_ref[g:g + c, td, :] = jnp.where(valid, ref_c, zero_c)
            out_ref[g + c:g + 2 * c, td, :] = jnp.where(valid, tgt_c, zero_c)


def _pick_disp_tile(D, max_td=8):
    """Disparities per grid step: a divisor of D that is a multiple of 8 or D
    itself (sublane-legal block), preferring the largest one <= max_td."""
    divs = [t for t in range(1, D + 1) if D % t == 0]
    legal = [t for t in divs if t % 8 == 0 or t == D]
    fitting = [t for t in legal if t <= max_td]
    return max(fitting) if fitting else min(legal)


def _block_bytes_per_row(W, c_gwc, c_cat, c_tot, td, in_isz, out_isz):
    """Approx VMEM bytes needed per image row of the pipeline: double-buffered
    input/output DMA blocks plus the f32/compute temporaries in the body."""
    dma_in = 2 * ((2 * c_gwc + 2 * c_cat) * in_isz + 4)   # +4: int32 col idx
    dma_out = 2 * c_tot * td * out_isz
    temps = (3 * c_gwc + 2 * c_cat) * 4                   # casts, roll, product
    return W * (dma_in + dma_out + temps)


def _pick_h_tile(H, W, bytes_per_row, budget_bytes):
    """Largest H tile (divisor of H) with lane-legal blocks (TH == H or
    TH*W % 128 == 0) fitting the budget; falls back to the smallest legal tile
    (caller checks the final footprint against physical VMEM)."""
    candidates = [t for t in range(H, 0, -1) if H % t == 0]
    legal = [t for t in candidates if t == H or (t * W) % 128 == 0]
    for t in legal:
        if t * bytes_per_row <= budget_bytes:
            return t
    return legal[-1]


def gwc_volume_cost_processor(ref_gwc, tgt_gwc, ref_cat=None, tgt_cat=None, *,
                              maxdisp=192, downsample=4, num_groups=40,
                              use_concat_volume=True, out_dtype=None,
                              max_disp_tile=8):
    """Pallas implementation of GwcVolumeCostProcessor.forward.

    Returns {'cost_volume': (B, num_groups [+ 2*C_cat], D, H, W)}.
    Tip (v5e/v6e): pass out_dtype=jnp.bfloat16 — the D-times-amplified volume
    write dominates HBM traffic and halving it is a near-2x win there.
    """
    B, c_gwc, H, W = ref_gwc.shape
    assert c_gwc % num_groups == 0
    cpg = c_gwc // num_groups
    D = maxdisp // downsample

    in_dtype = jnp.dtype(ref_gwc.dtype)
    out_dtype = jnp.dtype(out_dtype) if out_dtype is not None else in_dtype

    # bf16 inputs: keep the elementwise product in bf16 (bf16-native VALUs on
    # v6e/v7x) and accumulate in f32 inside the MXU dot.  f32 inputs: full f32.
    if in_dtype == jnp.bfloat16:
        compute_dtype, precision = jnp.bfloat16, None
    else:
        compute_dtype, precision = jnp.float32, jax.lax.Precision.HIGHEST

    if use_concat_volume:
        assert ref_cat is not None and tgt_cat is not None
        c_cat = int(ref_cat.shape[1])
    else:
        c_cat = 0
    c_tot = num_groups + 2 * c_cat

    td = _pick_disp_tile(D, max_disp_tile)
    n_d = D // td

    # Per-generation VMEM budgeting (v7x: 64 MiB per TC, v5e/v6e: 128 MiB).
    try:
        vmem_cap = int(pltpu.get_tpu_info().vmem_capacity_bytes)
    except Exception:
        vmem_cap = 64 * 1024 * 1024
    block_budget = min(vmem_cap // 4, 48 * 1024 * 1024)

    bytes_per_row = _block_bytes_per_row(W, c_gwc, c_cat, c_tot, td,
                                         in_dtype.itemsize, out_dtype.itemsize)
    th = _pick_h_tile(H, W, bytes_per_row, block_budget)
    n_h = H // th
    L = th * W

    footprint = th * bytes_per_row + (256 << 10)  # + group matrix / slack
    if footprint > vmem_cap - (8 << 20):
        raise ValueError(
            f"GWC cost-volume blocks need ~{footprint >> 20} MiB VMEM which "
            f"does not fit this chip ({vmem_cap >> 20} MiB); reduce channels/"
            f"width or add W tiling.")
    vmem_limit = int(min(vmem_cap - (4 << 20),
                         max(footprint + (4 << 20), 32 << 20)))

    # Constant block-diagonal averaging matrix: corr = gmat @ (ref * tgt).
    gmat = (jnp.repeat(jnp.eye(num_groups, dtype=jnp.float32), cpg, axis=1)
            / cpg).astype(compute_dtype)
    # Precomputed image-column index of each flattened H*W position (replaces
    # the per-step iota + modulo).
    col_idx = jnp.broadcast_to(jnp.arange(W, dtype=jnp.int32),
                               (H, W)).reshape(1, H * W)

    # Flatten H*W onto the lane axis (lane-dense stores, single-axis shift).
    ref_g = ref_gwc.reshape(B, c_gwc, H * W)
    tgt_g = tgt_gwc.reshape(B, c_gwc, H * W)

    operands = [gmat, col_idx, ref_g, tgt_g]
    in_specs = [
        pl.BlockSpec((num_groups, c_gwc), lambda b, h, d: (0, 0)),
        pl.BlockSpec((1, L), lambda b, h, d: (0, h)),
        pl.BlockSpec((None, c_gwc, L), lambda b, h, d: (b, 0, h)),
        pl.BlockSpec((None, c_gwc, L), lambda b, h, d: (b, 0, h)),
    ]
    if use_concat_volume:
        operands += [ref_cat.reshape(B, c_cat, H * W),
                     tgt_cat.reshape(B, c_cat, H * W)]
        in_specs += [
            pl.BlockSpec((None, c_cat, L), lambda b, h, d: (b, 0, h)),
            pl.BlockSpec((None, c_cat, L), lambda b, h, d: (b, 0, h)),
        ]

    kernel = functools.partial(
        _gwc_kernel, num_groups=num_groups, cat_channels=c_cat,
        disp_tile=td, compute_dtype=compute_dtype, precision=precision)

    flops = B * D * H * W * (c_gwc + 2 * num_groups * c_gwc)
    bytes_out = B * c_tot * D * H * W * out_dtype.itemsize
    bytes_in = B * (2 * c_gwc + 2 * c_cat) * H * W * in_dtype.itemsize
    cost = pl.CostEstimate(flops=flops, transcendentals=0,
                           bytes_accessed=bytes_out + bytes_in)

    vol = pl.pallas_call(
        kernel,
        out_shape=jax.ShapeDtypeStruct((B, c_tot, D, H * W), out_dtype),
        grid=(B, n_h, n_d),
        in_specs=in_specs,
        out_specs=pl.BlockSpec((None, c_tot, td, L),
                               lambda b, h, d: (b, 0, d, h)),
        compiler_params=pltpu.CompilerParams(
            # Every grid step writes a disjoint output block; keep all axes
            # parallel so v7x can shard across its two TensorCores.
            dimension_semantics=("parallel", "parallel", "parallel"),
            vmem_limit_bytes=vmem_limit),
        cost_estimate=cost,
    )(*operands)

    return {"cost_volume": vol.reshape(B, c_tot, D, H, W)}


def _reference_numpy(ref_g, tgt_g, ref_c, tgt_c, maxdisp, downsample, G):
    """Plain-numpy port of the PyTorch forward (ground truth)."""
    ref_g, tgt_g = np.asarray(ref_g), np.asarray(tgt_g)
    ref_c, tgt_c = np.asarray(ref_c), np.asarray(tgt_c)
    B, Cg, H, W = ref_g.shape
    Cc = ref_c.shape[1]
    D = maxdisp // downsample
    cpg = Cg // G
    vol = np.zeros((B, G + 2 * Cc, D, H, W), dtype=np.float32)
    for i in range(D):
        if i > 0:
            prod = ref_g[:, :, :, i:] * tgt_g[:, :, :, :-i]
            corr = prod.reshape(B, G, cpg, H, W - i).mean(axis=2)
            vol[:, :G, i, :, i:] = corr
            vol[:, G:G + Cc, i, :, i:] = ref_c[:, :, :, i:]
            vol[:, G + Cc:, i, :, i:] = tgt_c[:, :, :, :-i]
        else:
            prod = ref_g * tgt_g
            corr = prod.reshape(B, G, cpg, H, W).mean(axis=2)
            vol[:, :G, i] = corr
            vol[:, G:G + Cc, i] = ref_c
            vol[:, G + Cc:, i] = tgt_c
    return vol


if __name__ == "__main__":
    # Small, module-consistent shapes:
    #   maxdisp=16, downsample=4  -> D = 4 disparity planes
    #   num_groups=8, gwc channels=16 (channels_per_group=2), concat channels=4
    B, H, W = 2, 8, 16
    MAXDISP, DOWNSAMPLE, NUM_GROUPS = 16, 4, 8
    C_GWC, C_CAT = 16, 4

    key = jax.random.PRNGKey(0)
    k1, k2, k3, k4 = jax.random.split(key, 4)
    ref_gwc = jax.random.normal(k1, (B, C_GWC, H, W), dtype=jnp.float32)
    tgt_gwc = jax.random.normal(k2, (B, C_GWC, H, W), dtype=jnp.float32)
    ref_cat = jax.random.normal(k3, (B, C_CAT, H, W), dtype=jnp.float32)
    tgt_cat = jax.random.normal(k4, (B, C_CAT, H, W), dtype=jnp.float32)

    ref_vol = _reference_numpy(ref_gwc, tgt_gwc, ref_cat, tgt_cat,
                               MAXDISP, DOWNSAMPLE, NUM_GROUPS)

    # gwc + concat volume (f32)
    out = gwc_volume_cost_processor(
        ref_gwc, tgt_gwc, ref_cat, tgt_cat,
        maxdisp=MAXDISP, downsample=DOWNSAMPLE, num_groups=NUM_GROUPS,
        use_concat_volume=True)
    vol = jax.block_until_ready(out["cost_volume"])
    assert vol.shape == ref_vol.shape, (vol.shape, ref_vol.shape)
    np.testing.assert_allclose(np.asarray(vol), ref_vol, rtol=1e-4, atol=1e-4)

    # gwc-only volume (use_concat_volume=False builds the smaller kernel)
    out2 = gwc_volume_cost_processor(
        ref_gwc, tgt_gwc,
        maxdisp=MAXDISP, downsample=DOWNSAMPLE, num_groups=NUM_GROUPS,
        use_concat_volume=False)
    vol2 = jax.block_until_ready(out2["cost_volume"])
    np.testing.assert_allclose(np.asarray(vol2), ref_vol[:, :NUM_GROUPS],
                               rtol=1e-4, atol=1e-4)

    # bf16 output path (recommended on the memory-bound generations)
    out3 = gwc_volume_cost_processor(
        ref_gwc, tgt_gwc, ref_cat, tgt_cat,
        maxdisp=MAXDISP, downsample=DOWNSAMPLE, num_groups=NUM_GROUPS,
        use_concat_volume=True, out_dtype=jnp.bfloat16)
    vol3 = jax.block_until_ready(out3["cost_volume"])
    np.testing.assert_allclose(np.asarray(vol3).astype(np.float32), ref_vol,
                               rtol=5e-2, atol=5e-2)

    print("KERNEL_OK")
</pallas_src>

<mosaic_0001>
module attributes {stable_mosaic.version = 11 : i64} {
  func.func @_gwc_kernel(%arg0: i32, %arg1: i32, %arg2: i32, %arg3: memref<8x16xf32, #tpu.memory_space<vmem>>, %arg4: memref<1x128xi32, #tpu.memory_space<vmem>>, %arg5: memref<1x16x128xf32, #tpu.memory_space<vmem>>, %arg6: memref<1x16x128xf32, #tpu.memory_space<vmem>>, %arg7: memref<1x4x128xf32, #tpu.memory_space<vmem>>, %arg8: memref<1x4x128xf32, #tpu.memory_space<vmem>>, %arg9: memref<1x16x4x128xf32, #tpu.memory_space<vmem>>) attributes {dimension_semantics = [#tpu.dimension_semantics<parallel>, #tpu.dimension_semantics<parallel>, #tpu.dimension_semantics<parallel>], iteration_bounds = array<i64: 2, 1, 1>, scalar_prefetch = 0 : i64, scratch_operands = 0 : i64, tpu.core_type = #tpu.core_type<tc>, window_params = [{pipeline_mode = #tpu.pipeline_mode<synchronous>, transform_indices = @transform_0, window_bounds = array<i64: 8, 16>}, {transform_indices = @transform_1, window_bounds = array<i64: 1, 128>}, {transform_indices = @transform_2, window_bounds = array<i64: 1, 16, 128>}, {transform_indices = @transform_3, window_bounds = array<i64: 1, 16, 128>}, {transform_indices = @transform_4, window_bounds = array<i64: 1, 4, 128>}, {transform_indices = @transform_5, window_bounds = array<i64: 1, 4, 128>}, {transform_indices = @transform_6, window_bounds = array<i64: 1, 16, 4, 128>}]} {
    %c4_i32 = arith.constant 4 : i32
    %0 = arith.muli %arg2, %c4_i32 : i32
    %c0 = arith.constant 0 : index
    %c0_0 = arith.constant 0 : index
    %1 = vector.load %arg3[%c0, %c0_0] : memref<8x16xf32, #tpu.memory_space<vmem>>, vector<8x16xf32>
    %c0_1 = arith.constant 0 : index
    %c0_2 = arith.constant 0 : index
    %2 = vector.load %arg4[%c0_1, %c0_2] : memref<1x128xi32, #tpu.memory_space<vmem>>, vector<1x128xi32>
    %c0_3 = arith.constant 0 : index
    %c0_4 = arith.constant 0 : index
    %c0_5 = arith.constant 0 : index
    %3 = vector.load %arg5[%c0_3, %c0_4, %c0_5] : memref<1x16x128xf32, #tpu.memory_space<vmem>>, vector<1x16x128xf32>
    %4 = vector.shape_cast %3 : vector<1x16x128xf32> to vector<16x128xf32>
    %c0_6 = arith.constant 0 : index
    %c0_7 = arith.constant 0 : index
    %c0_8 = arith.constant 0 : index
    %5 = vector.load %arg6[%c0_6, %c0_7, %c0_8] : memref<1x16x128xf32, #tpu.memory_space<vmem>>, vector<1x16x128xf32>
    %6 = vector.shape_cast %5 : vector<1x16x128xf32> to vector<16x128xf32>
    %c0_9 = arith.constant 0 : index
    %c0_10 = arith.constant 0 : index
    %c0_11 = arith.constant 0 : index
    %7 = vector.load %arg7[%c0_9, %c0_10, %c0_11] : memref<1x4x128xf32, #tpu.memory_space<vmem>>, vector<1x4x128xf32>
    %8 = vector.shape_cast %7 : vector<1x4x128xf32> to vector<4x128xf32>
    %c0_12 = arith.constant 0 : index
    %c0_13 = arith.constant 0 : index
    %c0_14 = arith.constant 0 : index
    %9 = vector.load %arg8[%c0_12, %c0_13, %c0_14] : memref<1x4x128xf32, #tpu.memory_space<vmem>>, vector<1x4x128xf32>
    %10 = vector.shape_cast %9 : vector<1x4x128xf32> to vector<4x128xf32>
    %11 = tpu.dynamic_rotate %6 by %0 dim 1 : vector<16x128xf32>, i32 -> vector<16x128xf32>
    %12 = tpu.dynamic_rotate %10 by %0 dim 1 : vector<4x128xf32>, i32 -> vector<4x128xf32>
    %c0_i32 = arith.constant 0 : i32
    %13 = arith.addi %0, %c0_i32 : i32
    %14 = vector.broadcast %13 : i32 to vector<1x128xi32>
    %15 = arith.cmpi sge, %2, %14 : vector<1x128xi32>
    %16 = arith.mulf %4, %11 : vector<16x128xf32>
    %cst = arith.constant dense<0.000000e+00> : vector<8x128xf32>
    %17 = tpu.matmul %1, %16, %cst {dimension_numbers = #tpu.dot_dimension_numbers<[1], [0], [0], [1], [0, 0, 1, 1], [], []>, precision = #tpu.contract_precision<fp32>} : vector<8x16xf32>, vector<16x128xf32>, vector<8x128xf32> -> vector<8x128xf32>
    %cst_15 = arith.constant 0.000000e+00 : f32
    %18 = vector.shape_cast %15 : vector<1x128xi1> to vector<1x128xi1>
    %19 = vector.broadcast %18 : vector<1x128xi1> to vector<8x128xi1>
    %20 = vector.broadcast %cst_15 : f32 to vector<8x128xf32>
    %21 = arith.select %19, %17, %20 : vector<8x128xi1>, vector<8x128xf32>
    %c0_16 = arith.constant 0 : index
    %c0_17 = arith.constant 0 : index
    %c0_18 = arith.constant 0 : index
    %c0_19 = arith.constant 0 : index
    %22 = vector.load %arg9[%c0_16, %c0_17, %c0_18, %c0_19] : memref<1x16x4x128xf32, #tpu.memory_space<vmem>>, vector<1x8x1x128xf32>
    %23 = vector.shape_cast %22 : vector<1x8x1x128xf32> to vector<8x128xf32>
    %24 = vector.shape_cast %21 : vector<8x128xf32> to vector<1x8x1x128xf32>
    tpu.vector_store %arg9[%c0_16, %c0_17, %c0_18, %c0_19], %24 {strides = array<i32>} : memref<1x16x4x128xf32, #tpu.memory_space<vmem>>, vector<1x8x1x128xf32>,
    %cst_20 = arith.constant 0.000000e+00 : f32
    %25 = vector.shape_cast %15 : vector<1x128xi1> to vector<1x128xi1>
    %26 = vector.broadcast %25 : vector<1x128xi1> to vector<4x128xi1>
    %27 = vector.broadcast %cst_20 : f32 to vector<4x128xf32>
    %28 = arith.select %26, %8, %27 : vector<4x128xi1>, vector<4x128xf32>
    %c0_21 = arith.constant 0 : index
    %c8 = arith.constant 8 : index
    %c0_22 = arith.constant 0 : index
    %c0_23 = arith.constant 0 : index
    %29 = vector.load %arg9[%c0_21, %c8, %c0_22, %c0_23] : memref<1x16x4x128xf32, #tpu.memory_space<vmem>>, vector<1x4x1x128xf32>
    %30 = vector.shape_cast %29 : vector<1x4x1x128xf32> to vector<4x128xf32>
    %31 = vector.shape_cast %28 : vector<4x128xf32> to vector<1x4x1x128xf32>
    tpu.vector_store %arg9[%c0_21, %c8, %c0_22, %c0_23], %31 {strides = array<i32>} : memref<1x16x4x128xf32, #tpu.memory_space<vmem>>, vector<1x4x1x128xf32>,
    %cst_24 = arith.constant 0.000000e+00 : f32
    %32 = vector.shape_cast %15 : vector<1x128xi1> to vector<1x128xi1>
    %33 = vector.broadcast %32 : vector<1x128xi1> to vector<4x128xi1>
    %34 = vector.broadcast %cst_24 : f32 to vector<4x128xf32>
    %35 = arith.select %33, %12, %34 : vector<4x128xi1>, vector<4x128xf32>
    %c0_25 = arith.constant 0 : index
    %c12 = arith.constant 12 : index
    %c0_26 = arith.constant 0 : index
    %c0_27 = arith.constant 0 : index
    %36 = vector.load %arg9[%c0_25, %c12, %c0_26, %c0_27] : memref<1x16x4x128xf32, #tpu.memory_space<vmem>>, vector<1x4x1x128xf32>
    %37 = vector.shape_cast %36 : vector<1x4x1x128xf32> to vector<4x128xf32>
    %38 = vector.shape_cast %35 : vector<4x128xf32> to vector<1x4x1x128xf32>
    tpu.vector_store %arg9[%c0_25, %c12, %c0_26, %c0_27], %38 {strides = array<i32>} : memref<1x16x4x128xf32, #tpu.memory_space<vmem>>, vector<1x4x1x128xf32>,
    %c1_i32 = arith.constant 1 : i32
    %39 = tpu.dynamic_rotate %11 by %c1_i32 dim 1 : vector<16x128xf32>, i32 -> vector<16x128xf32>
    %c1_i32_28 = arith.constant 1 : i32
    %40 = tpu.dynamic_rotate %12 by %c1_i32_28 dim 1 : vector<4x128xf32>, i32 -> vector<4x128xf32>
    %c1_i32_29 = arith.constant 1 : i32
    %41 = arith.addi %0, %c1_i32_29 : i32
    %42 = vector.broadcast %41 : i32 to vector<1x128xi32>
    %43 = arith.cmpi sge, %2, %42 : vector<1x128xi32>
    %44 = arith.mulf %4, %39 : vector<16x128xf32>
    %cst_30 = arith.constant dense<0.000000e+00> : vector<8x128xf32>
    %45 = tpu.matmul %1, %44, %cst_30 {dimension_numbers = #tpu.dot_dimension_numbers<[1], [0], [0], [1], [0, 0, 1, 1], [], []>, precision = #tpu.contract_precision<fp32>} : vector<8x16xf32>, vector<16x128xf32>, vector<8x128xf32> -> vector<8x128xf32>
    %cst_31 = arith.constant 0.000000e+00 : f32
    %46 = vector.shape_cast %43 : vector<1x128xi1> to vector<1x128xi1>
    %47 = vector.broadcast %46 : vector<1x128xi1> to vector<8x128xi1>
    %48 = vector.broadcast %cst_31 : f32 to vector<8x128xf32>
    %49 = arith.select %47, %45, %48 : vector<8x128xi1>, vector<8x128xf32>
    %c0_32 = arith.constant 0 : index
    %c0_33 = arith.constant 0 : index
    %c1 = arith.constant 1 : index
    %c0_34 = arith.constant 0 : index
    %50 = vector.load %arg9[%c0_32, %c0_33, %c1, %c0_34] : memref<1x16x4x128xf32, #tpu.memory_space<vmem>>, vector<1x8x1x128xf32>
    %51 = vector.shape_cast %50 : vector<1x8x1x128xf32> to vector<8x128xf32>
    %52 = vector.shape_cast %49 : vector<8x128xf32> to vector<1x8x1x128xf32>
    tpu.vector_store %arg9[%c0_32, %c0_33, %c1, %c0_34], %52 {strides = array<i32>} : memref<1x16x4x128xf32, #tpu.memory_space<vmem>>, vector<1x8x1x128xf32>,
    %cst_35 = arith.constant 0.000000e+00 : f32
    %53 = vector.shape_cast %43 : vector<1x128xi1> to vector<1x128xi1>
    %54 = vector.broadcast %53 : vector<1x128xi1> to vector<4x128xi1>
    %55 = vector.broadcast %cst_35 : f32 to vector<4x128xf32>
    %56 = arith.select %54, %8, %55 : vector<4x128xi1>, vector<4x128xf32>
    %c0_36 = arith.constant 0 : index
    %c8_37 = arith.constant 8 : index
    %c1_38 = arith.constant 1 : index
    %c0_39 = arith.constant 0 : index
    %57 = vector.load %arg9[%c0_36, %c8_37, %c1_38, %c0_39] : memref<1x16x4x128xf32, #tpu.memory_space<vmem>>, vector<1x4x1x128xf32>
    %58 = vector.shape_cast %57 : vector<1x4x1x128xf32> to vector<4x128xf32>
    %59 = vector.shape_cast %56 : vector<4x128xf32> to vector<1x4x1x128xf32>
    tpu.vector_store %arg9[%c0_36, %c8_37, %c1_38, %c0_39], %59 {strides = array<i32>} : memref<1x16x4x128xf32, #tpu.memory_space<vmem>>, vector<1x4x1x128xf32>,
    %cst_40 = arith.constant 0.000000e+00 : f32
    %60 = vector.shape_cast %43 : vector<1x128xi1> to vector<1x128xi1>
    %61 = vector.broadcast %60 : vector<1x128xi1> to vector<4x128xi1>
    %62 = vector.broadcast %cst_40 : f32 to vector<4x128xf32>
    %63 = arith.select %61, %40, %62 : vector<4x128xi1>, vector<4x128xf32>
    %c0_41 = arith.constant 0 : index
    %c12_42 = arith.constant 12 : index
    %c1_43 = arith.constant 1 : index
    %c0_44 = arith.constant 0 : index
    %64 = vector.load %arg9[%c0_41, %c12_42, %c1_43, %c0_44] : memref<1x16x4x128xf32, #tpu.memory_space<vmem>>, vector<1x4x1x128xf32>
    %65 = vector.shape_cast %64 : vector<1x4x1x128xf32> to vector<4x128xf32>
    %66 = vector.shape_cast %63 : vector<4x128xf32> to vector<1x4x1x128xf32>
    tpu.vector_store %arg9[%c0_41, %c12_42, %c1_43, %c0_44], %66 {strides = array<i32>} : memref<1x16x4x128xf32, #tpu.memory_space<vmem>>, vector<1x4x1x128xf32>,
    %c1_i32_45 = arith.constant 1 : i32
    %67 = tpu.dynamic_rotate %39 by %c1_i32_45 dim 1 : vector<16x128xf32>, i32 -> vector<16x128xf32>
    %c1_i32_46 = arith.constant 1 : i32
    %68 = tpu.dynamic_rotate %40 by %c1_i32_46 dim 1 : vector<4x128xf32>, i32 -> vector<4x128xf32>
    %c2_i32 = arith.constant 2 : i32
    %69 = arith.addi %0, %c2_i32 : i32
    %70 = vector.broadcast %69 : i32 to vector<1x128xi32>
    %71 = arith.cmpi sge, %2, %70 : vector<1x128xi32>
    %72 = arith.mulf %4, %67 : vector<16x128xf32>
    %cst_47 = arith.constant dense<0.000000e+00> : vector<8x128xf32>
    %73 = tpu.matmul %1, %72, %cst_47 {dimension_numbers = #tpu.dot_dimension_numbers<[1], [0], [0], [1], [0, 0, 1, 1], [], []>, precision = #tpu.contract_precision<fp32>} : vector<8x16xf32>, vector<16x128xf32>, vector<8x128xf32> -> vector<8x128xf32>
    %cst_48 = arith.constant 0.000000e+00 : f32
    %74 = vector.shape_cast %71 : vector<1x128xi1> to vector<1x128xi1>
    %75 = vector.broadcast %74 : vector<1x128xi1> to vector<8x128xi1>
    %76 = vector.broadcast %cst_48 : f32 to vector<8x128xf32>
    %77 = arith.select %75, %73, %76 : vector<8x128xi1>, vector<8x128xf32>
    %c0_49 = arith.constant 0 : index
    %c0_50 = arith.constant 0 : index
    %c2 = arith.constant 2 : index
    %c0_51 = arith.constant 0 : index
    %78 = vector.load %arg9[%c0_49, %c0_50, %c2, %c0_51] : memref<1x16x4x128xf32, #tpu.memory_space<vmem>>, vector<1x8x1x128xf32>
    %79 = vector.shape_cast %78 : vector<1x8x1x128xf32> to vector<8x128xf32>
    %80 = vector.shape_cast %77 : vector<8x128xf32> to vector<1x8x1x128xf32>
    tpu.vector_store %arg9[%c0_49, %c0_50, %c2, %c0_51], %80 {strides = array<i32>} : memref<1x16x4x128xf32, #tpu.memory_space<vmem>>, vector<1x8x1x128xf32>,
    %cst_52 = arith.constant 0.000000e+00 : f32
    %81 = vector.shape_cast %71 : vector<1x128xi1> to vector<1x128xi1>
    %82 = vector.broadcast %81 : vector<1x128xi1> to vector<4x128xi1>
    %83 = vector.broadcast %cst_52 : f32 to vector<4x128xf32>
    %84 = arith.select %82, %8, %83 : vector<4x128xi1>, vector<4x128xf32>
    %c0_53 = arith.constant 0 : index
    %c8_54 = arith.constant 8 : index
    %c2_55 = arith.constant 2 : index
    %c0_56 = arith.constant 0 : index
    %85 = vector.load %arg9[%c0_53, %c8_54, %c2_55, %c0_56] : memref<1x16x4x128xf32, #tpu.memory_space<vmem>>, vector<1x4x1x128xf32>
    %86 = vector.shape_cast %85 : vector<1x4x1x128xf32> to vector<4x128xf32>
    %87 = vector.shape_cast %84 : vector<4x128xf32> to vector<1x4x1x128xf32>
    tpu.vector_store %arg9[%c0_53, %c8_54, %c2_55, %c0_56], %87 {strides = array<i32>} : memref<1x16x4x128xf32, #tpu.memory_space<vmem>>, vector<1x4x1x128xf32>,
    %cst_57 = arith.constant 0.000000e+00 : f32
    %88 = vector.shape_cast %71 : vector<1x128xi1> to vector<1x128xi1>
    %89 = vector.broadcast %88 : vector<1x128xi1> to vector<4x128xi1>
    %90 = vector.broadcast %cst_57 : f32 to vector<4x128xf32>
    %91 = arith.select %89, %68, %90 : vector<4x128xi1>, vector<4x128xf32>
    %c0_58 = arith.constant 0 : index
    %c12_59 = arith.constant 12 : index
    %c2_60 = arith.constant 2 : index
    %c0_61 = arith.constant 0 : index
    %92 = vector.load %arg9[%c0_58, %c12_59, %c2_60, %c0_61] : memref<1x16x4x128xf32, #tpu.memory_space<vmem>>, vector<1x4x1x128xf32>
    %93 = vector.shape_cast %92 : vector<1x4x1x128xf32> to vector<4x128xf32>
    %94 = vector.shape_cast %91 : vector<4x128xf32> to vector<1x4x1x128xf32>
    tpu.vector_store %arg9[%c0_58, %c12_59, %c2_60, %c0_61], %94 {strides = array<i32>} : memref<1x16x4x128xf32, #tpu.memory_space<vmem>>, vector<1x4x1x128xf32>,
    %c1_i32_62 = arith.constant 1 : i32
    %95 = tpu.dynamic_rotate %67 by %c1_i32_62 dim 1 : vector<16x128xf32>, i32 -> vector<16x128xf32>
    %c1_i32_63 = arith.constant 1 : i32
    %96 = tpu.dynamic_rotate %68 by %c1_i32_63 dim 1 : vector<4x128xf32>, i32 -> vector<4x128xf32>
    %c3_i32 = arith.constant 3 : i32
    %97 = arith.addi %0, %c3_i32 : i32
    %98 = vector.broadcast %97 : i32 to vector<1x128xi32>
    %99 = arith.cmpi sge, %2, %98 : vector<1x128xi32>
    %100 = arith.mulf %4, %95 : vector<16x128xf32>
    %cst_64 = arith.constant dense<0.000000e+00> : vector<8x128xf32>
    %101 = tpu.matmul %1, %100, %cst_64 {dimension_numbers = #tpu.dot_dimension_numbers<[1], [0], [0], [1], [0, 0, 1, 1], [], []>, precision = #tpu.contract_precision<fp32>} : vector<8x16xf32>, vector<16x128xf32>, vector<8x128xf32> -> vector<8x128xf32>
    %cst_65 = arith.constant 0.000000e+00 : f32
    %102 = vector.shape_cast %99 : vector<1x128xi1> to vector<1x128xi1>
    %103 = vector.broadcast %102 : vector<1x128xi1> to vector<8x128xi1>
    %104 = vector.broadcast %cst_65 : f32 to vector<8x128xf32>
    %105 = arith.select %103, %101, %104 : vector<8x128xi1>, vector<8x128xf32>
    %c0_66 = arith.constant 0 : index
    %c0_67 = arith.constant 0 : index
    %c3 = arith.constant 3 : index
    %c0_68 = arith.constant 0 : index
    %106 = vector.load %arg9[%c0_66, %c0_67, %c3, %c0_68] : memref<1x16x4x128xf32, #tpu.memory_space<vmem>>, vector<1x8x1x128xf32>
    %107 = vector.shape_cast %106 : vector<1x8x1x128xf32> to vector<8x128xf32>
    %108 = vector.shape_cast %105 : vector<8x128xf32> to vector<1x8x1x128xf32>
    tpu.vector_store %arg9[%c0_66, %c0_67, %c3, %c0_68], %108 {strides = array<i32>} : memref<1x16x4x128xf32, #tpu.memory_space<vmem>>, vector<1x8x1x128xf32>,
    %cst_69 = arith.constant 0.000000e+00 : f32
    %109 = vector.shape_cast %99 : vector<1x128xi1> to vector<1x128xi1>
    %110 = vector.broadcast %109 : vector<1x128xi1> to vector<4x128xi1>
    %111 = vector.broadcast %cst_69 : f32 to vector<4x128xf32>
    %112 = arith.select %110, %8, %111 : vector<4x128xi1>, vector<4x128xf32>
    %c0_70 = arith.constant 0 : index
    %c8_71 = arith.constant 8 : index
    %c3_72 = arith.constant 3 : index
    %c0_73 = arith.constant 0 : index
    %113 = vector.load %arg9[%c0_70, %c8_71, %c3_72, %c0_73] : memref<1x16x4x128xf32, #tpu.memory_space<vmem>>, vector<1x4x1x128xf32>
    %114 = vector.shape_cast %113 : vector<1x4x1x128xf32> to vector<4x128xf32>
    %115 = vector.shape_cast %112 : vector<4x128xf32> to vector<1x4x1x128xf32>
    tpu.vector_store %arg9[%c0_70, %c8_71, %c3_72, %c0_73], %115 {strides = array<i32>} : memref<1x16x4x128xf32, #tpu.memory_space<vmem>>, vector<1x4x1x128xf32>,
    %cst_74 = arith.constant 0.000000e+00 : f32
    %116 = vector.shape_cast %99 : vector<1x128xi1> to vector<1x128xi1>
    %117 = vector.broadcast %116 : vector<1x128xi1> to vector<4x128xi1>
    %118 = vector.broadcast %cst_74 : f32 to vector<4x128xf32>
    %119 = arith.select %117, %96, %118 : vector<4x128xi1>, vector<4x128xf32>
    %c0_75 = arith.constant 0 : index
    %c12_76 = arith.constant 12 : index
    %c3_77 = arith.constant 3 : index
    %c0_78 = arith.constant 0 : index
    %120 = vector.load %arg9[%c0_75, %c12_76, %c3_77, %c0_78] : memref<1x16x4x128xf32, #tpu.memory_space<vmem>>, vector<1x4x1x128xf32>
    %121 = vector.shape_cast %120 : vector<1x4x1x128xf32> to vector<4x128xf32>
    %122 = vector.shape_cast %119 : vector<4x128xf32> to vector<1x4x1x128xf32>
    tpu.vector_store %arg9[%c0_75, %c12_76, %c3_77, %c0_78], %122 {strides = array<i32>} : memref<1x16x4x128xf32, #tpu.memory_space<vmem>>, vector<1x4x1x128xf32>,
    return
  }
  func.func @transform_0(%arg0: i32, %arg1: i32, %arg2: i32) -> (i32, i32) {
    %c0_i32 = arith.constant 0 : i32
    %c0_i32_0 = arith.constant 0 : i32
    %c0_i32_1 = arith.constant 0 : i32
    return %c0_i32, %c0_i32_0 : i32, i32
  }
  func.func @transform_1(%arg0: i32, %arg1: i32, %arg2: i32) -> (i32, i32) {
    %c0_i32 = arith.constant 0 : i32
    %c0_i32_0 = arith.constant 0 : i32
    return %c0_i32, %arg1 : i32, i32
  }
  func.func @transform_2(%arg0: i32, %arg1: i32, %arg2: i32) -> (i32, i32, i32) {
    %c0_i32 = arith.constant 0 : i32
    %c0_i32_0 = arith.constant 0 : i32
    return %arg0, %c0_i32, %arg1 : i32, i32, i32
  }
  func.func @transform_3(%arg0: i32, %arg1: i32, %arg2: i32) -> (i32, i32, i32) {
    %c0_i32 = arith.constant 0 : i32
    %c0_i32_0 = arith.constant 0 : i32
    return %arg0, %c0_i32, %arg1 : i32, i32, i32
  }
  func.func @transform_4(%arg0: i32, %arg1: i32, %arg2: i32) -> (i32, i32, i32) {
    %c0_i32 = arith.constant 0 : i32
    %c0_i32_0 = arith.constant 0 : i32
    return %arg0, %c0_i32, %arg1 : i32, i32, i32
  }
  func.func @transform_5(%arg0: i32, %arg1: i32, %arg2: i32) -> (i32, i32, i32) {
    %c0_i32 = arith.constant 0 : i32
    %c0_i32_0 = arith.constant 0 : i32
    return %arg0, %c0_i32, %arg1 : i32, i32, i32
  }
  func.func @transform_6(%arg0: i32, %arg1: i32, %arg2: i32) -> (i32, i32, i32, i32) {
    %c0_i32 = arith.constant 0 : i32
    %c0_i32_0 = arith.constant 0 : i32
    return %arg0, %c0_i32, %arg2, %arg1 : i32, i32, i32, i32
  }
}

</mosaic_0001>

<llo_original>
// kernel: tpu_custom_call.1
$region0: #{tpu_custom_call.1}
  #allocation0 [shape = 'u32[]', space=smem, size = 0x4, offset = 0x4, fixed_abs, tag = 'smem constant byte address 0x4 - core index']
  #allocation1 [shape = 'u32[144,128]{1,0:T(1,128)}', space=vmem, size = 0x12000, scoped, tag = 'internal scratch']
  %s0 = inlined_call_operand.hbm [shape: f32[8,16], index: 0, kind: input, shape index: {}]
  %s1 = inlined_call_operand.vmem [shape: s32[1,128], index: 1, kind: input, shape index: {}]
  %s2 = inlined_call_operand.hbm [shape: f32[2,16,128], index: 2, kind: input, shape index: {}]
  %s3 = inlined_call_operand.hbm [shape: f32[2,16,128], index: 3, kind: input, shape index: {}]
  %s4 = inlined_call_operand.vmem [shape: f32[2,4,128], index: 4, kind: input, shape index: {}]
  %s5 = inlined_call_operand.vmem [shape: f32[2,4,128], index: 5, kind: input, shape index: {}]
  %s6 = inlined_call_operand.hbm [shape: f32[2,16,4,128], index: 6, kind: output, shape index: {}]
  %s7 = sld [smem:[#allocation0]]
  $region69: #{tpu_custom_call.1} parent=0
    _
  %s9 = ssub.s32 1, %s7
  %s10 = scalar_select 0, %s9, %s7
  $region1: #{tpu_custom_call.1} parent=0
    #allocation2 [shape = 'u8[4096]{0}', space=vmem, size = 0x1000, scoped, tag = 'input window, operand 0, single buffered']
    #allocation3 [shape = 's32[2]{0}', space=sflag, size = 0x8, scoped, tag = 'scoped memory for tpu_custom_call.1']
    #allocation4 [shape = 's32[2]{0}', space=sflag, size = 0x8, scoped, tag = 'scoped memory for tpu_custom_call.1']
    #allocation5 [shape = 'u8[16384]{0}', space=vmem, size = 0x4000, scoped, tag = 'input window, operand 2']
    #allocation6 [shape = 's32[2]{0}', space=sflag, size = 0x8, scoped, tag = 'scoped memory for tpu_custom_call.1']
    #allocation7 [shape = 'u8[16384]{0}', space=vmem, size = 0x4000, scoped, tag = 'input window, operand 3']
    #allocation8 [shape = 'u8[65536]{0}', space=vmem, size = 0x10000, scoped, tag = 'output window, operand 0']
    %11 = vsyncpa [#allocation3], 0
    %12 = vsyncpa [#allocation6], 0
    %s13 = scalar_lea.sflag [#allocation6], 1
    %14 = vsyncpa %s13, 0
    %15 = vsyncpa [#allocation4], 0
    %s16 = scalar_lea.sflag [#allocation4], 1
    %17 = vsyncpa %s16, 0
    loop: start=0, step=1, limit=4
    $region2: #{tpu_custom_call.1} parent=1 // loop_pre_header
      _
    $region3: #{tpu_custom_call.1} parent=1 // loop_header
      %s19 = sphi 0, %s23
      %p20 = scmp.ge.s32.totalorder %s19, 4
      %s26 = sphi 0, %s45
      %s27 = sphi 0, %s41
      %s28 = sphi 0, %s37
      %s29 = sphi 0, %s26
      %s30 = sphi 0, %s27
      %s31 = sphi 0, %s28
      %s32 = sphi 0, %s29
      %s33 = sphi 0, %s30
      %s34 = sphi 0, %s31
      %s46 = sphi 0, %s46
      %s48 = sphi 0, %s46
      %s49 = sphi 0, %s48
      %s63 = sphi 0, %s49
      %s69 = sphi 0, %s71
      %s72 = sphi 0, %s69
      %s73 = sphi 0, %s72
      %s89 = sphi 0, %s73
      %s97 = sphi 0, %s99
      %s100 = sphi 0, %s97
      %s101 = sphi 0, %s100
      %s117 = sphi 0, %s101
      %s125 = sphi 0, %s127
      %s128 = sphi 0, %s125
      %s129 = sphi 0, %s128
      %s145 = sphi 0, %s129
      %s153 = sphi 0, %s155
      %s156 = sphi 0, %s153
      %s157 = sphi 0, %s156
      %s173 = sphi 0, %s157
      %s181 = sphi 0, %s183
      %s184 = sphi 0, %s181
      %s185 = sphi 0, %s184
      %s201 = sphi 0, %s185
      %s211 = sphi 0, %s213
      %s214 = sphi 0, %s211
      %s215 = sphi 0, %s214
      %s231 = sphi 0, %s215
    $region4: #{tpu_custom_call.1} parent=1 // loop_header_branch
      %22 = sbr.rel (%p20) target = $region8
    $region5: #{tpu_custom_call.1} parent=1 // loop_body
      %s24 = ssub.s32 %s19, 1
      %s25 = ssub.s32 %s19, 2
      %s35 = sadd.s32 1, %s28
      %p36 = scmp.ge.s32.totalorder %s35, 1
      %s37 = scalar_select %p36, 0, %s35
      %s38 = sadd.s32 1, %s27
      %s39 = scalar_select %p36, %s38, %s27
      %p40 = scmp.ge.s32.totalorder %s39, 1
      %s41 = scalar_select %p40, 0, %s39
      %s42 = sadd.s32 1, %s26
      %s43 = scalar_select %p40, %s42, %s26
      %p44 = scmp.ge.s32.totalorder %s43, 2
      %s45 = scalar_select %p44, 0, %s43
      %s47 = sadd.s32 %s46, 1
      %p50 = scmp.eq.s32.totalorder %s19, 1
      %p51 = scmp.ne.s32.totalorder %s46, %s48
      %p52 = scmp.eq.s32.totalorder %s19, 0
      %p53 = por %p51, %p52
      %p54 = scmp.ne.s32.totalorder %s46, %s48
      %p55 = scmp.eq.s32.totalorder %s24, 1
      %p56 = por %p54, %p55
      %p57 = scmp.ne.s32.totalorder %s48, %s49
      %p58 = scmp.eq.s32.totalorder %s24, 0
      %p59 = por %p57, %p58
      %p60 = scmp.ne.s32.totalorder %s48, %s49
      %p61 = scmp.eq.s32.totalorder %s25, 1
      %p62 = por %p60, %p61
      %p64 = scmp.ne.s32.totalorder %s49, %s63
      %p65 = scmp.eq.s32.totalorder %s25, 0
      %p66 = por %p64, %p65
      %s67 = ssub.s32 %s27, %s41
      %p68 = scmp.eq.s32.totalorder %s67, 0
      %s70 = sadd.s32 %s69, 1
      %s71 = scalar_select %p68, %s69, %s70
      %p74 = pneg %p68
      %p75 = scmp.eq.s32.totalorder %s19, 1
      %p76 = por %p74, %p75
      %p77 = scmp.ne.s32.totalorder %s69, %s72
      %p78 = scmp.eq.s32.totalorder %s19, 0
      %p79 = por %p77, %p78
      %p80 = scmp.ne.s32.totalorder %s69, %s72
      %p81 = scmp.eq.s32.totalorder %s24, 1
      %p82 = por %p80, %p81
      %p83 = scmp.ne.s32.totalorder %s72, %s73
      %p84 = scmp.eq.s32.totalorder %s24, 0
      %p85 = por %p83, %p84
      %p86 = scmp.ne.s32.totalorder %s72, %s73
      %p87 = scmp.eq.s32.totalorder %s25, 1
      %p88 = por %p86, %p87
      %p90 = scmp.ne.s32.totalorder %s73, %s89
      %p91 = scmp.eq.s32.totalorder %s25, 0
      %p92 = por %p90, %p91
      %s93 = ssub.s32 %s26, %s45
      %s94 = ssub.s32 %s27, %s41
      %s95 = sor.u32 %s93, %s94
      %p96 = scmp.eq.s32.totalorder %s95, 0
      %s98 = sadd.s32 %s97, 1
      %s99 = scalar_select %p96, %s97, %s98
      %p102 = pneg %p96
      %p103 = scmp.eq.s32.totalorder %s19, 1
      %p104 = por %p102, %p103
      %p105 = scmp.ne.s32.totalorder %s97, %s100
      %p106 = scmp.eq.s32.totalorder %s19, 0
      %p107 = por %p105, %p106
      %p108 = scmp.ne.s32.totalorder %s97, %s100
      %p109 = scmp.eq.s32.totalorder %s24, 1
      %p110 = por %p108, %p109
      %p111 = scmp.ne.s32.totalorder %s100, %s101
      %p112 = scmp.eq.s32.totalorder %s24, 0
      %p113 = por %p111, %p112
      %p114 = scmp.ne.s32.totalorder %s100, %s101
      %p115 = scmp.eq.s32.totalorder %s25, 1
      %p116 = por %p114, %p115
      %p118 = scmp.ne.s32.totalorder %s101, %s117
      %p119 = scmp.eq.s32.totalorder %s25, 0
      %p120 = por %p118, %p119
      %s121 = ssub.s32 %s26, %s45
      %s122 = ssub.s32 %s27, %s41
      %s123 = sor.u32 %s121, %s122
      %p124 = scmp.eq.s32.totalorder %s123, 0
      %s126 = sadd.s32 %s125, 1
      %s127 = scalar_select %p124, %s125, %s126
      %p130 = pneg %p124
      %p131 = scmp.eq.s32.totalorder %s19, 1
      %p132 = por %p130, %p131
      %p133 = scmp.ne.s32.totalorder %s125, %s128
      %p134 = scmp.eq.s32.totalorder %s19, 0
      %p135 = por %p133, %p134
      %p136 = scmp.ne.s32.totalorder %s125, %s128
      %p137 = scmp.eq.s32.totalorder %s24, 1
      %p138 = por %p136, %p137
      %p139 = scmp.ne.s32.totalorder %s128, %s129
      %p140 = scmp.eq.s32.totalorder %s24, 0
      %p141 = por %p139, %p140
      %p142 = scmp.ne.s32.totalorder %s128, %s129
      %p143 = scmp.eq.s32.totalorder %s25, 1
      %p144 = por %p142, %p143
      %p146 = scmp.ne.s32.totalorder %s129, %s145
      %p147 = scmp.eq.s32.totalorder %s25, 0
      %p148 = por %p146, %p147
      %s149 = ssub.s32 %s26, %s45
      %s150 = ssub.s32 %s27, %s41
      %s151 = sor.u32 %s149, %s150
      %p152 = scmp.eq.s32.totalorder %s151, 0
      %s154 = sadd.s32 %s153, 1
      %s155 = scalar_select %p152, %s153, %s154
      %p158 = pneg %p152
      %p159 = scmp.eq.s32.totalorder %s19, 1
      %p160 = por %p158, %p159
      %p161 = scmp.ne.s32.totalorder %s153, %s156
      %p162 = scmp.eq.s32.totalorder %s19, 0
      %p163 = por %p161, %p162
      %p164 = scmp.ne.s32.totalorder %s153, %s156
      %p165 = scmp.eq.s32.totalorder %s24, 1
      %p166 = por %p164, %p165
      %p167 = scmp.ne.s32.totalorder %s156, %s157
      %p168 = scmp.eq.s32.totalorder %s24, 0
      %p169 = por %p167, %p168
      %p170 = scmp.ne.s32.totalorder %s156, %s157
      %p171 = scmp.eq.s32.totalorder %s25, 1
      %p172 = por %p170, %p171
      %p174 = scmp.ne.s32.totalorder %s157, %s173
      %p175 = scmp.eq.s32.totalorder %s25, 0
      %p176 = por %p174, %p175
      %s177 = ssub.s32 %s26, %s45
      %s178 = ssub.s32 %s27, %s41
      %s179 = sor.u32 %s177, %s178
      %p180 = scmp.eq.s32.totalorder %s179, 0
      %s182 = sadd.s32 %s181, 1
      %s183 = scalar_select %p180, %s181, %s182
      %p186 = pneg %p180
      %p187 = scmp.eq.s32.totalorder %s19, 1
      %p188 = por %p186, %p187
      %p189 = scmp.ne.s32.totalorder %s181, %s184
      %p190 = scmp.eq.s32.totalorder %s19, 0
      %p191 = por %p189, %p190
      %p192 = scmp.ne.s32.totalorder %s181, %s184
      %p193 = scmp.eq.s32.totalorder %s24, 1
      %p194 = por %p192, %p193
      %p195 = scmp.ne.s32.totalorder %s184, %s185
      %p196 = scmp.eq.s32.totalorder %s24, 0
      %p197 = por %p195, %p196
      %p198 = scmp.ne.s32.totalorder %s184, %s185
      %p199 = scmp.eq.s32.totalorder %s25, 1
      %p200 = por %p198, %p199
      %p202 = scmp.ne.s32.totalorder %s185, %s201
      %p203 = scmp.eq.s32.totalorder %s25, 0
      %p204 = por %p202, %p203
      %s205 = ssub.s32 %s26, %s45
      %s206 = ssub.s32 %s28, %s37
      %s207 = sor.u32 %s205, %s206
      %s208 = ssub.s32 %s27, %s41
      %s209 = sor.u32 %s207, %s208
      %p210 = scmp.eq.s32.totalorder %s209, 0
      %s212 = sadd.s32 %s211, 1
      %s213 = scalar_select %p210, %s211, %s212
      %p216 = pneg %p210
      %p217 = scmp.eq.s32.totalorder %s19, 1
      %p218 = por %p216, %p217
      %p219 = scmp.ne.s32.totalorder %s211, %s214
      %p220 = scmp.eq.s32.totalorder %s19, 0
      %p221 = por %p219, %p220
      %p222 = scmp.ne.s32.totalorder %s211, %s214
      %p223 = scmp.eq.s32.totalorder %s24, 1
      %p224 = por %p222, %p223
      %p225 = scmp.ne.s32.totalorder %s214, %s215
      %p226 = scmp.eq.s32.totalorder %s24, 0
      %p227 = por %p225, %p226
      %p228 = scmp.ne.s32.totalorder %s214, %s215
      %p229 = scmp.eq.s32.totalorder %s25, 1
      %p230 = por %p228, %p229
      %p232 = scmp.ne.s32.totalorder %s215, %s231
      %p233 = scmp.eq.s32.totalorder %s25, 0
      %p234 = por %p232, %p233
      %p235 = scmp.le.s32.totalorder 1, %s19
      %p236 = scmp.lt.s32.totalorder %s19, 3
      %p237 = pnand %p235, %p236
      %p238 = pneg %p237
      // Predicated region
      $region9: #{tpu_custom_call.1} parent=5 // pred_check
        _
      $region10: #{tpu_custom_call.1} parent=5 // pred_check_branch
        %240 = sbr.rel (%p237) target = $region12
      $region11: #{tpu_custom_call.1} parent=5 // pred_region
        %s241 = ssub.s32 %s19, 1
        // Predicated region
        $region13: #{tpu_custom_call.1} parent=11 // pred_check
          %p242 = pneg %p59
        $region14: #{tpu_custom_call.1} parent=11 // pred_check_branch
          %244 = sbr.rel (%p242) target = $region16
        $region15: #{tpu_custom_call.1} parent=11 // pred_region
          %s246 = ssub.s32 128, 128
          %247 = vsyncadd [#allocation3], %s246
          %s249 = sshll.u32 [#allocation2], 4
          %s250 = int_to_ptr.vmem [resolvable:$true] %s249
          %252 = dma.hbm_to_vmem [thread:$0]  %s0, 128, %s250, [#allocation3]
        $region16: #{tpu_custom_call.1} parent=11 // pred_fallthru
          _
        // Predicated region
        $region17: #{tpu_custom_call.1} parent=11 // pred_check
          %p253 = pneg %p85
        $region18: #{tpu_custom_call.1} parent=11 // pred_check_branch
          %255 = sbr.rel (%p253) target = $region20
        $region19: #{tpu_custom_call.1} parent=11 // pred_region
          %p256 = scmp.lt.s32.totalorder %s30, 0
          %s257 = scalar_select %p256, %s30, 0
          %s258 = scalar_lea.vmem %s1, %s257
        $region20: #{tpu_custom_call.1} parent=11 // pred_fallthru
          _
      $region12: #{tpu_custom_call.1} parent=5 // pred_fallthru
        _
      %p259 = scmp.lt.s32.totalorder %s19, 2
      // Predicated region
      $region21: #{tpu_custom_call.1} parent=5 // pred_check
        %p260 = pneg %p259
      $region22: #{tpu_custom_call.1} parent=5 // pred_check_branch
        %262 = sbr.rel (%p260) target = $region24
      $region23: #{tpu_custom_call.1} parent=5 // pred_region
        // Predicated region
        $region25: #{tpu_custom_call.1} parent=23 // pred_check
          %p263 = pneg %p107
        $region26: #{tpu_custom_call.1} parent=23 // pred_check_branch
          %265 = sbr.rel (%p263) target = $region28
        $region27: #{tpu_custom_call.1} parent=23 // pred_region
          %s266 = sand.u32 %s19, 1
          %s267 = scalar_lea.sflag [#allocation6], %s266
          %s268 = sand.u32 %s97, 1
          %s269 = smul.addr %s268, 16
          %s270 = scalar_lea.vmem [#allocation5], %s269
          %s272 = ssub.s32 256, 256
          %273 = vsyncadd %s267, %s272
          %s274 = smul.addr %s26, 2
          %s275 = sadd.s32 %s27, %s274
          %s276 = smul.addr %s275, 128
          %s277 = scalar_lea.hbm %s2, %s276
          %s278 = sshll.u32 %s270, 4
          %s279 = int_to_ptr.vmem [resolvable:$true] %s278
          %284 = dma.hbm_to_vmem [thread:$0]  %s277, 256, %s279, %s267, 128, 128, 8
        $region28: #{tpu_custom_call.1} parent=23 // pred_fallthru
          _
        // Predicated region
        $region29: #{tpu_custom_call.1} parent=23 // pred_check
          %p285 = pneg %p135
        $region30: #{tpu_custom_call.1} parent=23 // pred_check_branch
          %287 = sbr.rel (%p285) target = $region32
        $region31: #{tpu_custom_call.1} parent=23 // pred_region
          %s288 = sand.u32 %s19, 1
          %s289 = scalar_lea.sflag [#allocation6], %s288
          %s290 = sand.u32 %s125, 1
          %s291 = smul.addr %s290, 16
          %s292 = scalar_lea.vmem [#allocation7], %s291
          %s294 = ssub.s32 256, 256
          %295 = vsyncadd %s289, %s294
          %s296 = smul.addr %s26, 2
          %s297 = sadd.s32 %s27, %s296
          %s298 = smul.addr %s297, 128
          %s299 = scalar_lea.hbm %s3, %s298
          %s300 = sshll.u32 %s292, 4
          %s301 = int_to_ptr.vmem [resolvable:$true] %s300
          %306 = dma.hbm_to_vmem [thread:$0]  %s299, 256, %s301, %s289, 128, 128, 8
        $region32: #{tpu_custom_call.1} parent=23 // pred_fallthru
          _
        // Predicated region
        $region33: #{tpu_custom_call.1} parent=23 // pred_check
          %p307 = pneg %p163
        $region34: #{tpu_custom_call.1} parent=23 // pred_check_branch
          %309 = sbr.rel (%p307) target = $region36
        $region35: #{tpu_custom_call.1} parent=23 // pred_region
          %p310 = scmp.lt.s32.totalorder %s26, 1
          %s311 = scalar_select %p310, %s26, 1
          %p312 = scmp.lt.s32.totalorder %s27, 0
          %s313 = scalar_select %p312, %s27, 0
          %s314 = sadd.s32 %s313, %s311
          %s315 = smul.addr %s314, 4
          %s316 = scalar_lea.vmem %s4, %s315
        $region36: #{tpu_custom_call.1} parent=23 // pred_fallthru
          _
        // Predicated region
        $region37: #{tpu_custom_call.1} parent=23 // pred_check
          %p317 = pneg %p191
        $region38: #{tpu_custom_call.1} parent=23 // pred_check_branch
          %319 = sbr.rel (%p317) target = $region40
        $region39: #{tpu_custom_call.1} parent=23 // pred_region
          %p320 = scmp.lt.s32.totalorder %s26, 1
          %s321 = scalar_select %p320, %s26, 1
          %p322 = scmp.lt.s32.totalorder %s27, 0
          %s323 = scalar_select %p322, %s27, 0
          %s324 = sadd.s32 %s323, %s321
          %s325 = smul.addr %s324, 4
          %s326 = scalar_lea.vmem %s5, %s325
        $region40: #{tpu_custom_call.1} parent=23 // pred_fallthru
          _
      $region24: #{tpu_custom_call.1} parent=5 // pred_fallthru
        _
      %p327 = scmp.le.s32.totalorder 1, %s19
      %p328 = scmp.lt.s32.totalorder %s19, 3
      %p329 = pnand %p327, %p328
      %p330 = pneg %p329
      // Predicated region
      $region41: #{tpu_custom_call.1} parent=5 // pred_check
        _
      $region42: #{tpu_custom_call.1} parent=5 // pred_check_branch
        %332 = sbr.rel (%p329) target = $region44
      $region43: #{tpu_custom_call.1} parent=5 // pred_region
        %s333 = ssub.s32 %s19, 1
        // Predicated region
        $region45: #{tpu_custom_call.1} parent=43 // pred_check
          %p334 = pneg %p59
        $region46: #{tpu_custom_call.1} parent=43 // pred_check_branch
          %336 = sbr.rel (%p334) target = $region48
        $region47: #{tpu_custom_call.1} parent=43 // pred_region
          %337 = dma.done [#allocation3], 128
        $region48: #{tpu_custom_call.1} parent=43 // pred_fallthru
          _
        %s338 = sand.u32 %s24, 1
        %s339 = scalar_lea.sflag [#allocation6], %s338
        %s340 = sand.u32 %s100, 1
        %s341 = smul.addr %s340, 16
        %s342 = scalar_lea.vmem [#allocation5], %s341
        // Predicated region
        $region49: #{tpu_custom_call.1} parent=43 // pred_check
          %p343 = pneg %p113
        $region50: #{tpu_custom_call.1} parent=43 // pred_check_branch
          %345 = sbr.rel (%p343) target = $region52
        $region51: #{tpu_custom_call.1} parent=43 // pred_region
          %346 = dma.done %s339, 256
        $region52: #{tpu_custom_call.1} parent=43 // pred_fallthru
          _
        %s347 = sand.u32 %s24, 1
        %s348 = scalar_lea.sflag [#allocation6], %s347
        %s349 = sand.u32 %s128, 1
        %s350 = smul.addr %s349, 16
        %s351 = scalar_lea.vmem [#allocation7], %s350
        // Predicated region
        $region53: #{tpu_custom_call.1} parent=43 // pred_check
          %p352 = pneg %p141
        $region54: #{tpu_custom_call.1} parent=43 // pred_check_branch
          %354 = sbr.rel (%p352) target = $region56
        $region55: #{tpu_custom_call.1} parent=43 // pred_region
          %355 = dma.done %s348, 256
        $region56: #{tpu_custom_call.1} parent=43 // pred_fallthru
          _
        %p356 = pneg %p59
        %p357 = pneg %p56
        %p358 = scmp.lt.s32.totalorder %s30, 0
        %s359 = scalar_select %p358, %s30, 0
        %s360 = scalar_lea.vmem %s1, %s359
        %p361 = pneg %p85
        %p362 = pneg %p82
        %s363 = sand.u32 %s24, 1
        %s364 = scalar_lea.sflag [#allocation6], %s363
        %s365 = sand.u32 %s100, 1
        %s366 = smul.addr %s365, 16
        %s367 = scalar_lea.vmem [#allocation5], %s366
        %p368 = pneg %p113
        %p369 = pneg %p110
        %s370 = sand.u32 %s24, 1
        %s371 = scalar_lea.sflag [#allocation6], %s370
        %s372 = sand.u32 %s128, 1
        %s373 = smul.addr %s372, 16
        %s374 = scalar_lea.vmem [#allocation7], %s373
        %p375 = pneg %p141
        %p376 = pneg %p138
        %p377 = scmp.lt.s32.totalorder %s29, 1
        %s378 = scalar_select %p377, %s29, 1
        %p379 = scmp.lt.s32.totalorder %s30, 0
        %s380 = scalar_select %p379, %s30, 0
        %s381 = sadd.s32 %s380, %s378
        %s382 = smul.addr %s381, 4
        %s383 = scalar_lea.vmem %s4, %s382
        %p384 = pneg %p169
        %p385 = pneg %p166
        %p386 = scmp.lt.s32.totalorder %s29, 1
        %s387 = scalar_select %p386, %s29, 1
        %p388 = scmp.lt.s32.totalorder %s30, 0
        %s389 = scalar_select %p388, %s30, 0
        %s390 = sadd.s32 %s389, %s387
        %s391 = smul.addr %s390, 4
        %s392 = scalar_lea.vmem %s5, %s391
        %p393 = pneg %p197
        %p394 = pneg %p194
        %p395 = pneg %p227
        %p396 = pneg %p224
        %s397 = sand.u32 %s214, 1
        %s398 = scalar_lea.sflag [#allocation4], %s397
        %s399 = sand.u32 %s214, 1
        %s400 = smul.addr %s399, 64
        %s401 = scalar_lea.vmem [#allocation8], %s400
        %p402 = scmp.lt.s32.totalorder %s30, 0
        %s403 = scalar_select %p402, %s30, 0
        %s404 = scalar_lea.vmem %s1, %s403
        %p405 = scmp.lt.s32.totalorder %s29, 1
        %s406 = scalar_select %p405, %s29, 1
        %p407 = scmp.lt.s32.totalorder %s30, 0
        %s408 = scalar_select %p407, %s30, 0
        %s409 = sadd.s32 %s408, %s406
        %s410 = smul.addr %s409, 4
        %s411 = scalar_lea.vmem %s4, %s410
        %p412 = scmp.lt.s32.totalorder %s29, 1
        %s413 = scalar_select %p412, %s29, 1
        %p414 = scmp.lt.s32.totalorder %s30, 0
        %s415 = scalar_select %p414, %s30, 0
        %s416 = sadd.s32 %s415, %s413
        %s417 = smul.addr %s416, 4
        %s418 = scalar_lea.vmem %s5, %s417
        %s419 = smul.u32 %s31, 4
        %v420 = vld [vmem:[#allocation2] sm:$0xff]
        %v421 = vld [vmem:[%s404] sm:$0x1]
        %v422 = vld [vmem:[%s342] sm:$0xff]
        %v423 = vld [vmem:[%s342 + $0x8] sm:$0xff]
        %v424 = vld [vmem:[%s351] sm:$0xff]
        %v425 = vld [vmem:[%s351 + $0x8] sm:$0xff]
        %v426 = vld [vmem:[%s411] sm:$0xf]
        %v427 = vld [vmem:[%s418] sm:$0xf]
        %s428 = sand.u32 %s419, 127
        %s429 = sand.u32 %s428, 127
        %430 = vrot.lane.b32.xlu0 %v424, %s429
        %v431 = vpop.permute.xlu0 %430
        %432 = vrot.lane.b32.xlu0 %v425, %s429
        %v433 = vpop.permute.xlu0 %432
        %434 = vrot.lane.b32.xlu0 %v427, %s429
        %v435 = vpop.permute.xlu0 %434
        %v436 = vstv %s419
        %vm437 = vcmp.ge.s32.totalorder %v421, %v436
        %v438 = vmul.f32 %v422, %v431
        %v439 = vmul.f32 %v423, %v433
        %vm440 = vcmask 130048
        %v442 = vsel %vm440, %v420, 0
        %444 = vmatprep.subr.mxu0 0.0
        %v445 = vand.u32 %v438, 4294901760
        %446 = vmatpush1.msra.mxu0 %v445
        %447 = vmatprep.subr.mxu0 0.0
        %v448 = vand.u32 %v439, 4294901760
        %449 = vmatpush1.msra.mxu0 %v448
        %450 = vmatprep.subr.mxu0 0.0
        %451 = vmatpush1.msra.mxu0 0.0
        %452 = vmatprep.subr.mxu0 0.0
        %453 = vmatpush1.msra.mxu0 0.0
        %454 = vmatprep.subr.mxu0 0.0
        %455 = vmatpush1.msra.mxu0 0.0
        %456 = vmatprep.subr.mxu0 0.0
        %457 = vmatpush1.msra.mxu0 0.0
        %458 = vmatprep.subr.mxu0 0.0
        %459 = vmatpush1.msra.mxu0 0.0
        %460 = vmatprep.subr.mxu0 0.0
        %461 = vmatpush1.msra.mxu0 0.0
        %462 = vmatprep.subr.mxu0 0.0
        %463 = vmatpush1.msra.mxu0 0.0
        %464 = vmatprep.subr.mxu0 0.0
        %465 = vmatpush1.msra.mxu0 0.0
        %466 = vmatprep.subr.mxu0 0.0
        %467 = vmatpush1.msra.mxu0 0.0
        %468 = vmatprep.subr.mxu0 0.0
        %469 = vmatpush1.msra.mxu0 0.0
        %470 = vmatprep.subr.mxu0 0.0
        %471 = vmatpush1.msra.mxu0 0.0
        %472 = vmatprep.subr.mxu0 0.0
        %473 = vmatpush1.msra.mxu0 0.0
        %474 = vmatprep.subr.mxu0 0.0
        %475 = vmatpush1.msra.mxu0 0.0
        %476 = vmatprep.subr.mxu0 0.0
        %477 = vmatpush1.msra.mxu0 0.0
        %478 = vmatprep.subr.mxu0 0.0
        %479 = vmatpush1.msra.mxu0 0.0
        %480 = vmatprep.subr.mxu0 0.0
        %481 = vmatpush1.msra.mxu0 0.0
        %482 = vmatprep.subr.mxu0 0.0
        %483 = vmatpush1.msra.mxu0 0.0
        %484 = vmatprep.subr.mxu0 0.0
        %485 = vmatpush1.msra.mxu0 0.0
        %486 = vmatprep.subr.mxu0 0.0
        %487 = vmatpush1.msra.mxu0 0.0
        %488 = vmatprep.subr.mxu0 0.0
        %489 = vmatpush1.msra.mxu0 0.0
        %490 = vmatprep.subr.mxu0 0.0
        %491 = vmatpush1.msra.mxu0 0.0
        %492 = vmatprep.subr.mxu0 0.0
        %493 = vmatpush1.msra.mxu0 0.0
        %494 = vmatprep.subr.mxu0 0.0
        %495 = vmatpush1.msra.mxu0 0.0
        %496 = vmatprep.subr.mxu0 0.0
        %497 = vmatpush1.msra.mxu0 0.0
        %498 = vmatprep.subr.mxu0 0.0
        %499 = vmatpush1.msra.mxu0 0.0
        %500 = vmatprep.subr.mxu0 0.0
        %501 = vmatpush1.msra.mxu0 0.0
        %502 = vmatprep.subr.mxu0 0.0
        %503 = vmatpush1.msra.mxu0 0.0
        %504 = vmatprep.subr.mxu0 0.0
        %505 = vmatpush1.msra.mxu0 0.0
        %506 = vmatprep.subr.mxu0 0.0
        %507 = vmatpush1.msra.mxu0 0.0
        %508 = vmatprep.subr.mxu0 0.0
        %509 = vmatpush1.msra.mxu0 0.0
        %510 = vmatprep.mubr.f32.mxu0 0.0
        %v511 = vand.u32 %v442, 4294901760
        %v512 = vsub.f32 %v442, %v511
        %v513 = vand.u32 %v512, 4294901760
        %v514 = vsub.f32 %v512, %v513
        %v515 = vand.u32 %v514, 4294901760
        %516 = vmatmul.mubr.f32.gmra.mrb[0].mxu0 %v515
        %v517 = vpop.f32.mrb[0].mxu0
        %v518 = vadd.f32 0.0, %v517
        %v519 = vpop.f32.mrb[0].mxu0
        %520 = vdwg.mxu0
        %521 = vmatprep.subr.mxu0 0.0
        %v522 = vand.u32 %v438, 4294901760
        %v523 = vsub.f32 %v438, %v522
        %v524 = vand.u32 %v523, 4294901760
        %v525 = vsub.f32 %v523, %v524
        %v526 = vand.u32 %v525, 4294901760
        %527 = vmatpush1.msra.mxu0 %v526
        %528 = vmatprep.subr.mxu0 0.0
        %v529 = vand.u32 %v439, 4294901760
        %v530 = vsub.f32 %v439, %v529
        %v531 = vand.u32 %v530, 4294901760
        %v532 = vsub.f32 %v530, %v531
        %v533 = vand.u32 %v532, 4294901760
        %534 = vmatpush1.msra.mxu0 %v533
        %535 = vmatprep.subr.mxu0 0.0
        %536 = vmatpush1.msra.mxu0 0.0
        %537 = vmatprep.subr.mxu0 0.0
        %538 = vmatpush1.msra.mxu0 0.0
        %539 = vmatprep.subr.mxu0 0.0
        %540 = vmatpush1.msra.mxu0 0.0
        %541 = vmatprep.subr.mxu0 0.0
        %542 = vmatpush1.msra.mxu0 0.0
        %543 = vmatprep.subr.mxu0 0.0
        %544 = vmatpush1.msra.mxu0 0.0
        %545 = vmatprep.subr.mxu0 0.0
        %546 = vmatpush1.msra.mxu0 0.0
        %547 = vmatprep.subr.mxu0 0.0
        %548 = vmatpush1.msra.mxu0 0.0
        %549 = vmatprep.subr.mxu0 0.0
        %550 = vmatpush1.msra.mxu0 0.0
        %551 = vmatprep.subr.mxu0 0.0
        %552 = vmatpush1.msra.mxu0 0.0
        %553 = vmatprep.subr.mxu0 0.0
        %554 = vmatpush1.msra.mxu0 0.0
        %555 = vmatprep.subr.mxu0 0.0
        %556 = vmatpush1.msra.mxu0 0.0
        %557 = vmatprep.subr.mxu0 0.0
        %558 = vmatpush1.msra.mxu0 0.0
        %559 = vmatprep.subr.mxu0 0.0
        %560 = vmatpush1.msra.mxu0 0.0
        %561 = vmatprep.subr.mxu0 0.0
        %562 = vmatpush1.msra.mxu0 0.0
        %563 = vmatprep.subr.mxu0 0.0
        %564 = vmatpush1.msra.mxu0 0.0
        %565 = vmatprep.subr.mxu0 0.0
        %566 = vmatpush1.msra.mxu0 0.0
        %567 = vmatprep.subr.mxu0 0.0
        %568 = vmatpush1.msra.mxu0 0.0
        %569 = vmatprep.subr.mxu0 0.0
        %570 = vmatpush1.msra.mxu0 0.0
        %571 = vmatprep.subr.mxu0 0.0
        %572 = vmatpush1.msra.mxu0 0.0
        %573 = vmatprep.subr.mxu0 0.0
        %574 = vmatpush1.msra.mxu0 0.0
        %575 = vmatprep.subr.mxu0 0.0
        %576 = vmatpush1.msra.mxu0 0.0
        %577 = vmatprep.subr.mxu0 0.0
        %578 = vmatpush1.msra.mxu0 0.0
        %579 = vmatprep.subr.mxu0 0.0
        %580 = vmatpush1.msra.mxu0 0.0
        %581 = vmatprep.subr.mxu0 0.0
        %582 = vmatpush1.msra.mxu0 0.0
        %583 = vmatprep.subr.mxu0 0.0
        %584 = vmatpush1.msra.mxu0 0.0
        %585 = vmatprep.subr.mxu0 0.0
        %586 = vmatpush1.msra.mxu0 0.0
        %587 = vmatprep.subr.mxu0 0.0
        %588 = vmatpush1.msra.mxu0 0.0
        %589 = vmatprep.subr.mxu0 0.0
        %590 = vmatpush1.msra.mxu0 0.0
        %591 = vmatprep.subr.mxu0 0.0
        %592 = vmatpush1.msra.mxu0 0.0
        %593 = vmatprep.subr.mxu0 0.0
        %594 = vmatpush1.msra.mxu0 0.0
        %595 = vmatprep.mubr.f32.mxu0 0.0
        %v596 = vand.u32 %v442, 4294901760
        %597 = vmatmul.mubr.f32.gmra.mrb[0].mxu0 %v596
        %v598 = vpop.f32.mrb[0].mxu0
        %v599 = vadd.f32 %v518, %v598
        %v600 = vpop.f32.mrb[0].mxu0
        %601 = vdwg.mxu0
        %602 = vmatprep.subr.mxu0 0.0
        %v603 = vand.u32 %v438, 4294901760
        %v604 = vsub.f32 %v438, %v603
        %605 = vmatpush1.msra.mxu0 %v604
        %606 = vmatprep.subr.mxu0 0.0
        %v607 = vand.u32 %v439, 4294901760
        %v608 = vsub.f32 %v439, %v607
        %609 = vmatpush1.msra.mxu0 %v608
        %610 = vmatprep.subr.mxu0 0.0
        %611 = vmatpush1.msra.mxu0 0.0
        %612 = vmatprep.subr.mxu0 0.0
        %613 = vmatpush1.msra.mxu0 0.0
        %614 = vmatprep.subr.mxu0 0.0
        %615 = vmatpush1.msra.mxu0 0.0
        %616 = vmatprep.subr.mxu0 0.0
        %617 = vmatpush1.msra.mxu0 0.0
        %618 = vmatprep.subr.mxu0 0.0
        %619 = vmatpush1.msra.mxu0 0.0
        %620 = vmatprep.subr.mxu0 0.0
        %621 = vmatpush1.msra.mxu0 0.0
        %622 = vmatprep.subr.mxu0 0.0
        %623 = vmatpush1.msra.mxu0 0.0
        %624 = vmatprep.subr.mxu0 0.0
        %625 = vmatpush1.msra.mxu0 0.0
        %626 = vmatprep.subr.mxu0 0.0
        %627 = vmatpush1.msra.mxu0 0.0
        %628 = vmatprep.subr.mxu0 0.0
        %629 = vmatpush1.msra.mxu0 0.0
        %630 = vmatprep.subr.mxu0 0.0
        %631 = vmatpush1.msra.mxu0 0.0
        %632 = vmatprep.subr.mxu0 0.0
        %633 = vmatpush1.msra.mxu0 0.0
        %634 = vmatprep.subr.mxu0 0.0
        %635 = vmatpush1.msra.mxu0 0.0
        %636 = vmatprep.subr.mxu0 0.0
        %637 = vmatpush1.msra.mxu0 0.0
        %638 = vmatprep.subr.mxu0 0.0
        %639 = vmatpush1.msra.mxu0 0.0
        %640 = vmatprep.subr.mxu0 0.0
        %641 = vmatpush1.msra.mxu0 0.0
        %642 = vmatprep.subr.mxu0 0.0
        %643 = vmatpush1.msra.mxu0 0.0
        %644 = vmatprep.subr.mxu0 0.0
        %645 = vmatpush1.msra.mxu0 0.0
        %646 = vmatprep.subr.mxu0 0.0
        %647 = vmatpush1.msra.mxu0 0.0
        %648 = vmatprep.subr.mxu0 0.0
        %649 = vmatpush1.msra.mxu0 0.0
        %650 = vmatprep.subr.mxu0 0.0
        %651 = vmatpush1.msra.mxu0 0.0
        %652 = vmatprep.subr.mxu0 0.0
        %653 = vmatpush1.msra.mxu0 0.0
        %654 = vmatprep.subr.mxu0 0.0
        %655 = vmatpush1.msra.mxu0 0.0
        %656 = vmatprep.subr.mxu0 0.0
        %657 = vmatpush1.msra.mxu0 0.0
        %658 = vmatprep.subr.mxu0 0.0
        %659 = vmatpush1.msra.mxu0 0.0
        %660 = vmatprep.subr.mxu0 0.0
        %661 = vmatpush1.msra.mxu0 0.0
        %662 = vmatprep.subr.mxu0 0.0
        %663 = vmatpush1.msra.mxu0 0.0
        %664 = vmatprep.subr.mxu0 0.0
        %665 = vmatpush1.msra.mxu0 0.0
        %666 = vmatprep.subr.mxu0 0.0
        %667 = vmatpush1.msra.mxu0 0.0
        %668 = vmatprep.subr.mxu0 0.0
        %669 = vmatpush1.msra.mxu0 0.0
        %670 = vmatprep.mubr.f32.mxu0 0.0
        %v671 = vand.u32 %v442, 4294901760
        %v672 = vsub.f32 %v442, %v671
        %673 = vmatmul.mubr.f32.gmra.mrb[0].mxu0 %v672
        %v674 = vpop.f32.mrb[0].mxu0
        %v675 = vadd.f32 %v599, %v674
        %v676 = vpop.f32.mrb[0].mxu0
        %677 = vdwg.mxu0
        %678 = vmatprep.subr.mxu0 0.0
        %v679 = vand.u32 %v438, 4294901760
        %680 = vmatpush1.msra.mxu0 %v679
        %681 = vmatprep.subr.mxu0 0.0
        %v682 = vand.u32 %v439, 4294901760
        %683 = vmatpush1.msra.mxu0 %v682
        %684 = vmatprep.subr.mxu0 0.0
        %685 = vmatpush1.msra.mxu0 0.0
        %686 = vmatprep.subr.mxu0 0.0
        %687 = vmatpush1.msra.mxu0 0.0
        %688 = vmatprep.subr.mxu0 0.0
        %689 = vmatpush1.msra.mxu0 0.0
        %690 = vmatprep.subr.mxu0 0.0
        %691 = vmatpush1.msra.mxu0 0.0
        %692 = vmatprep.subr.mxu0 0.0
        %693 = vmatpush1.msra.mxu0 0.0
        %694 = vmatprep.subr.mxu0 0.0
        %695 = vmatpush1.msra.mxu0 0.0
        %696 = vmatprep.subr.mxu0 0.0
        %697 = vmatpush1.msra.mxu0 0.0
        %698 = vmatprep.subr.mxu0 0.0
        %699 = vmatpush1.msra.mxu0 0.0
        %700 = vmatprep.subr.mxu0 0.0
        %701 = vmatpush1.msra.mxu0 0.0
        %702 = vmatprep.subr.mxu0 0.0
        %703 = vmatpush1.msra.mxu0 0.0
        %704 = vmatprep.subr.mxu0 0.0
        %705 = vmatpush1.msra.mxu0 0.0
        %706 = vmatprep.subr.mxu0 0.0
        %707 = vmatpush1.msra.mxu0 0.0
        %708 = vmatprep.subr.mxu0 0.0
        %709 = vmatpush1.msra.mxu0 0.0
        %710 = vmatprep.subr.mxu0 0.0
        %711 = vmatpush1.msra.mxu0 0.0
        %712 = vmatprep.subr.mxu0 0.0
        %713 = vmatpush1.msra.mxu0 0.0
        %714 = vmatprep.subr.mxu0 0.0
        %715 = vmatpush1.msra.mxu0 0.0
        %716 = vmatprep.subr.mxu0 0.0
        %717 = vmatpush1.msra.mxu0 0.0
        %718 = vmatprep.subr.mxu0 0.0
        %719 = vmatpush1.msra.mxu0 0.0
        %720 = vmatprep.subr.mxu0 0.0
        %721 = vmatpush1.msra.mxu0 0.0
        %722 = vmatprep.subr.mxu0 0.0
        %723 = vmatpush1.msra.mxu0 0.0
        %724 = vmatprep.subr.mxu0 0.0
        %725 = vmatpush1.msra.mxu0 0.0
        %726 = vmatprep.subr.mxu0 0.0
        %727 = vmatpush1.msra.mxu0 0.0
        %728 = vmatprep.subr.mxu0 0.0
        %729 = vmatpush1.msra.mxu0 0.0
        %730 = vmatprep.subr.mxu0 0.0
        %731 = vmatpush1.msra.mxu0 0.0
        %732 = vmatprep.subr.mxu0 0.0
        %733 = vmatpush1.msra.mxu0 0.0
        %734 = vmatprep.subr.mxu0 0.0
        %735 = vmatpush1.msra.mxu0 0.0
        %736 = vmatprep.subr.mxu0 0.0
        %737 = vmatpush1.msra.mxu0 0.0
        %738 = vmatprep.subr.mxu0 0.0
        %739 = vmatpush1.msra.mxu0 0.0
        %740 = vmatprep.subr.mxu0 0.0
        %741 = vmatpush1.msra.mxu0 0.0
        %742 = vmatprep.subr.mxu0 0.0
        %743 = vmatpush1.msra.mxu0 0.0
        %744 = vmatprep.mubr.f32.mxu0 0.0
        %v745 = vand.u32 %v442, 4294901760
        %v746 = vsub.f32 %v442, %v745
        %v747 = vand.u32 %v746, 4294901760
        %748 = vmatmul.mubr.f32.gmra.mrb[0].mxu0 %v747
        %v749 = vpop.f32.mrb[0].mxu0
        %v750 = vadd.f32 %v675, %v749
        %v751 = vpop.f32.mrb[0].mxu0
        %752 = vdwg.mxu0
        %753 = vmatprep.subr.mxu0 0.0
        %v754 = vand.u32 %v438, 4294901760
        %v755 = vsub.f32 %v438, %v754
        %v756 = vand.u32 %v755, 4294901760
        %757 = vmatpush1.msra.mxu0 %v756
        %758 = vmatprep.subr.mxu0 0.0
        %v759 = vand.u32 %v439, 4294901760
        %v760 = vsub.f32 %v439, %v759
        %v761 = vand.u32 %v760, 4294901760
        %762 = vmatpush1.msra.mxu0 %v761
        %763 = vmatprep.subr.mxu0 0.0
        %764 = vmatpush1.msra.mxu0 0.0
        %765 = vmatprep.subr.mxu0 0.0
        %766 = vmatpush1.msra.mxu0 0.0
        %767 = vmatprep.subr.mxu0 0.0
        %768 = vmatpush1.msra.mxu0 0.0
        %769 = vmatprep.subr.mxu0 0.0
        %770 = vmatpush1.msra.mxu0 0.0
        %771 = vmatprep.subr.mxu0 0.0
        %772 = vmatpush1.msra.mxu0 0.0
        %773 = vmatprep.subr.mxu0 0.0
        %774 = vmatpush1.msra.mxu0 0.0
        %775 = vmatprep.subr.mxu0 0.0
        %776 = vmatpush1.msra.mxu0 0.0
        %777 = vmatprep.subr.mxu0 0.0
        %778 = vmatpush1.msra.mxu0 0.0
        %779 = vmatprep.subr.mxu0 0.0
        %780 = vmatpush1.msra.mxu0 0.0
        %781 = vmatprep.subr.mxu0 0.0
        %782 = vmatpush1.msra.mxu0 0.0
        %783 = vmatprep.subr.mxu0 0.0
        %784 = vmatpush1.msra.mxu0 0.0
        %785 = vmatprep.subr.mxu0 0.0
        %786 = vmatpush1.msra.mxu0 0.0
        %787 = vmatprep.subr.mxu0 0.0
        %788 = vmatpush1.msra.mxu0 0.0
        %789 = vmatprep.subr.mxu0 0.0
        %790 = vmatpush1.msra.mxu0 0.0
        %791 = vmatprep.subr.mxu0 0.0
        %792 = vmatpush1.msra.mxu0 0.0
        %793 = vmatprep.subr.mxu0 0.0
        %794 = vmatpush1.msra.mxu0 0.0
        %795 = vmatprep.subr.mxu0 0.0
        %796 = vmatpush1.msra.mxu0 0.0
        %797 = vmatprep.subr.mxu0 0.0
        %798 = vmatpush1.msra.mxu0 0.0
        %799 = vmatprep.subr.mxu0 0.0
        %800 = vmatpush1.msra.mxu0 0.0
        %801 = vmatprep.subr.mxu0 0.0
        %802 = vmatpush1.msra.mxu0 0.0
        %803 = vmatprep.subr.mxu0 0.0
        %804 = vmatpush1.msra.mxu0 0.0
        %805 = vmatprep.subr.mxu0 0.0
        %806 = vmatpush1.msra.mxu0 0.0
        %807 = vmatprep.subr.mxu0 0.0
        %808 = vmatpush1.msra.mxu0 0.0
        %809 = vmatprep.subr.mxu0 0.0
        %810 = vmatpush1.msra.mxu0 0.0
        %811 = vmatprep.subr.mxu0 0.0
        %812 = vmatpush1.msra.mxu0 0.0
        %813 = vmatprep.subr.mxu0 0.0
        %814 = vmatpush1.msra.mxu0 0.0
        %815 = vmatprep.subr.mxu0 0.0
        %816 = vmatpush1.msra.mxu0 0.0
        %817 = vmatprep.subr.mxu0 0.0
        %818 = vmatpush1.msra.mxu0 0.0
        %819 = vmatprep.subr.mxu0 0.0
        %820 = vmatpush1.msra.mxu0 0.0
        %821 = vmatprep.subr.mxu0 0.0
        %822 = vmatpush1.msra.mxu0 0.0
        %823 = vmatprep.mubr.f32.mxu0 0.0
        %v824 = vand.u32 %v442, 4294901760
        %825 = vmatmul.mubr.f32.gmra.mrb[0].mxu0 %v824
        %v826 = vpop.f32.mrb[0].mxu0
        %v827 = vadd.f32 %v750, %v826
        %v828 = vpop.f32.mrb[0].mxu0
        %829 = vdwg.mxu0
        %830 = vmatprep.subr.mxu0 0.0
        %v831 = vand.u32 %v438, 4294901760
        %832 = vmatpush1.msra.mxu0 %v831
        %833 = vmatprep.subr.mxu0 0.0
        %v834 = vand.u32 %v439, 4294901760
        %835 = vmatpush1.msra.mxu0 %v834
        %836 = vmatprep.subr.mxu0 0.0
        %837 = vmatpush1.msra.mxu0 0.0
        %838 = vmatprep.subr.mxu0 0.0
        %839 = vmatpush1.msra.mxu0 0.0
        %840 = vmatprep.subr.mxu0 0.0
        %841 = vmatpush1.msra.mxu0 0.0
        %842 = vmatprep.subr.mxu0 0.0
        %843 = vmatpush1.msra.mxu0 0.0
        %844 = vmatprep.subr.mxu0 0.0
        %845 = vmatpush1.msra.mxu0 0.0
        %846 = vmatprep.subr.mxu0 0.0
        %847 = vmatpush1.msra.mxu0 0.0
        %848 = vmatprep.subr.mxu0 0.0
        %849 = vmatpush1.msra.mxu0 0.0
        %850 = vmatprep.subr.mxu0 0.0
        %851 = vmatpush1.msra.mxu0 0.0
        %852 = vmatprep.subr.mxu0 0.0
        %853 = vmatpush1.msra.mxu0 0.0
        %854 = vmatprep.subr.mxu0 0.0
        %855 = vmatpush1.msra.mxu0 0.0
        %856 = vmatprep.subr.mxu0 0.0
        %857 = vmatpush1.msra.mxu0 0.0
        %858 = vmatprep.subr.mxu0 0.0
        %859 = vmatpush1.msra.mxu0 0.0
        %860 = vmatprep.subr.mxu0 0.0
        %861 = vmatpush1.msra.mxu0 0.0
        %862 = vmatprep.subr.mxu0 0.0
        %863 = vmatpush1.msra.mxu0 0.0
        %864 = vmatprep.subr.mxu0 0.0
        %865 = vmatpush1.msra.mxu0 0.0
        %866 = vmatprep.subr.mxu0 0.0
        %867 = vmatpush1.msra.mxu0 0.0
        %868 = vmatprep.subr.mxu0 0.0
        %869 = vmatpush1.msra.mxu0 0.0
        %870 = vmatprep.subr.mxu0 0.0
        %871 = vmatpush1.msra.mxu0 0.0
        %872 = vmatprep.subr.mxu0 0.0
        %873 = vmatpush1.msra.mxu0 0.0
        %874 = vmatprep.subr.mxu0 0.0
        %875 = vmatpush1.msra.mxu0 0.0
        %876 = vmatprep.subr.mxu0 0.0
        %877 = vmatpush1.msra.mxu0 0.0
        %878 = vmatprep.subr.mxu0 0.0
        %879 = vmatpush1.msra.mxu0 0.0
        %880 = vmatprep.subr.mxu0 0.0
        %881 = vmatpush1.msra.mxu0 0.0
        %882 = vmatprep.subr.mxu0 0.0
        %883 = vmatpush1.msra.mxu0 0.0
        %884 = vmatprep.subr.mxu0 0.0
        %885 = vmatpush1.msra.mxu0 0.0
        %886 = vmatprep.subr.mxu0 0.0
        %887 = vmatpush1.msra.mxu0 0.0
        %888 = vmatprep.subr.mxu0 0.0
        %889 = vmatpush1.msra.mxu0 0.0
        %890 = vmatprep.subr.mxu0 0.0
        %891 = vmatpush1.msra.mxu0 0.0
        %892 = vmatprep.subr.mxu0 0.0
        %893 = vmatpush1.msra.mxu0 0.0
        %894 = vmatprep.subr.mxu0 0.0
        %895 = vmatpush1.msra.mxu0 0.0
        %896 = vmatprep.mubr.f32.mxu0 0.0
        %v897 = vand.u32 %v442, 4294901760
        %898 = vmatmul.mubr.f32.gmra.mrb[0].mxu0 %v897
        %v899 = vpop.f32.mrb[0].mxu0
        %v900 = vadd.f32 %v827, %v899
        %v901 = vpop.f32.mrb[0].mxu0
        %902 = vdwg.mxu0
        %v903 = vsel %vm437, 1, 0
        %v904 = vlaneseq
        %v905 = vshrl.u32 %v904, 7
        %v906 = vsub.s32 0, %v905
        %v907 = vrot.slane %v903, %v906
        %vm908 = vcmp.eq.s32.totalorder %v907, 1
        %v909 = vsel %vm908, %v900, 0.0
        %v911 = vcombine.high %v909, %v909
        %v913 = vunpack.c.l.s4 1966171168
        %v914 = vunpack.c.0.s8 %v913
        %v915 = vlaneseq
        %v916 = vshrl.u32 %v915, 7
        %v917 = vsub.s32 %v914, %v916
        %v918 = vrot.slane %v909, %v917
        %v920 = vunpack.c.l.s4 1966171168
        %v921 = vunpack.c.0.s8 %v920
        %v922 = vlaneseq
        %v923 = vshrl.u32 %v922, 7
        %v924 = vsub.s32 %v921, %v923
        %v925 = vrot.slane %v911, %v924
        %v926 = vcombine.high %v918, %v918
        %v927 = vcombine.high %v925, %v925
        %v929 = vunpack.c.l.s4 1966171168
        %v930 = vunpack.c.0.s8 %v929
        %v931 = vlaneseq
        %v932 = vshrl.u32 %v931, 7
        %v933 = vsub.s32 %v930, %v932
        %v934 = vrot.slane %v918, %v933
        %v936 = vunpack.c.l.s4 1966171168
        %v937 = vunpack.c.0.s8 %v936
        %v938 = vlaneseq
        %v939 = vshrl.u32 %v938, 7
        %v940 = vsub.s32 %v937, %v939
        %v941 = vrot.slane %v925, %v940
        %v943 = vunpack.c.l.s4 1966171168
        %v944 = vunpack.c.0.s8 %v943
        %v945 = vlaneseq
        %v946 = vshrl.u32 %v945, 7
        %v947 = vsub.s32 %v944, %v946
        %v948 = vrot.slane %v926, %v947
        %v950 = vunpack.c.l.s4 1966171168
        %v951 = vunpack.c.0.s8 %v950
        %v952 = vlaneseq
        %v953 = vshrl.u32 %v952, 7
        %v954 = vsub.s32 %v951, %v953
        %v955 = vrot.slane %v927, %v954
        %v956 = vcombine.high %v934, %v934
        %v957 = vcombine.high %v941, %v941
        %v958 = vcombine.high %v948, %v948
        %v959 = vcombine.high %v955, %v955
        %968 = vst [vmem:[%s401] sm:$0x1] %v934
        %969 = vst [vmem:[%s401 + $0x4] sm:$0x1] %v948
        %970 = vst [vmem:[%s401 + $0x8] sm:$0x1] %v956
        %971 = vst [vmem:[%s401 + $0xc] sm:$0x1] %v958
        %972 = vst [vmem:[%s401 + $0x10] sm:$0x1] %v941
        %973 = vst [vmem:[%s401 + $0x14] sm:$0x1] %v955
        %974 = vst [vmem:[%s401 + $0x18] sm:$0x1] %v957
        %975 = vst [vmem:[%s401 + $0x1c] sm:$0x1] %v959
        %v976 = vsel %vm908, %v426, 0.0
        %v979 = vunpack.c.l.s4 1966171168
        %v980 = vunpack.c.0.s8 %v979
        %v981 = vlaneseq
        %v982 = vshrl.u32 %v981, 7
        %v983 = vsub.s32 %v980, %v982
        %v984 = vrot.slane %v976, %v983
        %v985 = vcombine.high %v984, %v984
        %v987 = vunpack.c.l.s4 1966171168
        %v988 = vunpack.c.0.s8 %v987
        %v989 = vlaneseq
        %v990 = vshrl.u32 %v989, 7
        %v991 = vsub.s32 %v988, %v990
        %v992 = vrot.slane %v984, %v991
        %v994 = vunpack.c.l.s4 1966171168
        %v995 = vunpack.c.0.s8 %v994
        %v996 = vlaneseq
        %v997 = vshrl.u32 %v996, 7
        %v998 = vsub.s32 %v995, %v997
        %v999 = vrot.slane %v985, %v998
        %v1000 = vcombine.high %v992, %v992
        %v1001 = vcombine.high %v999, %v999
        %s1006 = scalar_lea.vmem %s401, 32 [#allocation8]
        %1007 = vst [vmem:[%s1006] sm:$0x1] %v992
        %1008 = vst [vmem:[%s1006 + $0x4] sm:$0x1] %v999
        %1009 = vst [vmem:[%s1006 + $0x8] sm:$0x1] %v1000
        %1010 = vst [vmem:[%s1006 + $0xc] sm:$0x1] %v1001
        %v1011 = vsel %vm908, %v435, 0.0
        %v1014 = vunpack.c.l.s4 1966171168
        %v1015 = vunpack.c.0.s8 %v1014
        %v1016 = vlaneseq
        %v1017 = vshrl.u32 %v1016, 7
        %v1018 = vsub.s32 %v1015, %v1017
        %v1019 = vrot.slane %v1011, %v1018
        %v1020 = vcombine.high %v1019, %v1019
        %v1022 = vunpack.c.l.s4 1966171168
        %v1023 = vunpack.c.0.s8 %v1022
        %v1024 = vlaneseq
        %v1025 = vshrl.u32 %v1024, 7
        %v1026 = vsub.s32 %v1023, %v1025
        %v1027 = vrot.slane %v1019, %v1026
        %v1029 = vunpack.c.l.s4 1966171168
        %v1030 = vunpack.c.0.s8 %v1029
        %v1031 = vlaneseq
        %v1032 = vshrl.u32 %v1031, 7
        %v1033 = vsub.s32 %v1030, %v1032
        %v1034 = vrot.slane %v1020, %v1033
        %v1035 = vcombine.high %v1027, %v1027
        %v1036 = vcombine.high %v1034, %v1034
        %s1041 = scalar_lea.vmem %s401, 48 [#allocation8]
        %1042 = vst [vmem:[%s1041] sm:$0x1] %v1027
        %1043 = vst [vmem:[%s1041 + $0x4] sm:$0x1] %v1034
        %1044 = vst [vmem:[%s1041 + $0x8] sm:$0x1] %v1035
        %1045 = vst [vmem:[%s1041 + $0xc] sm:$0x1] %v1036
        %1046 = vrot.lane.b32.xlu0 %v431, 1
        %v1047 = vpop.permute.xlu0 %1046
        %1048 = vrot.lane.b32.xlu0 %v433, 1
        %v1049 = vpop.permute.xlu0 %1048
        %1050 = vrot.lane.b32.xlu0 %v435, 1
        %v1051 = vpop.permute.xlu0 %1050
        %s1052 = sadd.s32 %s419, 1
        %v1053 = vstv %s1052
        %vm1054 = vcmp.ge.s32.totalorder %v421, %v1053
        %v1055 = vmul.f32 %v422, %v1047
        %v1056 = vmul.f32 %v423, %v1049
        %1057 = vmatprep.subr.mxu0 0.0
        %v1058 = vand.u32 %v1055, 4294901760
        %1059 = vmatpush1.msra.mxu0 %v1058
        %1060 = vmatprep.subr.mxu0 0.0
        %v1061 = vand.u32 %v1056, 4294901760
        %1062 = vmatpush1.msra.mxu0 %v1061
        %1063 = vmatprep.subr.mxu0 0.0
        %1064 = vmatpush1.msra.mxu0 0.0
        %1065 = vmatprep.subr.mxu0 0.0
        %1066 = vmatpush1.msra.mxu0 0.0
        %1067 = vmatprep.subr.mxu0 0.0
        %1068 = vmatpush1.msra.mxu0 0.0
        %1069 = vmatprep.subr.mxu0 0.0
        %1070 = vmatpush1.msra.mxu0 0.0
        %1071 = vmatprep.subr.mxu0 0.0
        %1072 = vmatpush1.msra.mxu0 0.0
        %1073 = vmatprep.subr.mxu0 0.0
        %1074 = vmatpush1.msra.mxu0 0.0
        %1075 = vmatprep.subr.mxu0 0.0
        %1076 = vmatpush1.msra.mxu0 0.0
        %1077 = vmatprep.subr.mxu0 0.0
        %1078 = vmatpush1.msra.mxu0 0.0
        %1079 = vmatprep.subr.mxu0 0.0
        %1080 = vmatpush1.msra.mxu0 0.0
        %1081 = vmatprep.subr.mxu0 0.0
        %1082 = vmatpush1.msra.mxu0 0.0
        %1083 = vmatprep.subr.mxu0 0.0
        %1084 = vmatpush1.msra.mxu0 0.0
        %1085 = vmatprep.subr.mxu0 0.0
        %1086 = vmatpush1.msra.mxu0 0.0
        %1087 = vmatprep.subr.mxu0 0.0
        %1088 = vmatpush1.msra.mxu0 0.0
        %1089 = vmatprep.subr.mxu0 0.0
        %1090 = vmatpush1.msra.mxu0 0.0
        %1091 = vmatprep.subr.mxu0 0.0
        %1092 = vmatpush1.msra.mxu0 0.0
        %1093 = vmatprep.subr.mxu0 0.0
        %1094 = vmatpush1.msra.mxu0 0.0
        %1095 = vmatprep.subr.mxu0 0.0
        %1096 = vmatpush1.msra.mxu0 0.0
        %1097 = vmatprep.subr.mxu0 0.0
        %1098 = vmatpush1.msra.mxu0 0.0
        %1099 = vmatprep.subr.mxu0 0.0
        %1100 = vmatpush1.msra.mxu0 0.0
        %1101 = vmatprep.subr.mxu0 0.0
        %1102 = vmatpush1.msra.mxu0 0.0
        %1103 = vmatprep.subr.mxu0 0.0
        %1104 = vmatpush1.msra.mxu0 0.0
        %1105 = vmatprep.subr.mxu0 0.0
        %1106 = vmatpush1.msra.mxu0 0.0
        %1107 = vmatprep.subr.mxu0 0.0
        %1108 = vmatpush1.msra.mxu0 0.0
        %1109 = vmatprep.subr.mxu0 0.0
        %1110 = vmatpush1.msra.mxu0 0.0
        %1111 = vmatprep.subr.mxu0 0.0
        %1112 = vmatpush1.msra.mxu0 0.0
        %1113 = vmatprep.subr.mxu0 0.0
        %1114 = vmatpush1.msra.mxu0 0.0
        %1115 = vmatprep.subr.mxu0 0.0
        %1116 = vmatpush1.msra.mxu0 0.0
        %1117 = vmatprep.subr.mxu0 0.0
        %1118 = vmatpush1.msra.mxu0 0.0
        %1119 = vmatprep.subr.mxu0 0.0
        %1120 = vmatpush1.msra.mxu0 0.0
        %1121 = vmatprep.subr.mxu0 0.0
        %1122 = vmatpush1.msra.mxu0 0.0
        %1123 = vmatprep.mubr.f32.mxu0 0.0
        %v1124 = vand.u32 %v442, 4294901760
        %v1125 = vsub.f32 %v442, %v1124
        %v1126 = vand.u32 %v1125, 4294901760
        %v1127 = vsub.f32 %v1125, %v1126
        %v1128 = vand.u32 %v1127, 4294901760
        %1129 = vmatmul.mubr.f32.gmra.mrb[0].mxu0 %v1128
        %v1130 = vpop.f32.mrb[0].mxu0
        %v1131 = vadd.f32 0.0, %v1130
        %v1132 = vpop.f32.mrb[0].mxu0
        %1133 = vdwg.mxu0
        %1134 = vmatprep.subr.mxu0 0.0
        %v1135 = vand.u32 %v1055, 4294901760
        %v1136 = vsub.f32 %v1055, %v1135
        %v1137 = vand.u32 %v1136, 4294901760
        %v1138 = vsub.f32 %v1136, %v1137
        %v1139 = vand.u32 %v1138, 4294901760
        %1140 = vmatpush1.msra.mxu0 %v1139
        %1141 = vmatprep.subr.mxu0 0.0
        %v1142 = vand.u32 %v1056, 4294901760
        %v1143 = vsub.f32 %v1056, %v1142
        %v1144 = vand.u32 %v1143, 4294901760
        %v1145 = vsub.f32 %v1143, %v1144
        %v1146 = vand.u32 %v1145, 4294901760
        %1147 = vmatpush1.msra.mxu0 %v1146
        %1148 = vmatprep.subr.mxu0 0.0
        %1149 = vmatpush1.msra.mxu0 0.0
        %1150 = vmatprep.subr.mxu0 0.0
        %1151 = vmatpush1.msra.mxu0 0.0
        %1152 = vmatprep.subr.mxu0 0.0
        %1153 = vmatpush1.msra.mxu0 0.0
        %1154 = vmatprep.subr.mxu0 0.0
        %1155 = vmatpush1.msra.mxu0 0.0
        %1156 = vmatprep.subr.mxu0 0.0
        %1157 = vmatpush1.msra.mxu0 0.0
        %1158 = vmatprep.subr.mxu0 0.0
        %1159 = vmatpush1.msra.mxu0 0.0
        %1160 = vmatprep.subr.mxu0 0.0
        %1161 = vmatpush1.msra.mxu0 0.0
        %1162 = vmatprep.subr.mxu0 0.0
        %1163 = vmatpush1.msra.mxu0 0.0
        %1164 = vmatprep.subr.mxu0 0.0
        %1165 = vmatpush1.msra.mxu0 0.0
        %1166 = vmatprep.subr.mxu0 0.0
        %1167 = vmatpush1.msra.mxu0 0.0
        %1168 = vmatprep.subr.mxu0 0.0
        %1169 = vmatpush1.msra.mxu0 0.0
        %1170 = vmatprep.subr.mxu0 0.0
        %1171 = vmatpush1.msra.mxu0 0.0
        %1172 = vmatprep.subr.mxu0 0.0
        %1173 = vmatpush1.msra.mxu0 0.0
        %1174 = vmatprep.subr.mxu0 0.0
        %1175 = vmatpush1.msra.mxu0 0.0
        %1176 = vmatprep.subr.mxu0 0.0
        %1177 = vmatpush1.msra.mxu0 0.0
        %1178 = vmatprep.subr.mxu0 0.0
        %1179 = vmatpush1.msra.mxu0 0.0
        %1180 = vmatprep.subr.mxu0 0.0
        %1181 = vmatpush1.msra.mxu0 0.0
        %1182 = vmatprep.subr.mxu0 0.0
        %1183 = vmatpush1.msra.mxu0 0.0
        %1184 = vmatprep.subr.mxu0 0.0
        %1185 = vmatpush1.msra.mxu0 0.0
        %1186 = vmatprep.subr.mxu0 0.0
        %1187 = vmatpush1.msra.mxu0 0.0
        %1188 = vmatprep.subr.mxu0 0.0
        %1189 = vmatpush1.msra.mxu0 0.0
        %1190 = vmatprep.subr.mxu0 0.0
        %1191 = vmatpush1.msra.mxu0 0.0
        %1192 = vmatprep.subr.mxu0 0.0
        %1193 = vmatpush1.msra.mxu0 0.0
        %1194 = vmatprep.subr.mxu0 0.0
        %1195 = vmatpush1.msra.mxu0 0.0
        %1196 = vmatprep.subr.mxu0 0.0
        %1197 = vmatpush1.msra.mxu0 0.0
        %1198 = vmatprep.subr.mxu0 0.0
        %1199 = vmatpush1.msra.mxu0 0.0
        %1200 = vmatprep.subr.mxu0 0.0
        %1201 = vmatpush1.msra.mxu0 0.0
        %1202 = vmatprep.subr.mxu0 0.0
        %1203 = vmatpush1.msra.mxu0 0.0
        %1204 = vmatprep.subr.mxu0 0.0
        %1205 = vmatpush1.msra.mxu0 0.0
        %1206 = vmatprep.subr.mxu0 0.0
        %1207 = vmatpush1.msra.mxu0 0.0
        %1208 = vmatprep.mubr.f32.mxu0 0.0
        %v1209 = vand.u32 %v442, 4294901760
        %1210 = vmatmul.mubr.f32.gmra.mrb[0].mxu0 %v1209
        %v1211 = vpop.f32.mrb[0].mxu0
        %v1212 = vadd.f32 %v1131, %v1211
        %v1213 = vpop.f32.mrb[0].mxu0
        %1214 = vdwg.mxu0
        %1215 = vmatprep.subr.mxu0 0.0
        %v1216 = vand.u32 %v1055, 4294901760
        %v1217 = vsub.f32 %v1055, %v1216
        %1218 = vmatpush1.msra.mxu0 %v1217
        %1219 = vmatprep.subr.mxu0 0.0
        %v1220 = vand.u32 %v1056, 4294901760
        %v1221 = vsub.f32 %v1056, %v1220
        %1222 = vmatpush1.msra.mxu0 %v1221
        %1223 = vmatprep.subr.mxu0 0.0
        %1224 = vmatpush1.msra.mxu0 0.0
        %1225 = vmatprep.subr.mxu0 0.0
        %1226 = vmatpush1.msra.mxu0 0.0
        %1227 = vmatprep.subr.mxu0 0.0
        %1228 = vmatpush1.msra.mxu0 0.0
        %1229 = vmatprep.subr.mxu0 0.0
        %1230 = vmatpush1.msra.mxu0 0.0
        %1231 = vmatprep.subr.mxu0 0.0
        %1232 = vmatpush1.msra.mxu0 0.0
        %1233 = vmatprep.subr.mxu0 0.0
        %1234 = vmatpush1.msra.mxu0 0.0
        %1235 = vmatprep.subr.mxu0 0.0
        %1236 = vmatpush1.msra.mxu0 0.0
        %1237 = vmatprep.subr.mxu0 0.0
        %1238 = vmatpush1.msra.mxu0 0.0
        %1239 = vmatprep.subr.mxu0 0.0
        %1240 = vmatpush1.msra.mxu0 0.0
        %1241 = vmatprep.subr.mxu0 0.0
        %1242 = vmatpush1.msra.mxu0 0.0
        %1243 = vmatprep.subr.mxu0 0.0
        %1244 = vmatpush1.msra.mxu0 0.0
        %1245 = vmatprep.subr.mxu0 0.0
        %1246 = vmatpush1.msra.mxu0 0.0
        %1247 = vmatprep.subr.mxu0 0.0
        %1248 = vmatpush1.msra.mxu0 0.0
        %1249 = vmatprep.subr.mxu0 0.0
        %1250 = vmatpush1.msra.mxu0 0.0
        %1251 = vmatprep.subr.mxu0 0.0
        %1252 = vmatpush1.msra.mxu0 0.0
        %1253 = vmatprep.subr.mxu0 0.0
        %1254 = vmatpush1.msra.mxu0 0.0
        %1255 = vmatprep.subr.mxu0 0.0
        %1256 = vmatpush1.msra.mxu0 0.0
        %1257 = vmatprep.subr.mxu0 0.0
        %1258 = vmatpush1.msra.mxu0 0.0
        %1259 = vmatprep.subr.mxu0 0.0
        %1260 = vmatpush1.msra.mxu0 0.0
        %1261 = vmatprep.subr.mxu0 0.0
        %1262 = vmatpush1.msra.mxu0 0.0
        %1263 = vmatprep.subr.mxu0 0.0
        %1264 = vmatpush1.msra.mxu0 0.0
        %1265 = vmatprep.subr.mxu0 0.0
        %1266 = vmatpush1.msra.mxu0 0.0
        %1267 = vmatprep.subr.mxu0 0.0
        %1268 = vmatpush1.msra.mxu0 0.0
        %1269 = vmatprep.subr.mxu0 0.0
        %1270 = vmatpush1.msra.mxu0 0.0
        %1271 = vmatprep.subr.mxu0 0.0
        %1272 = vmatpush1.msra.mxu0 0.0
        %1273 = vmatprep.subr.mxu0 0.0
        %1274 = vmatpush1.msra.mxu0 0.0
        %1275 = vmatprep.subr.mxu0 0.0
        %1276 = vmatpush1.msra.mxu0 0.0
        %1277 = vmatprep.subr.mxu0 0.0
        %1278 = vmatpush1.msra.mxu0 0.0
        %1279 = vmatprep.subr.mxu0 0.0
        %1280 = vmatpush1.msra.mxu0 0.0
        %1281 = vmatprep.subr.mxu0 0.0
        %1282 = vmatpush1.msra.mxu0 0.0
        %1283 = vmatprep.mubr.f32.mxu0 0.0
        %v1284 = vand.u32 %v442, 4294901760
        %v1285 = vsub.f32 %v442, %v1284
        %1286 = vmatmul.mubr.f32.gmra.mrb[0].mxu0 %v1285
        %v1287 = vpop.f32.mrb[0].mxu0
        %v1288 = vadd.f32 %v1212, %v1287
        %v1289 = vpop.f32.mrb[0].mxu0
        %1290 = vdwg.mxu0
        %1291 = vmatprep.subr.mxu0 0.0
        %v1292 = vand.u32 %v1055, 4294901760
        %1293 = vmatpush1.msra.mxu0 %v1292
        %1294 = vmatprep.subr.mxu0 0.0
        %v1295 = vand.u32 %v1056, 4294901760
        %1296 = vmatpush1.msra.mxu0 %v1295
        %1297 = vmatprep.subr.mxu0 0.0
        %1298 = vmatpush1.msra.mxu0 0.0
        %1299 = vmatprep.subr.mxu0 0.0
        %1300 = vmatpush1.msra.mxu0 0.0
        %1301 = vmatprep.subr.mxu0 0.0
        %1302 = vmatpush1.msra.mxu0 0.0
        %1303 = vmatprep.subr.mxu0 0.0
        %1304 = vmatpush1.msra.mxu0 0.0
        %1305 = vmatprep.subr.mxu0 0.0
        %1306 = vmatpush1.msra.mxu0 0.0
        %1307 = vmatprep.subr.mxu0 0.0
        %1308 = vmatpush1.msra.mxu0 0.0
        %1309 = vmatprep.subr.mxu0 0.0
        %1310 = vmatpush1.msra.mxu0 0.0
        %1311 = vmatprep.subr.mxu0 0.0
        %1312 = vmatpush1.msra.mxu0 0.0
        %1313 = vmatprep.subr.mxu0 0.0
        %1314 = vmatpush1.msra.mxu0 0.0
        %1315 = vmatprep.subr.mxu0 0.0
        %1316 = vmatpush1.msra.mxu0 0.0
        %1317 = vmatprep.subr.mxu0 0.0
        %1318 = vmatpush1.msra.mxu0 0.0
        %1319 = vmatprep.subr.mxu0 0.0
        %1320 = vmatpush1.msra.mxu0 0.0
        %1321 = vmatprep.subr.mxu0 0.0
        %1322 = vmatpush1.msra.mxu0 0.0
        %1323 = vmatprep.subr.mxu0 0.0
        %1324 = vmatpush1.msra.mxu0 0.0
        %1325 = vmatprep.subr.mxu0 0.0
        %1326 = vmatpush1.msra.mxu0 0.0
        %1327 = vmatprep.subr.mxu0 0.0
        %1328 = vmatpush1.msra.mxu0 0.0
        %1329 = vmatprep.subr.mxu0 0.0
        %1330 = vmatpush1.msra.mxu0 0.0
        %1331 = vmatprep.subr.mxu0 0.0
        %1332 = vmatpush1.msra.mxu0 0.0
        %1333 = vmatprep.subr.mxu0 0.0
        %1334 = vmatpush1.msra.mxu0 0.0
        %1335 = vmatprep.subr.mxu0 0.0
        %1336 = vmatpush1.msra.mxu0 0.0
        %1337 = vmatprep.subr.mxu0 0.0
        %1338 = vmatpush1.msra.mxu0 0.0
        %1339 = vmatprep.subr.mxu0 0.0
        %1340 = vmatpush1.msra.mxu0 0.0
        %1341 = vmatprep.subr.mxu0 0.0
        %1342 = vmatpush1.msra.mxu0 0.0
        %1343 = vmatprep.subr.mxu0 0.0
        %1344 = vmatpush1.msra.mxu0 0.0
        %1345 = vmatprep.subr.mxu0 0.0
        %1346 = vmatpush1.msra.mxu0 0.0
        %1347 = vmatprep.subr.mxu0 0.0
        %1348 = vmatpush1.msra.mxu0 0.0
        %1349 = vmatprep.subr.mxu0 0.0
        %1350 = vmatpush1.msra.mxu0 0.0
        %1351 = vmatprep.subr.mxu0 0.0
        %1352 = vmatpush1.msra.mxu0 0.0
        %1353 = vmatprep.subr.mxu0 0.0
        %1354 = vmatpush1.msra.mxu0 0.0
        %1355 = vmatprep.subr.mxu0 0.0
        %1356 = vmatpush1.msra.mxu0 0.0
        %1357 = vmatprep.mubr.f32.mxu0 0.0
        %v1358 = vand.u32 %v442, 4294901760
        %v1359 = vsub.f32 %v442, %v1358
        %v1360 = vand.u32 %v1359, 4294901760
        %1361 = vmatmul.mubr.f32.gmra.mrb[0].mxu0 %v1360
        %v1362 = vpop.f32.mrb[0].mxu0
        %v1363 = vadd.f32 %v1288, %v1362
        %v1364 = vpop.f32.mrb[0].mxu0
        %1365 = vdwg.mxu0
        %1366 = vmatprep.subr.mxu0 0.0
        %v1367 = vand.u32 %v1055, 4294901760
        %v1368 = vsub.f32 %v1055, %v1367
        %v1369 = vand.u32 %v1368, 4294901760
        %1370 = vmatpush1.msra.mxu0 %v1369
        %1371 = vmatprep.subr.mxu0 0.0
        %v1372 = vand.u32 %v1056, 4294901760
        %v1373 = vsub.f32 %v1056, %v1372
        %v1374 = vand.u32 %v1373, 4294901760
        %1375 = vmatpush1.msra.mxu0 %v1374
        %1376 = vmatprep.subr.mxu0 0.0
        %1377 = vmatpush1.msra.mxu0 0.0
        %1378 = vmatprep.subr.mxu0 0.0
        %1379 = vmatpush1.msra.mxu0 0.0
        %1380 = vmatprep.subr.mxu0 0.0
        %1381 = vmatpush1.msra.mxu0 0.0
        %1382 = vmatprep.subr.mxu0 0.0
        %1383 = vmatpush1.msra.mxu0 0.0
        %1384 = vmatprep.subr.mxu0 0.0
        %1385 = vmatpush1.msra.mxu0 0.0
        %1386 = vmatprep.subr.mxu0 0.0
        %1387 = vmatpush1.msra.mxu0 0.0
        %1388 = vmatprep.subr.mxu0 0.0
        %1389 = vmatpush1.msra.mxu0 0.0
        %1390 = vmatprep.subr.mxu0 0.0
        %1391 = vmatpush1.msra.mxu0 0.0
        %1392 = vmatprep.subr.mxu0 0.0
        %1393 = vmatpush1.msra.mxu0 0.0
        %1394 = vmatprep.subr.mxu0 0.0
        %1395 = vmatpush1.msra.mxu0 0.0
        %1396 = vmatprep.subr.mxu0 0.0
        %1397 = vmatpush1.msra.mxu0 0.0
        %1398 = vmatprep.subr.mxu0 0.0
        %1399 = vmatpush1.msra.mxu0 0.0
        %1400 = vmatprep.subr.mxu0 0.0
        %1401 = vmatpush1.msra.mxu0 0.0
        %1402 = vmatprep.subr.mxu0 0.0
        %1403 = vmatpush1.msra.mxu0 0.0
        %1404 = vmatprep.subr.mxu0 0.0
        %1405 = vmatpush1.msra.mxu0 0.0
        %1406 = vmatprep.subr.mxu0 0.0
        %1407 = vmatpush1.msra.mxu0 0.0
        %1408 = vmatprep.subr.mxu0 0.0
        %1409 = vmatpush1.msra.mxu0 0.0
        %1410 = vmatprep.subr.mxu0 0.0
        %1411 = vmatpush1.msra.mxu0 0.0
        %1412 = vmatprep.subr.mxu0 0.0
        %1413 = vmatpush1.msra.mxu0 0.0
        %1414 = vmatprep.subr.mxu0 0.0
        %1415 = vmatpush1.msra.mxu0 0.0
        %1416 = vmatprep.subr.mxu0 0.0
        %1417 = vmatpush1.msra.mxu0 0.0
        %1418 = vmatprep.subr.mxu0 0.0
        %1419 = vmatpush1.msra.mxu0 0.0
        %1420 = vmatprep.subr.mxu0 0.0
        %1421 = vmatpush1.msra.mxu0 0.0
        %1422 = vmatprep.subr.mxu0 0.0
        %1423 = vmatpush1.msra.mxu0 0.0
        %1424 = vmatprep.subr.mxu0 0.0
        %1425 = vmatpush1.msra.mxu0 0.0
        %1426 = vmatprep.subr.mxu0 0.0
        %1427 = vmatpush1.msra.mxu0 0.0
        %1428 = vmatprep.subr.mxu0 0.0
        %1429 = vmatpush1.msra.mxu0 0.0
        %1430 = vmatprep.subr.mxu0 0.0
        %1431 = vmatpush1.msra.mxu0 0.0
        %1432 = vmatprep.subr.mxu0 0.0
        %1433 = vmatpush1.msra.mxu0 0.0
        %1434 = vmatprep.subr.mxu0 0.0
        %1435 = vmatpush1.msra.mxu0 0.0
        %1436 = vmatprep.mubr.f32.mxu0 0.0
        %v1437 = vand.u32 %v442, 4294901760
        %1438 = vmatmul.mubr.f32.gmra.mrb[0].mxu0 %v1437
        %v1439 = vpop.f32.mrb[0].mxu0
        %v1440 = vadd.f32 %v1363, %v1439
        %v1441 = vpop.f32.mrb[0].mxu0
        %1442 = vdwg.mxu0
        %1443 = vmatprep.subr.mxu0 0.0
        %v1444 = vand.u32 %v1055, 4294901760
        %1445 = vmatpush1.msra.mxu0 %v1444
        %1446 = vmatprep.subr.mxu0 0.0
        %v1447 = vand.u32 %v1056, 4294901760
        %1448 = vmatpush1.msra.mxu0 %v1447
        %1449 = vmatprep.subr.mxu0 0.0
        %1450 = vmatpush1.msra.mxu0 0.0
        %1451 = vmatprep.subr.mxu0 0.0
        %1452 = vmatpush1.msra.mxu0 0.0
        %1453 = vmatprep.subr.mxu0 0.0
        %1454 = vmatpush1.msra.mxu0 0.0
        %1455 = vmatprep.subr.mxu0 0.0
        %1456 = vmatpush1.msra.mxu0 0.0
        %1457 = vmatprep.subr.mxu0 0.0
        %1458 = vmatpush1.msra.mxu0 0.0
        %1459 = vmatprep.subr.mxu0 0.0
        %1460 = vmatpush1.msra.mxu0 0.0
        %1461 = vmatprep.subr.mxu0 0.0
        %1462 = vmatpush1.msra.mxu0 0.0
        %1463 = vmatprep.subr.mxu0 0.0
        %1464 = vmatpush1.msra.mxu0 0.0
        %1465 = vmatprep.subr.mxu0 0.0
        %1466 = vmatpush1.msra.mxu0 0.0
        %1467 = vmatprep.subr.mxu0 0.0
        %1468 = vmatpush1.msra.mxu0 0.0
        %1469 = vmatprep.subr.mxu0 0.0
        %1470 = vmatpush1.msra.mxu0 0.0
        %1471 = vmatprep.subr.mxu0 0.0
        %1472 = vmatpush1.msra.mxu0 0.0
        %1473 = vmatprep.subr.mxu0 0.0
        %1474 = vmatpush1.msra.mxu0 0.0
        %1475 = vmatprep.subr.mxu0 0.0
        %1476 = vmatpush1.msra.mxu0 0.0
        %1477 = vmatprep.subr.mxu0 0.0
        %1478 = vmatpush1.msra.mxu0 0.0
        %1479 = vmatprep.subr.mxu0 0.0
        %1480 = vmatpush1.msra.mxu0 0.0
        %1481 = vmatprep.subr.mxu0 0.0
        %1482 = vmatpush1.msra.mxu0 0.0
        %1483 = vmatprep.subr.mxu0 0.0
        %1484 = vmatpush1.msra.mxu0 0.0
        %1485 = vmatprep.subr.mxu0 0.0
        %1486 = vmatpush1.msra.mxu0 0.0
        %1487 = vmatprep.subr.mxu0 0.0
        %1488 = vmatpush1.msra.mxu0 0.0
        %1489 = vmatprep.subr.mxu0 0.0
        %1490 = vmatpush1.msra.mxu0 0.0
        %1491 = vmatprep.subr.mxu0 0.0
        %1492 = vmatpush1.msra.mxu0 0.0
        %1493 = vmatprep.subr.mxu0 0.0
        %1494 = vmatpush1.msra.mxu0 0.0
        %1495 = vmatprep.subr.mxu0 0.0
        %1496 = vmatpush1.msra.mxu0 0.0
        %1497 = vmatprep.subr.mxu0 0.0
        %1498 = vmatpush1.msra.mxu0 0.0
        %1499 = vmatprep.subr.mxu0 0.0
        %1500 = vmatpush1.msra.mxu0 0.0
        %1501 = vmatprep.subr.mxu0 0.0
        %1502 = vmatpush1.msra.mxu0 0.0
        %1503 = vmatprep.subr.mxu0 0.0
        %1504 = vmatpush1.msra.mxu0 0.0
        %1505 = vmatprep.subr.mxu0 0.0
        %1506 = vmatpush1.msra.mxu0 0.0
        %1507 = vmatprep.subr.mxu0 0.0
        %1508 = vmatpush1.msra.mxu0 0.0
        %1509 = vmatprep.mubr.f32.mxu0 0.0
        %v1510 = vand.u32 %v442, 4294901760
        %1511 = vmatmul.mubr.f32.gmra.mrb[0].mxu0 %v1510
        %v1512 = vpop.f32.mrb[0].mxu0
        %v1513 = vadd.f32 %v1440, %v1512
        %v1514 = vpop.f32.mrb[0].mxu0
        %1515 = vdwg.mxu0
        %v1516 = vsel %vm1054, 1, 0
        %v1517 = vlaneseq
        %v1518 = vshrl.u32 %v1517, 7
        %v1519 = vsub.s32 0, %v1518
        %v1520 = vrot.slane %v1516, %v1519
        %vm1521 = vcmp.eq.s32.totalorder %v1520, 1
        %v1522 = vsel %vm1521, %v1513, 0.0
        %v1524 = vcombine.high %v1522, %v1522
        %v1526 = vunpack.c.l.s4 1966171168
        %v1527 = vunpack.c.0.s8 %v1526
        %v1528 = vlaneseq
        %v1529 = vshrl.u32 %v1528, 7
        %v1530 = vsub.s32 %v1527, %v1529
        %v1531 = vrot.slane %v1522, %v1530
        %v1533 = vunpack.c.l.s4 1966171168
        %v1534 = vunpack.c.0.s8 %v1533
        %v1535 = vlaneseq
        %v1536 = vshrl.u32 %v1535, 7
        %v1537 = vsub.s32 %v1534, %v1536
        %v1538 = vrot.slane %v1524, %v1537
        %v1539 = vcombine.high %v1531, %v1531
        %v1540 = vcombine.high %v1538, %v1538
        %v1542 = vunpack.c.l.s4 1966171168
        %v1543 = vunpack.c.0.s8 %v1542
        %v1544 = vlaneseq
        %v1545 = vshrl.u32 %v1544, 7
        %v1546 = vsub.s32 %v1543, %v1545
        %v1547 = vrot.slane %v1531, %v1546
        %v1549 = vunpack.c.l.s4 1966171168
        %v1550 = vunpack.c.0.s8 %v1549
        %v1551 = vlaneseq
        %v1552 = vshrl.u32 %v1551, 7
        %v1553 = vsub.s32 %v1550, %v1552
        %v1554 = vrot.slane %v1538, %v1553
        %v1556 = vunpack.c.l.s4 1966171168
        %v1557 = vunpack.c.0.s8 %v1556
        %v1558 = vlaneseq
        %v1559 = vshrl.u32 %v1558, 7
        %v1560 = vsub.s32 %v1557, %v1559
        %v1561 = vrot.slane %v1539, %v1560
        %v1563 = vunpack.c.l.s4 1966171168
        %v1564 = vunpack.c.0.s8 %v1563
        %v1565 = vlaneseq
        %v1566 = vshrl.u32 %v1565, 7
        %v1567 = vsub.s32 %v1564, %v1566
        %v1568 = vrot.slane %v1540, %v1567
        %v1569 = vcombine.high %v1547, %v1547
        %v1570 = vcombine.high %v1554, %v1554
        %v1571 = vcombine.high %v1561, %v1561
        %v1572 = vcombine.high %v1568, %v1568
        %1581 = vst [vmem:[%s401 + $0x1] sm:$0x1] %v1547
        %1582 = vst [vmem:[%s401 + $0x5] sm:$0x1] %v1561
        %1583 = vst [vmem:[%s401 + $0x9] sm:$0x1] %v1569
        %1584 = vst [vmem:[%s401 + $0xd] sm:$0x1] %v1571
        %1585 = vst [vmem:[%s401 + $0x11] sm:$0x1] %v1554
        %1586 = vst [vmem:[%s401 + $0x15] sm:$0x1] %v1568
        %1587 = vst [vmem:[%s401 + $0x19] sm:$0x1] %v1570
        %1588 = vst [vmem:[%s401 + $0x1d] sm:$0x1] %v1572
        %v1589 = vsel %vm1521, %v426, 0.0
        %v1592 = vunpack.c.l.s4 1966171168
        %v1593 = vunpack.c.0.s8 %v1592
        %v1594 = vlaneseq
        %v1595 = vshrl.u32 %v1594, 7
        %v1596 = vsub.s32 %v1593, %v1595
        %v1597 = vrot.slane %v1589, %v1596
        %v1598 = vcombine.high %v1597, %v1597
        %v1600 = vunpack.c.l.s4 1966171168
        %v1601 = vunpack.c.0.s8 %v1600
        %v1602 = vlaneseq
        %v1603 = vshrl.u32 %v1602, 7
        %v1604 = vsub.s32 %v1601, %v1603
        %v1605 = vrot.slane %v1597, %v1604
        %v1607 = vunpack.c.l.s4 1966171168
        %v1608 = vunpack.c.0.s8 %v1607
        %v1609 = vlaneseq
        %v1610 = vshrl.u32 %v1609, 7
        %v1611 = vsub.s32 %v1608, %v1610
        %v1612 = vrot.slane %v1598, %v1611
        %v1613 = vcombine.high %v1605, %v1605
        %v1614 = vcombine.high %v1612, %v1612
        %1619 = vst [vmem:[%s1006 + $0x1] sm:$0x1] %v1605
        %1620 = vst [vmem:[%s1006 + $0x5] sm:$0x1] %v1612
        %1621 = vst [vmem:[%s1006 + $0x9] sm:$0x1] %v1613
        %1622 = vst [vmem:[%s1006 + $0xd] sm:$0x1] %v1614
        %v1623 = vsel %vm1521, %v1051, 0.0
        %v1626 = vunpack.c.l.s4 1966171168
        %v1627 = vunpack.c.0.s8 %v1626
        %v1628 = vlaneseq
        %v1629 = vshrl.u32 %v1628, 7
        %v1630 = vsub.s32 %v1627, %v1629
        %v1631 = vrot.slane %v1623, %v1630
        %v1632 = vcombine.high %v1631, %v1631
        %v1634 = vunpack.c.l.s4 1966171168
        %v1635 = vunpack.c.0.s8 %v1634
        %v1636 = vlaneseq
        %v1637 = vshrl.u32 %v1636, 7
        %v1638 = vsub.s32 %v1635, %v1637
        %v1639 = vrot.slane %v1631, %v1638
        %v1641 = vunpack.c.l.s4 1966171168
        %v1642 = vunpack.c.0.s8 %v1641
        %v1643 = vlaneseq
        %v1644 = vshrl.u32 %v1643, 7
        %v1645 = vsub.s32 %v1642, %v1644
        %v1646 = vrot.slane %v1632, %v1645
        %v1647 = vcombine.high %v1639, %v1639
        %v1648 = vcombine.high %v1646, %v1646
        %1653 = vst [vmem:[%s1041 + $0x1] sm:$0x1] %v1639
        %1654 = vst [vmem:[%s1041 + $0x5] sm:$0x1] %v1646
        %1655 = vst [vmem:[%s1041 + $0x9] sm:$0x1] %v1647
        %1656 = vst [vmem:[%s1041 + $0xd] sm:$0x1] %v1648
        %1657 = vrot.lane.b32.xlu0 %v1047, 1
        %v1658 = vpop.permute.xlu0 %1657
        %1659 = vrot.lane.b32.xlu0 %v1049, 1
        %v1660 = vpop.permute.xlu0 %1659
        %1661 = vrot.lane.b32.xlu0 %v1051, 1
        %v1662 = vpop.permute.xlu0 %1661
        %s1663 = sadd.s32 %s419, 2
        %v1664 = vstv %s1663
        %vm1665 = vcmp.ge.s32.totalorder %v421, %v1664
        %v1666 = vmul.f32 %v422, %v1658
        %v1667 = vmul.f32 %v423, %v1660
        %1668 = vmatprep.subr.mxu0 0.0
        %v1669 = vand.u32 %v1666, 4294901760
        %1670 = vmatpush1.msra.mxu0 %v1669
        %1671 = vmatprep.subr.mxu0 0.0
        %v1672 = vand.u32 %v1667, 4294901760
        %1673 = vmatpush1.msra.mxu0 %v1672
        %1674 = vmatprep.subr.mxu0 0.0
        %1675 = vmatpush1.msra.mxu0 0.0
        %1676 = vmatprep.subr.mxu0 0.0
        %1677 = vmatpush1.msra.mxu0 0.0
        %1678 = vmatprep.subr.mxu0 0.0
        %1679 = vmatpush1.msra.mxu0 0.0
        %1680 = vmatprep.subr.mxu0 0.0
        %1681 = vmatpush1.msra.mxu0 0.0
        %1682 = vmatprep.subr.mxu0 0.0
        %1683 = vmatpush1.msra.mxu0 0.0
        %1684 = vmatprep.subr.mxu0 0.0
        %1685 = vmatpush1.msra.mxu0 0.0
        %1686 = vmatprep.subr.mxu0 0.0
        %1687 = vmatpush1.msra.mxu0 0.0
        %1688 = vmatprep.subr.mxu0 0.0
        %1689 = vmatpush1.msra.mxu0 0.0
        %1690 = vmatprep.subr.mxu0 0.0
        %1691 = vmatpush1.msra.mxu0 0.0
        %1692 = vmatprep.subr.mxu0 0.0
        %1693 = vmatpush1.msra.mxu0 0.0
        %1694 = vmatprep.subr.mxu0 0.0
        %1695 = vmatpush1.msra.mxu0 0.0
        %1696 = vmatprep.subr.mxu0 0.0
        %1697 = vmatpush1.msra.mxu0 0.0
        %1698 = vmatprep.subr.mxu0 0.0
        %1699 = vmatpush1.msra.mxu0 0.0
        %1700 = vmatprep.subr.mxu0 0.0
        %1701 = vmatpush1.msra.mxu0 0.0
        %1702 = vmatprep.subr.mxu0 0.0
        %1703 = vmatpush1.msra.mxu0 0.0
        %1704 = vmatprep.subr.mxu0 0.0
        %1705 = vmatpush1.msra.mxu0 0.0
        %1706 = vmatprep.subr.mxu0 0.0
        %1707 = vmatpush1.msra.mxu0 0.0
        %1708 = vmatprep.subr.mxu0 0.0
        %1709 = vmatpush1.msra.mxu0 0.0
        %1710 = vmatprep.subr.mxu0 0.0
        %1711 = vmatpush1.msra.mxu0 0.0
        %1712 = vmatprep.subr.mxu0 0.0
        %1713 = vmatpush1.msra.mxu0 0.0
        %1714 = vmatprep.subr.mxu0 0.0
        %1715 = vmatpush1.msra.mxu0 0.0
        %1716 = vmatprep.subr.mxu0 0.0
        %1717 = vmatpush1.msra.mxu0 0.0
        %1718 = vmatprep.subr.mxu0 0.0
        %1719 = vmatpush1.msra.mxu0 0.0
        %1720 = vmatprep.subr.mxu0 0.0
        %1721 = vmatpush1.msra.mxu0 0.0
        %1722 = vmatprep.subr.mxu0 0.0
        %1723 = vmatpush1.msra.mxu0 0.0
        %1724 = vmatprep.subr.mxu0 0.0
        %1725 = vmatpush1.msra.mxu0 0.0
        %1726 = vmatprep.subr.mxu0 0.0
        %1727 = vmatpush1.msra.mxu0 0.0
        %1728 = vmatprep.subr.mxu0 0.0
        %1729 = vmatpush1.msra.mxu0 0.0
        %1730 = vmatprep.subr.mxu0 0.0
        %1731 = vmatpush1.msra.mxu0 0.0
        %1732 = vmatprep.subr.mxu0 0.0
        %1733 = vmatpush1.msra.mxu0 0.0
        %1734 = vmatprep.mubr.f32.mxu0 0.0
        %v1735 = vand.u32 %v442, 4294901760
        %v1736 = vsub.f32 %v442, %v1735
        %v1737 = vand.u32 %v1736, 4294901760
        %v1738 = vsub.f32 %v1736, %v1737
        %v1739 = vand.u32 %v1738, 4294901760
        %1740 = vmatmul.mubr.f32.gmra.mrb[0].mxu0 %v1739
        %v1741 = vpop.f32.mrb[0].mxu0
        %v1742 = vadd.f32 0.0, %v1741
        %v1743 = vpop.f32.mrb[0].mxu0
        %1744 = vdwg.mxu0
        %1745 = vmatprep.subr.mxu0 0.0
        %v1746 = vand.u32 %v1666, 4294901760
        %v1747 = vsub.f32 %v1666, %v1746
        %v1748 = vand.u32 %v1747, 4294901760
        %v1749 = vsub.f32 %v1747, %v1748
        %v1750 = vand.u32 %v1749, 4294901760
        %1751 = vmatpush1.msra.mxu0 %v1750
        %1752 = vmatprep.subr.mxu0 0.0
        %v1753 = vand.u32 %v1667, 4294901760
        %v1754 = vsub.f32 %v1667, %v1753
        %v1755 = vand.u32 %v1754, 4294901760
        %v1756 = vsub.f32 %v1754, %v1755
        %v1757 = vand.u32 %v1756, 4294901760
        %1758 = vmatpush1.msra.mxu0 %v1757
        %1759 = vmatprep.subr.mxu0 0.0
        %1760 = vmatpush1.msra.mxu0 0.0
        %1761 = vmatprep.subr.mxu0 0.0
        %1762 = vmatpush1.msra.mxu0 0.0
        %1763 = vmatprep.subr.mxu0 0.0
        %1764 = vmatpush1.msra.mxu0 0.0
        %1765 = vmatprep.subr.mxu0 0.0
        %1766 = vmatpush1.msra.mxu0 0.0
        %1767 = vmatprep.subr.mxu0 0.0
        %1768 = vmatpush1.msra.mxu0 0.0
        %1769 = vmatprep.subr.mxu0 0.0
        %1770 = vmatpush1.msra.mxu0 0.0
        %1771 = vmatprep.subr.mxu0 0.0
        %1772 = vmatpush1.msra.mxu0 0.0
        %1773 = vmatprep.subr.mxu0 0.0
        %1774 = vmatpush1.msra.mxu0 0.0
        %1775 = vmatprep.subr.mxu0 0.0
        %1776 = vmatpush1.msra.mxu0 0.0
        %1777 = vmatprep.subr.mxu0 0.0
        %1778 = vmatpush1.msra.mxu0 0.0
        %1779 = vmatprep.subr.mxu0 0.0
        %1780 = vmatpush1.msra.mxu0 0.0
        %1781 = vmatprep.subr.mxu0 0.0
        %1782 = vmatpush1.msra.mxu0 0.0
        %1783 = vmatprep.subr.mxu0 0.0
        %1784 = vmatpush1.msra.mxu0 0.0
        %1785 = vmatprep.subr.mxu0 0.0
        %1786 = vmatpush1.msra.mxu0 0.0
        %1787 = vmatprep.subr.mxu0 0.0
        %1788 = vmatpush1.msra.mxu0 0.0
        %1789 = vmatprep.subr.mxu0 0.0
        %1790 = vmatpush1.msra.mxu0 0.0
        %1791 = vmatprep.subr.mxu0 0.0
        %1792 = vmatpush1.msra.mxu0 0.0
        %1793 = vmatprep.subr.mxu0 0.0
        %1794 = vmatpush1.msra.mxu0 0.0
        %1795 = vmatprep.subr.mxu0 0.0
        %1796 = vmatpush1.msra.mxu0 0.0
        %1797 = vmatprep.subr.mxu0 0.0
        %1798 = vmatpush1.msra.mxu0 0.0
        %1799 = vmatprep.subr.mxu0 0.0
        %1800 = vmatpush1.msra.mxu0 0.0
        %1801 = vmatprep.subr.mxu0 0.0
        %1802 = vmatpush1.msra.mxu0 0.0
        %1803 = vmatprep.subr.mxu0 0.0
        %1804 = vmatpush1.msra.mxu0 0.0
        %1805 = vmatprep.subr.mxu0 0.0
        %1806 = vmatpush1.msra.mxu0 0.0
        %1807 = vmatprep.subr.mxu0 0.0
        %1808 = vmatpush1.msra.mxu0 0.0
        %1809 = vmatprep.subr.mxu0 0.0
        %1810 = vmatpush1.msra.mxu0 0.0
        %1811 = vmatprep.subr.mxu0 0.0
        %1812 = vmatpush1.msra.mxu0 0.0
        %1813 = vmatprep.subr.mxu0 0.0
        %1814 = vmatpush1.msra.mxu0 0.0
        %1815 = vmatprep.subr.mxu0 0.0
        %1816 = vmatpush1.msra.mxu0 0.0
        %1817 = vmatprep.subr.mxu0 0.0
        %1818 = vmatpush1.msra.mxu0 0.0
        %1819 = vmatprep.mubr.f32.mxu0 0.0
        %v1820 = vand.u32 %v442, 4294901760
        %1821 = vmatmul.mubr.f32.gmra.mrb[0].mxu0 %v1820
        %v1822 = vpop.f32.mrb[0].mxu0
        %v1823 = vadd.f32 %v1742, %v1822
        %v1824 = vpop.f32.mrb[0].mxu0
        %1825 = vdwg.mxu0
        %1826 = vmatprep.subr.mxu0 0.0
        %v1827 = vand.u32 %v1666, 4294901760
        %v1828 = vsub.f32 %v1666, %v1827
        %1829 = vmatpush1.msra.mxu0 %v1828
        %1830 = vmatprep.subr.mxu0 0.0
        %v1831 = vand.u32 %v1667, 4294901760
        %v1832 = vsub.f32 %v1667, %v1831
        %1833 = vmatpush1.msra.mxu0 %v1832
        %1834 = vmatprep.subr.mxu0 0.0
        %1835 = vmatpush1.msra.mxu0 0.0
        %1836 = vmatprep.subr.mxu0 0.0
        %1837 = vmatpush1.msra.mxu0 0.0
        %1838 = vmatprep.subr.mxu0 0.0
        %1839 = vmatpush1.msra.mxu0 0.0
        %1840 = vmatprep.subr.mxu0 0.0
        %1841 = vmatpush1.msra.mxu0 0.0
        %1842 = vmatprep.subr.mxu0 0.0
        %1843 = vmatpush1.msra.mxu0 0.0
        %1844 = vmatprep.subr.mxu0 0.0
        %1845 = vmatpush1.msra.mxu0 0.0
        %1846 = vmatprep.subr.mxu0 0.0
        %1847 = vmatpush1.msra.mxu0 0.0
        %1848 = vmatprep.subr.mxu0 0.0
        %1849 = vmatpush1.msra.mxu0 0.0
        %1850 = vmatprep.subr.mxu0 0.0
        %1851 = vmatpush1.msra.mxu0 0.0
        %1852 = vmatprep.subr.mxu0 0.0
        %1853 = vmatpush1.msra.mxu0 0.0
        %1854 = vmatprep.subr.mxu0 0.0
        %1855 = vmatpush1.msra.mxu0 0.0
        %1856 = vmatprep.subr.mxu0 0.0
        %1857 = vmatpush1.msra.mxu0 0.0
        %1858 = vmatprep.subr.mxu0 0.0
        %1859 = vmatpush1.msra.mxu0 0.0
        %1860 = vmatprep.subr.mxu0 0.0
        %1861 = vmatpush1.msra.mxu0 0.0
        %1862 = vmatprep.subr.mxu0 0.0
        %1863 = vmatpush1.msra.mxu0 0.0
        %1864 = vmatprep.subr.mxu0 0.0
        %1865 = vmatpush1.msra.mxu0 0.0
        %1866 = vmatprep.subr.mxu0 0.0
        %1867 = vmatpush1.msra.mxu0 0.0
        %1868 = vmatprep.subr.mxu0 0.0
        %1869 = vmatpush1.msra.mxu0 0.0
        %1870 = vmatprep.subr.mxu0 0.0
        %1871 = vmatpush1.msra.mxu0 0.0
        %1872 = vmatprep.subr.mxu0 0.0
        %1873 = vmatpush1.msra.mxu0 0.0
        %1874 = vmatprep.subr.mxu0 0.0
        %1875 = vmatpush1.msra.mxu0 0.0
        %1876 = vmatprep.subr.mxu0 0.0
        %1877 = vmatpush1.msra.mxu0 0.0
        %1878 = vmatprep.subr.mxu0 0.0
        %1879 = vmatpush1.msra.mxu0 0.0
        %1880 = vmatprep.subr.mxu0 0.0
        %1881 = vmatpush1.msra.mxu0 0.0
        %1882 = vmatprep.subr.mxu0 0.0
        %1883 = vmatpush1.msra.mxu0 0.0
        %1884 = vmatprep.subr.mxu0 0.0
        %1885 = vmatpush1.msra.mxu0 0.0
        %1886 = vmatprep.subr.mxu0 0.0
        %1887 = vmatpush1.msra.mxu0 0.0
        %1888 = vmatprep.subr.mxu0 0.0
        %1889 = vmatpush1.msra.mxu0 0.0
        %1890 = vmatprep.subr.mxu0 0.0
        %1891 = vmatpush1.msra.mxu0 0.0
        %1892 = vmatprep.subr.mxu0 0.0
        %1893 = vmatpush1.msra.mxu0 0.0
        %1894 = vmatprep.mubr.f32.mxu0 0.0
        %v1895 = vand.u32 %v442, 4294901760
        %v1896 = vsub.f32 %v442, %v1895
        %1897 = vmatmul.mubr.f32.gmra.mrb[0].mxu0 %v1896
        %v1898 = vpop.f32.mrb[0].mxu0
        %v1899 = vadd.f32 %v1823, %v1898
        %v1900 = vpop.f32.mrb[0].mxu0
        %1901 = vdwg.mxu0
        %1902 = vmatprep.subr.mxu0 0.0
        %v1903 = vand.u32 %v1666, 4294901760
        %1904 = vmatpush1.msra.mxu0 %v1903
        %1905 = vmatprep.subr.mxu0 0.0
        %v1906 = vand.u32 %v1667, 4294901760
        %1907 = vmatpush1.msra.mxu0 %v1906
        %1908 = vmatprep.subr.mxu0 0.0
        %1909 = vmatpush1.msra.mxu0 0.0
        %1910 = vmatprep.subr.mxu0 0.0
        %1911 = vmatpush1.msra.mxu0 0.0
        %1912 = vmatprep.subr.mxu0 0.0
        %1913 = vmatpush1.msra.mxu0 0.0
        %1914 = vmatprep.subr.mxu0 0.0
        %1915 = vmatpush1.msra.mxu0 0.0
        %1916 = vmatprep.subr.mxu0 0.0
        %1917 = vmatpush1.msra.mxu0 0.0
        %1918 = vmatprep.subr.mxu0 0.0
        %1919 = vmatpush1.msra.mxu0 0.0
        %1920 = vmatprep.subr.mxu0 0.0
        %1921 = vmatpush1.msra.mxu0 0.0
        %1922 = vmatprep.subr.mxu0 0.0
        %1923 = vmatpush1.msra.mxu0 0.0
        %1924 = vmatprep.subr.mxu0 0.0
        %1925 = vmatpush1.msra.mxu0 0.0
        %1926 = vmatprep.subr.mxu0 0.0
        %1927 = vmatpush1.msra.mxu0 0.0
        %1928 = vmatprep.subr.mxu0 0.0
        %1929 = vmatpush1.msra.mxu0 0.0
        %1930 = vmatprep.subr.mxu0 0.0
        %1931 = vmatpush1.msra.mxu0 0.0
        %1932 = vmatprep.subr.mxu0 0.0
        %1933 = vmatpush1.msra.mxu0 0.0
        %1934 = vmatprep.subr.mxu0 0.0
        %1935 = vmatpush1.msra.mxu0 0.0
        %1936 = vmatprep.subr.mxu0 0.0
        %1937 = vmatpush1.msra.mxu0 0.0
        %1938 = vmatprep.subr.mxu0 0.0
        %1939 = vmatpush1.msra.mxu0 0.0
        %1940 = vmatprep.subr.mxu0 0.0
        %1941 = vmatpush1.msra.mxu0 0.0
        %1942 = vmatprep.subr.mxu0 0.0
        %1943 = vmatpush1.msra.mxu0 0.0
        %1944 = vmatprep.subr.mxu0 0.0
        %1945 = vmatpush1.msra.mxu0 0.0
        %1946 = vmatprep.subr.mxu0 0.0
        %1947 = vmatpush1.msra.mxu0 0.0
        %1948 = vmatprep.subr.mxu0 0.0
        %1949 = vmatpush1.msra.mxu0 0.0
        %1950 = vmatprep.subr.mxu0 0.0
        %1951 = vmatpush1.msra.mxu0 0.0
        %1952 = vmatprep.subr.mxu0 0.0
        %1953 = vmatpush1.msra.mxu0 0.0
        %1954 = vmatprep.subr.mxu0 0.0
        %1955 = vmatpush1.msra.mxu0 0.0
        %1956 = vmatprep.subr.mxu0 0.0
        %1957 = vmatpush1.msra.mxu0 0.0
        %1958 = vmatprep.subr.mxu0 0.0
        %1959 = vmatpush1.msra.mxu0 0.0
        %1960 = vmatprep.subr.mxu0 0.0
        %1961 = vmatpush1.msra.mxu0 0.0
        %1962 = vmatprep.subr.mxu0 0.0
        %1963 = vmatpush1.msra.mxu0 0.0
        %1964 = vmatprep.subr.mxu0 0.0
        %1965 = vmatpush1.msra.mxu0 0.0
        %1966 = vmatprep.subr.mxu0 0.0
        %1967 = vmatpush1.msra.mxu0 0.0
        %1968 = vmatprep.mubr.f32.mxu0 0.0
        %v1969 = vand.u32 %v442, 4294901760
        %v1970 = vsub.f32 %v442, %v1969
        %v1971 = vand.u32 %v1970, 4294901760
        %1972 = vmatmul.mubr.f32.gmra.mrb[0].mxu0 %v1971
        %v1973 = vpop.f32.mrb[0].mxu0
        %v1974 = vadd.f32 %v1899, %v1973
        %v1975 = vpop.f32.mrb[0].mxu0
        %1976 = vdwg.mxu0
        %1977 = vmatprep.subr.mxu0 0.0
        %v1978 = vand.u32 %v1666, 4294901760
        %v1979 = vsub.f32 %v1666, %v1978
        %v1980 = vand.u32 %v1979, 4294901760
        %1981 = vmatpush1.msra.mxu0 %v1980
        %1982 = vmatprep.subr.mxu0 0.0
        %v1983 = vand.u32 %v1667, 4294901760
        %v1984 = vsub.f32 %v1667, %v1983
        %v1985 = vand.u32 %v1984, 4294901760
        %1986 = vmatpush1.msra.mxu0 %v1985
        %1987 = vmatprep.subr.mxu0 0.0
        %1988 = vmatpush1.msra.mxu0 0.0
        %1989 = vmatprep.subr.mxu0 0.0
        %1990 = vmatpush1.msra.mxu0 0.0
        %1991 = vmatprep.subr.mxu0 0.0
        %1992 = vmatpush1.msra.mxu0 0.0
        %1993 = vmatprep.subr.mxu0 0.0
        %1994 = vmatpush1.msra.mxu0 0.0
        %1995 = vmatprep.subr.mxu0 0.0
        %1996 = vmatpush1.msra.mxu0 0.0
        %1997 = vmatprep.subr.mxu0 0.0
        %1998 = vmatpush1.msra.mxu0 0.0
        %1999 = vmatprep.subr.mxu0 0.0
        %2000 = vmatpush1.msra.mxu0 0.0
        %2001 = vmatprep.subr.mxu0 0.0
        %2002 = vmatpush1.msra.mxu0 0.0
        %2003 = vmatprep.subr.mxu0 0.0
        %2004 = vmatpush1.msra.mxu0 0.0
        %2005 = vmatprep.subr.mxu0 0.0
        %2006 = vmatpush1.msra.mxu0 0.0
        %2007 = vmatprep.subr.mxu0 0.0
        %2008 = vmatpush1.msra.mxu0 0.0
        %2009 = vmatprep.subr.mxu0 0.0
        %2010 = vmatpush1.msra.mxu0 0.0
        %2011 = vmatprep.subr.mxu0 0.0
        %2012 = vmatpush1.msra.mxu0 0.0
        %2013 = vmatprep.subr.mxu0 0.0
        %2014 = vmatpush1.msra.mxu0 0.0
        %2015 = vmatprep.subr.mxu0 0.0
        %2016 = vmatpush1.msra.mxu0 0.0
        %2017 = vmatprep.subr.mxu0 0.0
        %2018 = vmatpush1.msra.mxu0 0.0
        %2019 = vmatprep.subr.mxu0 0.0
        %2020 = vmatpush1.msra.mxu0 0.0
        %2021 = vmatprep.subr.mxu0 0.0
        %2022 = vmatpush1.msra.mxu0 0.0
        %2023 = vmatprep.subr.mxu0 0.0
        %2024 = vmatpush1.msra.mxu0 0.0
        %2025 = vmatprep.subr.mxu0 0.0
        %2026 = vmatpush1.msra.mxu0 0.0
        %2027 = vmatprep.subr.mxu0 0.0
        %2028 = vmatpush1.msra.mxu0 0.0
        %2029 = vmatprep.subr.mxu0 0.0
        %2030 = vmatpush1.msra.mxu0 0.0
        %2031 = vmatprep.subr.mxu0 0.0
        %2032 = vmatpush1.msra.mxu0 0.0
        %2033 = vmatprep.subr.mxu0 0.0
        %2034 = vmatpush1.msra.mxu0 0.0
        %2035 = vmatprep.subr.mxu0 0.0
        %2036 = vmatpush1.msra.mxu0 0.0
        %2037 = vmatprep.subr.mxu0 0.0
        %2038 = vmatpush1.msra.mxu0 0.0
        %2039 = vmatprep.subr.mxu0 0.0
        %2040 = vmatpush1.msra.mxu0 0.0
        %2041 = vmatprep.subr.mxu0 0.0
        %2042 = vmatpush1.msra.mxu0 0.0
        %2043 = vmatprep.subr.mxu0 0.0
        %2044 = vmatpush1.msra.mxu0 0.0
        %2045 = vmatprep.subr.mxu0 0.0
        %2046 = vmatpush1.msra.mxu0 0.0
        %2047 = vmatprep.mubr.f32.mxu0 0.0
        %v2048 = vand.u32 %v442, 4294901760
        %2049 = vmatmul.mubr.f32.gmra.mrb[0].mxu0 %v2048
        %v2050 = vpop.f32.mrb[0].mxu0
        %v2051 = vadd.f32 %v1974, %v2050
        %v2052 = vpop.f32.mrb[0].mxu0
        %2053 = vdwg.mxu0
        %2054 = vmatprep.subr.mxu0 0.0
        %v2055 = vand.u32 %v1666, 4294901760
        %2056 = vmatpush1.msra.mxu0 %v2055
        %2057 = vmatprep.subr.mxu0 0.0
        %v2058 = vand.u32 %v1667, 4294901760
        %2059 = vmatpush1.msra.mxu0 %v2058
        %2060 = vmatprep.subr.mxu0 0.0
        %2061 = vmatpush1.msra.mxu0 0.0
        %2062 = vmatprep.subr.mxu0 0.0
        %2063 = vmatpush1.msra.mxu0 0.0
        %2064 = vmatprep.subr.mxu0 0.0
        %2065 = vmatpush1.msra.mxu0 0.0
        %2066 = vmatprep.subr.mxu0 0.0
        %2067 = vmatpush1.msra.mxu0 0.0
        %2068 = vmatprep.subr.mxu0 0.0
        %2069 = vmatpush1.msra.mxu0 0.0
        %2070 = vmatprep.subr.mxu0 0.0
        %2071 = vmatpush1.msra.mxu0 0.0
        %2072 = vmatprep.subr.mxu0 0.0
        %2073 = vmatpush1.msra.mxu0 0.0
        %2074 = vmatprep.subr.mxu0 0.0
        %2075 = vmatpush1.msra.mxu0 0.0
        %2076 = vmatprep.subr.mxu0 0.0
        %2077 = vmatpush1.msra.mxu0 0.0
        %2078 = vmatprep.subr.mxu0 0.0
        %2079 = vmatpush1.msra.mxu0 0.0
        %2080 = vmatprep.subr.mxu0 0.0
        %2081 = vmatpush1.msra.mxu0 0.0
        %2082 = vmatprep.subr.mxu0 0.0
        %2083 = vmatpush1.msra.mxu0 0.0
        %2084 = vmatprep.subr.mxu0 0.0
        %2085 = vmatpush1.msra.mxu0 0.0
        %2086 = vmatprep.subr.mxu0 0.0
        %2087 = vmatpush1.msra.mxu0 0.0
        %2088 = vmatprep.subr.mxu0 0.0
        %2089 = vmatpush1.msra.mxu0 0.0
        %2090 = vmatprep.subr.mxu0 0.0
        %2091 = vmatpush1.msra.mxu0 0.0
        %2092 = vmatprep.subr.mxu0 0.0
        %2093 = vmatpush1.msra.mxu0 0.0
        %2094 = vmatprep.subr.mxu0 0.0
        %2095 = vmatpush1.msra.mxu0 0.0
        %2096 = vmatprep.subr.mxu0 0.0
        %2097 = vmatpush1.msra.mxu0 0.0
        %2098 = vmatprep.subr.mxu0 0.0
        %2099 = vmatpush1.msra.mxu0 0.0
        %2100 = vmatprep.subr.mxu0 0.0
        %2101 = vmatpush1.msra.mxu0 0.0
        %2102 = vmatprep.subr.mxu0 0.0
        %2103 = vmatpush1.msra.mxu0 0.0
        %2104 = vmatprep.subr.mxu0 0.0
        %2105 = vmatpush1.msra.mxu0 0.0
        %2106 = vmatprep.subr.mxu0 0.0
        %2107 = vmatpush1.msra.mxu0 0.0
        %2108 = vmatprep.subr.mxu0 0.0
        %2109 = vmatpush1.msra.mxu0 0.0
        %2110 = vmatprep.subr.mxu0 0.0
        %2111 = vmatpush1.msra.mxu0 0.0
        %2112 = vmatprep.subr.mxu0 0.0
        %2113 = vmatpush1.msra.mxu0 0.0
        %2114 = vmatprep.subr.mxu0 0.0
        %2115 = vmatpush1.msra.mxu0 0.0
        %2116 = vmatprep.subr.mxu0 0.0
        %2117 = vmatpush1.msra.mxu0 0.0
        %2118 = vmatprep.subr.mxu0 0.0
        %2119 = vmatpush1.msra.mxu0 0.0
        %2120 = vmatprep.mubr.f32.mxu0 0.0
        %v2121 = vand.u32 %v442, 4294901760
        %2122 = vmatmul.mubr.f32.gmra.mrb[0].mxu0 %v2121
        %v2123 = vpop.f32.mrb[0].mxu0
        %v2124 = vadd.f32 %v2051, %v2123
        %v2125 = vpop.f32.mrb[0].mxu0
        %2126 = vdwg.mxu0
        %v2127 = vsel %vm1665, 1, 0
        %v2128 = vlaneseq
        %v2129 = vshrl.u32 %v2128, 7
        %v2130 = vsub.s32 0, %v2129
        %v2131 = vrot.slane %v2127, %v2130
        %vm2132 = vcmp.eq.s32.totalorder %v2131, 1
        %v2133 = vsel %vm2132, %v2124, 0.0
        %v2135 = vcombine.high %v2133, %v2133
        %v2137 = vunpack.c.l.s4 1966171168
        %v2138 = vunpack.c.0.s8 %v2137
        %v2139 = vlaneseq
        %v2140 = vshrl.u32 %v2139, 7
        %v2141 = vsub.s32 %v2138, %v2140
        %v2142 = vrot.slane %v2133, %v2141
        %v2144 = vunpack.c.l.s4 1966171168
        %v2145 = vunpack.c.0.s8 %v2144
        %v2146 = vlaneseq
        %v2147 = vshrl.u32 %v2146, 7
        %v2148 = vsub.s32 %v2145, %v2147
        %v2149 = vrot.slane %v2135, %v2148
        %v2150 = vcombine.high %v2142, %v2142
        %v2151 = vcombine.high %v2149, %v2149
        %v2153 = vunpack.c.l.s4 1966171168
        %v2154 = vunpack.c.0.s8 %v2153
        %v2155 = vlaneseq
        %v2156 = vshrl.u32 %v2155, 7
        %v2157 = vsub.s32 %v2154, %v2156
        %v2158 = vrot.slane %v2142, %v2157
        %v2160 = vunpack.c.l.s4 1966171168
        %v2161 = vunpack.c.0.s8 %v2160
        %v2162 = vlaneseq
        %v2163 = vshrl.u32 %v2162, 7
        %v2164 = vsub.s32 %v2161, %v2163
        %v2165 = vrot.slane %v2149, %v2164
        %v2167 = vunpack.c.l.s4 1966171168
        %v2168 = vunpack.c.0.s8 %v2167
        %v2169 = vlaneseq
        %v2170 = vshrl.u32 %v2169, 7
        %v2171 = vsub.s32 %v2168, %v2170
        %v2172 = vrot.slane %v2150, %v2171
        %v2174 = vunpack.c.l.s4 1966171168
        %v2175 = vunpack.c.0.s8 %v2174
        %v2176 = vlaneseq
        %v2177 = vshrl.u32 %v2176, 7
        %v2178 = vsub.s32 %v2175, %v2177
        %v2179 = vrot.slane %v2151, %v2178
        %v2180 = vcombine.high %v2158, %v2158
        %v2181 = vcombine.high %v2165, %v2165
        %v2182 = vcombine.high %v2172, %v2172
        %v2183 = vcombine.high %v2179, %v2179
        %2192 = vst [vmem:[%s401 + $0x2] sm:$0x1] %v2158
        %2193 = vst [vmem:[%s401 + $0x6] sm:$0x1] %v2172
        %2194 = vst [vmem:[%s401 + $0xa] sm:$0x1] %v2180
        %2195 = vst [vmem:[%s401 + $0xe] sm:$0x1] %v2182
        %2196 = vst [vmem:[%s401 + $0x12] sm:$0x1] %v2165
        %2197 = vst [vmem:[%s401 + $0x16] sm:$0x1] %v2179
        %2198 = vst [vmem:[%s401 + $0x1a] sm:$0x1] %v2181
        %2199 = vst [vmem:[%s401 + $0x1e] sm:$0x1] %v2183
        %v2200 = vsel %vm2132, %v426, 0.0
        %v2203 = vunpack.c.l.s4 1966171168
        %v2204 = vunpack.c.0.s8 %v2203
        %v2205 = vlaneseq
        %v2206 = vshrl.u32 %v2205, 7
        %v2207 = vsub.s32 %v2204, %v2206
        %v2208 = vrot.slane %v2200, %v2207
        %v2209 = vcombine.high %v2208, %v2208
        %v2211 = vunpack.c.l.s4 1966171168
        %v2212 = vunpack.c.0.s8 %v2211
        %v2213 = vlaneseq
        %v2214 = vshrl.u32 %v2213, 7
        %v2215 = vsub.s32 %v2212, %v2214
        %v2216 = vrot.slane %v2208, %v2215
        %v2218 = vunpack.c.l.s4 1966171168
        %v2219 = vunpack.c.0.s8 %v2218
        %v2220 = vlaneseq
        %v2221 = vshrl.u32 %v2220, 7
        %v2222 = vsub.s32 %v2219, %v2221
        %v2223 = vrot.slane %v2209, %v2222
        %v2224 = vcombine.high %v2216, %v2216
        %v2225 = vcombine.high %v2223, %v2223
        %2230 = vst [vmem:[%s1006 + $0x2] sm:$0x1] %v2216
        %2231 = vst [vmem:[%s1006 + $0x6] sm:$0x1] %v2223
        %2232 = vst [vmem:[%s1006 + $0xa] sm:$0x1] %v2224
        %2233 = vst [vmem:[%s1006 + $0xe] sm:$0x1] %v2225
        %v2234 = vsel %vm2132, %v1662, 0.0
        %v2237 = vunpack.c.l.s4 1966171168
        %v2238 = vunpack.c.0.s8 %v2237
        %v2239 = vlaneseq
        %v2240 = vshrl.u32 %v2239, 7
        %v2241 = vsub.s32 %v2238, %v2240
        %v2242 = vrot.slane %v2234, %v2241
        %v2243 = vcombine.high %v2242, %v2242
        %v2245 = vunpack.c.l.s4 1966171168
        %v2246 = vunpack.c.0.s8 %v2245
        %v2247 = vlaneseq
        %v2248 = vshrl.u32 %v2247, 7
        %v2249 = vsub.s32 %v2246, %v2248
        %v2250 = vrot.slane %v2242, %v2249
        %v2252 = vunpack.c.l.s4 1966171168
        %v2253 = vunpack.c.0.s8 %v2252
        %v2254 = vlaneseq
        %v2255 = vshrl.u32 %v2254, 7
        %v2256 = vsub.s32 %v2253, %v2255
        %v2257 = vrot.slane %v2243, %v2256
        %v2258 = vcombine.high %v2250, %v2250
        %v2259 = vcombine.high %v2257, %v2257
        %2264 = vst [vmem:[%s1041 + $0x2] sm:$0x1] %v2250
        %2265 = vst [vmem:[%s1041 + $0x6] sm:$0x1] %v2257
        %2266 = vst [vmem:[%s1041 + $0xa] sm:$0x1] %v2258
        %2267 = vst [vmem:[%s1041 + $0xe] sm:$0x1] %v2259
        %2268 = vrot.lane.b32.xlu0 %v1658, 1
        %v2269 = vpop.permute.xlu0 %2268
        %2270 = vrot.lane.b32.xlu0 %v1660, 1
        %v2271 = vpop.permute.xlu0 %2270
        %2272 = vrot.lane.b32.xlu0 %v1662, 1
        %v2273 = vpop.permute.xlu0 %2272
        %s2274 = sadd.s32 %s419, 3
        %v2275 = vstv %s2274
        %vm2276 = vcmp.ge.s32.totalorder %v421, %v2275
        %v2277 = vmul.f32 %v422, %v2269
        %v2278 = vmul.f32 %v423, %v2271
        %2279 = vmatprep.subr.mxu0 0.0
        %v2280 = vand.u32 %v2277, 4294901760
        %2281 = vmatpush1.msra.mxu0 %v2280
        %2282 = vmatprep.subr.mxu0 0.0
        %v2283 = vand.u32 %v2278, 4294901760
        %2284 = vmatpush1.msra.mxu0 %v2283
        %2285 = vmatprep.subr.mxu0 0.0
        %2286 = vmatpush1.msra.mxu0 0.0
        %2287 = vmatprep.subr.mxu0 0.0
        %2288 = vmatpush1.msra.mxu0 0.0
        %2289 = vmatprep.subr.mxu0 0.0
        %2290 = vmatpush1.msra.mxu0 0.0
        %2291 = vmatprep.subr.mxu0 0.0
        %2292 = vmatpush1.msra.mxu0 0.0
        %2293 = vmatprep.subr.mxu0 0.0
        %2294 = vmatpush1.msra.mxu0 0.0
        %2295 = vmatprep.subr.mxu0 0.0
        %2296 = vmatpush1.msra.mxu0 0.0
        %2297 = vmatprep.subr.mxu0 0.0
        %2298 = vmatpush1.msra.mxu0 0.0
        %2299 = vmatprep.subr.mxu0 0.0
        %2300 = vmatpush1.msra.mxu0 0.0
        %2301 = vmatprep.subr.mxu0 0.0
        %2302 = vmatpush1.msra.mxu0 0.0
        %2303 = vmatprep.subr.mxu0 0.0
        %2304 = vmatpush1.msra.mxu0 0.0
        %2305 = vmatprep.subr.mxu0 0.0
        %2306 = vmatpush1.msra.mxu0 0.0
        %2307 = vmatprep.subr.mxu0 0.0
        %2308 = vmatpush1.msra.mxu0 0.0
        %2309 = vmatprep.subr.mxu0 0.0
        %2310 = vmatpush1.msra.mxu0 0.0
        %2311 = vmatprep.subr.mxu0 0.0
        %2312 = vmatpush1.msra.mxu0 0.0
        %2313 = vmatprep.subr.mxu0 0.0
        %2314 = vmatpush1.msra.mxu0 0.0
        %2315 = vmatprep.subr.mxu0 0.0
        %2316 = vmatpush1.msra.mxu0 0.0
        %2317 = vmatprep.subr.mxu0 0.0
        %2318 = vmatpush1.msra.mxu0 0.0
        %2319 = vmatprep.subr.mxu0 0.0
        %2320 = vmatpush1.msra.mxu0 0.0
        %2321 = vmatprep.subr.mxu0 0.0
        %2322 = vmatpush1.msra.mxu0 0.0
        %2323 = vmatprep.subr.mxu0 0.0
        %2324 = vmatpush1.msra.mxu0 0.0
        %2325 = vmatprep.subr.mxu0 0.0
        %2326 = vmatpush1.msra.mxu0 0.0
        %2327 = vmatprep.subr.mxu0 0.0
        %2328 = vmatpush1.msra.mxu0 0.0
        %2329 = vmatprep.subr.mxu0 0.0
        %2330 = vmatpush1.msra.mxu0 0.0
        %2331 = vmatprep.subr.mxu0 0.0
        %2332 = vmatpush1.msra.mxu0 0.0
        %2333 = vmatprep.subr.mxu0 0.0
        %2334 = vmatpush1.msra.mxu0 0.0
        %2335 = vmatprep.subr.mxu0 0.0
        %2336 = vmatpush1.msra.mxu0 0.0
        %2337 = vmatprep.subr.mxu0 0.0
        %2338 = vmatpush1.msra.mxu0 0.0
        %2339 = vmatprep.subr.mxu0 0.0
        %2340 = vmatpush1.msra.mxu0 0.0
        %2341 = vmatprep.subr.mxu0 0.0
        %2342 = vmatpush1.msra.mxu0 0.0
        %2343 = vmatprep.subr.mxu0 0.0
        %2344 = vmatpush1.msra.mxu0 0.0
        %2345 = vmatprep.mubr.f32.mxu0 0.0
        %v2346 = vand.u32 %v442, 4294901760
        %v2347 = vsub.f32 %v442, %v2346
        %v2348 = vand.u32 %v2347, 4294901760
        %v2349 = vsub.f32 %v2347, %v2348
        %v2350 = vand.u32 %v2349, 4294901760
        %2351 = vmatmul.mubr.f32.gmra.mrb[0].mxu0 %v2350
        %v2352 = vpop.f32.mrb[0].mxu0
        %v2353 = vadd.f32 0.0, %v2352
        %v2354 = vpop.f32.mrb[0].mxu0
        %2355 = vdwg.mxu0
        %2356 = vmatprep.subr.mxu0 0.0
        %v2357 = vand.u32 %v2277, 4294901760
        %v2358 = vsub.f32 %v2277, %v2357
        %v2359 = vand.u32 %v2358, 4294901760
        %v2360 = vsub.f32 %v2358, %v2359
        %v2361 = vand.u32 %v2360, 4294901760
        %2362 = vmatpush1.msra.mxu0 %v2361
        %2363 = vmatprep.subr.mxu0 0.0
        %v2364 = vand.u32 %v2278, 4294901760
        %v2365 = vsub.f32 %v2278, %v2364
        %v2366 = vand.u32 %v2365, 4294901760
        %v2367 = vsub.f32 %v2365, %v2366
        %v2368 = vand.u32 %v2367, 4294901760
        %2369 = vmatpush1.msra.mxu0 %v2368
        %2370 = vmatprep.subr.mxu0 0.0
        %2371 = vmatpush1.msra.mxu0 0.0
        %2372 = vmatprep.subr.mxu0 0.0
        %2373 = vmatpush1.msra.mxu0 0.0
        %2374 = vmatprep.subr.mxu0 0.0
        %2375 = vmatpush1.msra.mxu0 0.0
        %2376 = vmatprep.subr.mxu0 0.0
        %2377 = vmatpush1.msra.mxu0 0.0
        %2378 = vmatprep.subr.mxu0 0.0
        %2379 = vmatpush1.msra.mxu0 0.0
        %2380 = vmatprep.subr.mxu0 0.0
        %2381 = vmatpush1.msra.mxu0 0.0
        %2382 = vmatprep.subr.mxu0 0.0
        %2383 = vmatpush1.msra.mxu0 0.0
        %2384 = vmatprep.subr.mxu0 0.0
        %2385 = vmatpush1.msra.mxu0 0.0
        %2386 = vmatprep.subr.mxu0 0.0
        %2387 = vmatpush1.msra.mxu0 0.0
        %2388 = vmatprep.subr.mxu0 0.0
        %2389 = vmatpush1.msra.mxu0 0.0
        %2390 = vmatprep.subr.mxu0 0.0
        %2391 = vmatpush1.msra.mxu0 0.0
        %2392 = vmatprep.subr.mxu0 0.0
        %2393 = vmatpush1.msra.mxu0 0.0
        %2394 = vmatprep.subr.mxu0 0.0
        %2395 = vmatpush1.msra.mxu0 0.0
        %2396 = vmatprep.subr.mxu0 0.0
        %2397 = vmatpush1.msra.mxu0 0.0
        %2398 = vmatprep.subr.mxu0 0.0
        %2399 = vmatpush1.msra.mxu0 0.0
        %2400 = vmatprep.subr.mxu0 0.0
        %2401 = vmatpush1.msra.mxu0 0.0
        %2402 = vmatprep.subr.mxu0 0.0
        %2403 = vmatpush1.msra.mxu0 0.0
        %2404 = vmatprep.subr.mxu0 0.0
        %2405 = vmatpush1.msra.mxu0 0.0
        %2406 = vmatprep.subr.mxu0 0.0
        %2407 = vmatpush1.msra.mxu0 0.0
        %2408 = vmatprep.subr.mxu0 0.0
        %2409 = vmatpush1.msra.mxu0 0.0
        %2410 = vmatprep.subr.mxu0 0.0
        %2411 = vmatpush1.msra.mxu0 0.0
        %2412 = vmatprep.subr.mxu0 0.0
        %2413 = vmatpush1.msra.mxu0 0.0
        %2414 = vmatprep.subr.mxu0 0.0
        %2415 = vmatpush1.msra.mxu0 0.0
        %2416 = vmatprep.subr.mxu0 0.0
        %2417 = vmatpush1.msra.mxu0 0.0
        %2418 = vmatprep.subr.mxu0 0.0
        %2419 = vmatpush1.msra.mxu0 0.0
        %2420 = vmatprep.subr.mxu0 0.0
        %2421 = vmatpush1.msra.mxu0 0.0
        %2422 = vmatprep.subr.mxu0 0.0
        %2423 = vmatpush1.msra.mxu0 0.0
        %2424 = vmatprep.subr.mxu0 0.0
        %2425 = vmatpush1.msra.mxu0 0.0
        %2426 = vmatprep.subr.mxu0 0.0
        %2427 = vmatpush1.msra.mxu0 0.0
        %2428 = vmatprep.subr.mxu0 0.0
        %2429 = vmatpush1.msra.mxu0 0.0
        %2430 = vmatprep.mubr.f32.mxu0 0.0
        %v2431 = vand.u32 %v442, 4294901760
        %2432 = vmatmul.mubr.f32.gmra.mrb[0].mxu0 %v2431
        %v2433 = vpop.f32.mrb[0].mxu0
        %v2434 = vadd.f32 %v2353, %v2433
        %v2435 = vpop.f32.mrb[0].mxu0
        %2436 = vdwg.mxu0
        %2437 = vmatprep.subr.mxu0 0.0
        %v2438 = vand.u32 %v2277, 4294901760
        %v2439 = vsub.f32 %v2277, %v2438
        %2440 = vmatpush1.msra.mxu0 %v2439
        %2441 = vmatprep.subr.mxu0 0.0
        %v2442 = vand.u32 %v2278, 4294901760
        %v2443 = vsub.f32 %v2278, %v2442
        %2444 = vmatpush1.msra.mxu0 %v2443
        %2445 = vmatprep.subr.mxu0 0.0
        %2446 = vmatpush1.msra.mxu0 0.0
        %2447 = vmatprep.subr.mxu0 0.0
        %2448 = vmatpush1.msra.mxu0 0.0
        %2449 = vmatprep.subr.mxu0 0.0
        %2450 = vmatpush1.msra.mxu0 0.0
        %2451 = vmatprep.subr.mxu0 0.0
        %2452 = vmatpush1.msra.mxu0 0.0
        %2453 = vmatprep.subr.mxu0 0.0
        %2454 = vmatpush1.msra.mxu0 0.0
        %2455 = vmatprep.subr.mxu0 0.0
        %2456 = vmatpush1.msra.mxu0 0.0
        %2457 = vmatprep.subr.mxu0 0.0
        %2458 = vmatpush1.msra.mxu0 0.0
        %2459 = vmatprep.subr.mxu0 0.0
        %2460 = vmatpush1.msra.mxu0 0.0
        %2461 = vmatprep.subr.mxu0 0.0
        %2462 = vmatpush1.msra.mxu0 0.0
        %2463 = vmatprep.subr.mxu0 0.0
        %2464 = vmatpush1.msra.mxu0 0.0
        %2465 = vmatprep.subr.mxu0 0.0
        %2466 = vmatpush1.msra.mxu0 0.0
        %2467 = vmatprep.subr.mxu0 0.0
        %2468 = vmatpush1.msra.mxu0 0.0
        %2469 = vmatprep.subr.mxu0 0.0
        %2470 = vmatpush1.msra.mxu0 0.0
        %2471 = vmatprep.subr.mxu0 0.0
        %2472 = vmatpush1.msra.mxu0 0.0
        %2473 = vmatprep.subr.mxu0 0.0
        %2474 = vmatpush1.msra.mxu0 0.0
        %2475 = vmatprep.subr.mxu0 0.0
        %2476 = vmatpush1.msra.mxu0 0.0
        %2477 = vmatprep.subr.mxu0 0.0
        %2478 = vmatpush1.msra.mxu0 0.0
        %2479 = vmatprep.subr.mxu0 0.0
        %2480 = vmatpush1.msra.mxu0 0.0
        %2481 = vmatprep.subr.mxu0 0.0
        %2482 = vmatpush1.msra.mxu0 0.0
        %2483 = vmatprep.subr.mxu0 0.0
        %2484 = vmatpush1.msra.mxu0 0.0
        %2485 = vmatprep.subr.mxu0 0.0
        %2486 = vmatpush1.msra.mxu0 0.0
        %2487 = vmatprep.subr.mxu0 0.0
        %2488 = vmatpush1.msra.mxu0 0.0
        %2489 = vmatprep.subr.mxu0 0.0
        %2490 = vmatpush1.msra.mxu0 0.0
        %2491 = vmatprep.subr.mxu0 0.0
        %2492 = vmatpush1.msra.mxu0 0.0
        %2493 = vmatprep.subr.mxu0 0.0
        %2494 = vmatpush1.msra.mxu0 0.0
        %2495 = vmatprep.subr.mxu0 0.0
        %2496 = vmatpush1.msra.mxu0 0.0
        %2497 = vmatprep.subr.mxu0 0.0
        %2498 = vmatpush1.msra.mxu0 0.0
        %2499 = vmatprep.subr.mxu0 0.0
        %2500 = vmatpush1.msra.mxu0 0.0
        %2501 = vmatprep.subr.mxu0 0.0
        %2502 = vmatpush1.msra.mxu0 0.0
        %2503 = vmatprep.subr.mxu0 0.0
        %2504 = vmatpush1.msra.mxu0 0.0
        %2505 = vmatprep.mubr.f32.mxu0 0.0
        %v2506 = vand.u32 %v442, 4294901760
        %v2507 = vsub.f32 %v442, %v2506
        %2508 = vmatmul.mubr.f32.gmra.mrb[0].mxu0 %v2507
        %v2509 = vpop.f32.mrb[0].mxu0
        %v2510 = vadd.f32 %v2434, %v2509
        %v2511 = vpop.f32.mrb[0].mxu0
        %2512 = vdwg.mxu0
        %2513 = vmatprep.subr.mxu0 0.0
        %v2514 = vand.u32 %v2277, 4294901760
        %2515 = vmatpush1.msra.mxu0 %v2514
        %2516 = vmatprep.subr.mxu0 0.0
        %v2517 = vand.u32 %v2278, 4294901760
        %2518 = vmatpush1.msra.mxu0 %v2517
        %2519 = vmatprep.subr.mxu0 0.0
        %2520 = vmatpush1.msra.mxu0 0.0
        %2521 = vmatprep.subr.mxu0 0.0
        %2522 = vmatpush1.msra.mxu0 0.0
        %2523 = vmatprep.subr.mxu0 0.0
        %2524 = vmatpush1.msra.mxu0 0.0
        %2525 = vmatprep.subr.mxu0 0.0
        %2526 = vmatpush1.msra.mxu0 0.0
        %2527 = vmatprep.subr.mxu0 0.0
        %2528 = vmatpush1.msra.mxu0 0.0
        %2529 = vmatprep.subr.mxu0 0.0
        %2530 = vmatpush1.msra.mxu0 0.0
        %2531 = vmatprep.subr.mxu0 0.0
        %2532 = vmatpush1.msra.mxu0 0.0
        %2533 = vmatprep.subr.mxu0 0.0
        %2534 = vmatpush1.msra.mxu0 0.0
        %2535 = vmatprep.subr.mxu0 0.0
        %2536 = vmatpush1.msra.mxu0 0.0
        %2537 = vmatprep.subr.mxu0 0.0
        %2538 = vmatpush1.msra.mxu0 0.0
        %2539 = vmatprep.subr.mxu0 0.0
        %2540 = vmatpush1.msra.mxu0 0.0
        %2541 = vmatprep.subr.mxu0 0.0
        %2542 = vmatpush1.msra.mxu0 0.0
        %2543 = vmatprep.subr.mxu0 0.0
        %2544 = vmatpush1.msra.mxu0 0.0
        %2545 = vmatprep.subr.mxu0 0.0
        %2546 = vmatpush1.msra.mxu0 0.0
        %2547 = vmatprep.subr.mxu0 0.0
        %2548 = vmatpush1.msra.mxu0 0.0
        %2549 = vmatprep.subr.mxu0 0.0
        %2550 = vmatpush1.msra.mxu0 0.0
        %2551 = vmatprep.subr.mxu0 0.0
        %2552 = vmatpush1.msra.mxu0 0.0
        %2553 = vmatprep.subr.mxu0 0.0
        %2554 = vmatpush1.msra.mxu0 0.0
        %2555 = vmatprep.subr.mxu0 0.0
        %2556 = vmatpush1.msra.mxu0 0.0
        %2557 = vmatprep.subr.mxu0 0.0
        %2558 = vmatpush1.msra.mxu0 0.0
        %2559 = vmatprep.subr.mxu0 0.0
        %2560 = vmatpush1.msra.mxu0 0.0
        %2561 = vmatprep.subr.mxu0 0.0
        %2562 = vmatpush1.msra.mxu0 0.0
        %2563 = vmatprep.subr.mxu0 0.0
        %2564 = vmatpush1.msra.mxu0 0.0
        %2565 = vmatprep.subr.mxu0 0.0
        %2566 = vmatpush1.msra.mxu0 0.0
        %2567 = vmatprep.subr.mxu0 0.0
        %2568 = vmatpush1.msra.mxu0 0.0
        %2569 = vmatprep.subr.mxu0 0.0
        %2570 = vmatpush1.msra.mxu0 0.0
        %2571 = vmatprep.subr.mxu0 0.0
        %2572 = vmatpush1.msra.mxu0 0.0
        %2573 = vmatprep.subr.mxu0 0.0
        %2574 = vmatpush1.msra.mxu0 0.0
        %2575 = vmatprep.subr.mxu0 0.0
        %2576 = vmatpush1.msra.mxu0 0.0
        %2577 = vmatprep.subr.mxu0 0.0
        %2578 = vmatpush1.msra.mxu0 0.0
        %2579 = vmatprep.mubr.f32.mxu0 0.0
        %v2580 = vand.u32 %v442, 4294901760
        %v2581 = vsub.f32 %v442, %v2580
        %v2582 = vand.u32 %v2581, 4294901760
        %2583 = vmatmul.mubr.f32.gmra.mrb[0].mxu0 %v2582
        %v2584 = vpop.f32.mrb[0].mxu0
        %v2585 = vadd.f32 %v2510, %v2584
        %v2586 = vpop.f32.mrb[0].mxu0
        %2587 = vdwg.mxu0
        %2588 = vmatprep.subr.mxu0 0.0
        %v2589 = vand.u32 %v2277, 4294901760
        %v2590 = vsub.f32 %v2277, %v2589
        %v2591 = vand.u32 %v2590, 4294901760
        %2592 = vmatpush1.msra.mxu0 %v2591
        %2593 = vmatprep.subr.mxu0 0.0
        %v2594 = vand.u32 %v2278, 4294901760
        %v2595 = vsub.f32 %v2278, %v2594
        %v2596 = vand.u32 %v2595, 4294901760
        %2597 = vmatpush1.msra.mxu0 %v2596
        %2598 = vmatprep.subr.mxu0 0.0
        %2599 = vmatpush1.msra.mxu0 0.0
        %2600 = vmatprep.subr.mxu0 0.0
        %2601 = vmatpush1.msra.mxu0 0.0
        %2602 = vmatprep.subr.mxu0 0.0
        %2603 = vmatpush1.msra.mxu0 0.0
        %2604 = vmatprep.subr.mxu0 0.0
        %2605 = vmatpush1.msra.mxu0 0.0
        %2606 = vmatprep.subr.mxu0 0.0
        %2607 = vmatpush1.msra.mxu0 0.0
        %2608 = vmatprep.subr.mxu0 0.0
        %2609 = vmatpush1.msra.mxu0 0.0
        %2610 = vmatprep.subr.mxu0 0.0
        %2611 = vmatpush1.msra.mxu0 0.0
        %2612 = vmatprep.subr.mxu0 0.0
        %2613 = vmatpush1.msra.mxu0 0.0
        %2614 = vmatprep.subr.mxu0 0.0
        %2615 = vmatpush1.msra.mxu0 0.0
        %2616 = vmatprep.subr.mxu0 0.0
        %2617 = vmatpush1.msra.mxu0 0.0
        %2618 = vmatprep.subr.mxu0 0.0
        %2619 = vmatpush1.msra.mxu0 0.0
        %2620 = vmatprep.subr.mxu0 0.0
        %2621 = vmatpush1.msra.mxu0 0.0
        %2622 = vmatprep.subr.mxu0 0.0
        %2623 = vmatpush1.msra.mxu0 0.0
        %2624 = vmatprep.subr.mxu0 0.0
        %2625 = vmatpush1.msra.mxu0 0.0
        %2626 = vmatprep.subr.mxu0 0.0
        %2627 = vmatpush1.msra.mxu0 0.0
        %2628 = vmatprep.subr.mxu0 0.0
        %2629 = vmatpush1.msra.mxu0 0.0
        %2630 = vmatprep.subr.mxu0 0.0
        %2631 = vmatpush1.msra.mxu0 0.0
        %2632 = vmatprep.subr.mxu0 0.0
        %2633 = vmatpush1.msra.mxu0 0.0
        %2634 = vmatprep.subr.mxu0 0.0
        %2635 = vmatpush1.msra.mxu0 0.0
        %2636 = vmatprep.subr.mxu0 0.0
        %2637 = vmatpush1.msra.mxu0 0.0
        %2638 = vmatprep.subr.mxu0 0.0
        %2639 = vmatpush1.msra.mxu0 0.0
        %2640 = vmatprep.subr.mxu0 0.0
        %2641 = vmatpush1.msra.mxu0 0.0
        %2642 = vmatprep.subr.mxu0 0.0
        %2643 = vmatpush1.msra.mxu0 0.0
        %2644 = vmatprep.subr.mxu0 0.0
        %2645 = vmatpush1.msra.mxu0 0.0
        %2646 = vmatprep.subr.mxu0 0.0
        %2647 = vmatpush1.msra.mxu0 0.0
        %2648 = vmatprep.subr.mxu0 0.0
        %2649 = vmatpush1.msra.mxu0 0.0
        %2650 = vmatprep.subr.mxu0 0.0
        %2651 = vmatpush1.msra.mxu0 0.0
        %2652 = vmatprep.subr.mxu0 0.0
        %2653 = vmatpush1.msra.mxu0 0.0
        %2654 = vmatprep.subr.mxu0 0.0
        %2655 = vmatpush1.msra.mxu0 0.0
        %2656 = vmatprep.subr.mxu0 0.0
        %2657 = vmatpush1.msra.mxu0 0.0
        %2658 = vmatprep.mubr.f32.mxu0 0.0
        %v2659 = vand.u32 %v442, 4294901760
        %2660 = vmatmul.mubr.f32.gmra.mrb[0].mxu0 %v2659
        %v2661 = vpop.f32.mrb[0].mxu0
        %v2662 = vadd.f32 %v2585, %v2661
        %v2663 = vpop.f32.mrb[0].mxu0
        %2664 = vdwg.mxu0
        %2665 = vmatprep.subr.mxu0 0.0
        %v2666 = vand.u32 %v2277, 4294901760
        %2667 = vmatpush1.msra.mxu0 %v2666
        %2668 = vmatprep.subr.mxu0 0.0
        %v2669 = vand.u32 %v2278, 4294901760
        %2670 = vmatpush1.msra.mxu0 %v2669
        %2671 = vmatprep.subr.mxu0 0.0
        %2672 = vmatpush1.msra.mxu0 0.0
        %2673 = vmatprep.subr.mxu0 0.0
        %2674 = vmatpush1.msra.mxu0 0.0
        %2675 = vmatprep.subr.mxu0 0.0
        %2676 = vmatpush1.msra.mxu0 0.0
        %2677 = vmatprep.subr.mxu0 0.0
        %2678 = vmatpush1.msra.mxu0 0.0
        %2679 = vmatprep.subr.mxu0 0.0
        %2680 = vmatpush1.msra.mxu0 0.0
        %2681 = vmatprep.subr.mxu0 0.0
        %2682 = vmatpush1.msra.mxu0 0.0
        %2683 = vmatprep.subr.mxu0 0.0
        %2684 = vmatpush1.msra.mxu0 0.0
        %2685 = vmatprep.subr.mxu0 0.0
        %2686 = vmatpush1.msra.mxu0 0.0
        %2687 = vmatprep.subr.mxu0 0.0
        %2688 = vmatpush1.msra.mxu0 0.0
        %2689 = vmatprep.subr.mxu0 0.0
        %2690 = vmatpush1.msra.mxu0 0.0
        %2691 = vmatprep.subr.mxu0 0.0
        %2692 = vmatpush1.msra.mxu0 0.0
        %2693 = vmatprep.subr.mxu0 0.0
        %2694 = vmatpush1.msra.mxu0 0.0
        %2695 = vmatprep.subr.mxu0 0.0
        %2696 = vmatpush1.msra.mxu0 0.0
        %2697 = vmatprep.subr.mxu0 0.0
        %2698 = vmatpush1.msra.mxu0 0.0
        %2699 = vmatprep.subr.mxu0 0.0
        %2700 = vmatpush1.msra.mxu0 0.0
        %2701 = vmatprep.subr.mxu0 0.0
        %2702 = vmatpush1.msra.mxu0 0.0
        %2703 = vmatprep.subr.mxu0 0.0
        %2704 = vmatpush1.msra.mxu0 0.0
        %2705 = vmatprep.subr.mxu0 0.0
        %2706 = vmatpush1.msra.mxu0 0.0
        %2707 = vmatprep.subr.mxu0 0.0
        %2708 = vmatpush1.msra.mxu0 0.0
        %2709 = vmatprep.subr.mxu0 0.0
        %2710 = vmatpush1.msra.mxu0 0.0
        %2711 = vmatprep.subr.mxu0 0.0
        %2712 = vmatpush1.msra.mxu0 0.0
        %2713 = vmatprep.subr.mxu0 0.0
        %2714 = vmatpush1.msra.mxu0 0.0
        %2715 = vmatprep.subr.mxu0 0.0
        %2716 = vmatpush1.msra.mxu0 0.0
        %2717 = vmatprep.subr.mxu0 0.0
        %2718 = vmatpush1.msra.mxu0 0.0
        %2719 = vmatprep.subr.mxu0 0.0
        %2720 = vmatpush1.msra.mxu0 0.0
        %2721 = vmatprep.subr.mxu0 0.0
        %2722 = vmatpush1.msra.mxu0 0.0
        %2723 = vmatprep.subr.mxu0 0.0
        %2724 = vmatpush1.msra.mxu0 0.0
        %2725 = vmatprep.subr.mxu0 0.0
        %2726 = vmatpush1.msra.mxu0 0.0
        %2727 = vmatprep.subr.mxu0 0.0
        %2728 = vmatpush1.msra.mxu0 0.0
        %2729 = vmatprep.subr.mxu0 0.0
        %2730 = vmatpush1.msra.mxu0 0.0
        %2731 = vmatprep.mubr.f32.mxu0 0.0
        %v2732 = vand.u32 %v442, 4294901760
        %2733 = vmatmul.mubr.f32.gmra.mrb[0].mxu0 %v2732
        %v2734 = vpop.f32.mrb[0].mxu0
        %v2735 = vadd.f32 %v2662, %v2734
        %v2736 = vpop.f32.mrb[0].mxu0
        %2737 = vdwg.mxu0
        %v2738 = vsel %vm2276, 1, 0
        %v2739 = vlaneseq
        %v2740 = vshrl.u32 %v2739, 7
        %v2741 = vsub.s32 0, %v2740
        %v2742 = vrot.slane %v2738, %v2741
        %vm2743 = vcmp.eq.s32.totalorder %v2742, 1
        %v2744 = vsel %vm2743, %v2735, 0.0
        %v2746 = vcombine.high %v2744, %v2744
        %v2748 = vunpack.c.l.s4 1966171168
        %v2749 = vunpack.c.0.s8 %v2748
        %v2750 = vlaneseq
        %v2751 = vshrl.u32 %v2750, 7
        %v2752 = vsub.s32 %v2749, %v2751
        %v2753 = vrot.slane %v2744, %v2752
        %v2755 = vunpack.c.l.s4 1966171168
        %v2756 = vunpack.c.0.s8 %v2755
        %v2757 = vlaneseq
        %v2758 = vshrl.u32 %v2757, 7
        %v2759 = vsub.s32 %v2756, %v2758
        %v2760 = vrot.slane %v2746, %v2759
        %v2761 = vcombine.high %v2753, %v2753
        %v2762 = vcombine.high %v2760, %v2760
        %v2764 = vunpack.c.l.s4 1966171168
        %v2765 = vunpack.c.0.s8 %v2764
        %v2766 = vlaneseq
        %v2767 = vshrl.u32 %v2766, 7
        %v2768 = vsub.s32 %v2765, %v2767
        %v2769 = vrot.slane %v2753, %v2768
        %v2771 = vunpack.c.l.s4 1966171168
        %v2772 = vunpack.c.0.s8 %v2771
        %v2773 = vlaneseq
        %v2774 = vshrl.u32 %v2773, 7
        %v2775 = vsub.s32 %v2772, %v2774
        %v2776 = vrot.slane %v2760, %v2775
        %v2778 = vunpack.c.l.s4 1966171168
        %v2779 = vunpack.c.0.s8 %v2778
        %v2780 = vlaneseq
        %v2781 = vshrl.u32 %v2780, 7
        %v2782 = vsub.s32 %v2779, %v2781
        %v2783 = vrot.slane %v2761, %v2782
        %v2785 = vunpack.c.l.s4 1966171168
        %v2786 = vunpack.c.0.s8 %v2785
        %v2787 = vlaneseq
        %v2788 = vshrl.u32 %v2787, 7
        %v2789 = vsub.s32 %v2786, %v2788
        %v2790 = vrot.slane %v2762, %v2789
        %v2791 = vcombine.high %v2769, %v2769
        %v2792 = vcombine.high %v2776, %v2776
        %v2793 = vcombine.high %v2783, %v2783
        %v2794 = vcombine.high %v2790, %v2790
        %2803 = vst [vmem:[%s401 + $0x3] sm:$0x1] %v2769
        %2804 = vst [vmem:[%s401 + $0x7] sm:$0x1] %v2783
        %2805 = vst [vmem:[%s401 + $0xb] sm:$0x1] %v2791
        %2806 = vst [vmem:[%s401 + $0xf] sm:$0x1] %v2793
        %2807 = vst [vmem:[%s401 + $0x13] sm:$0x1] %v2776
        %2808 = vst [vmem:[%s401 + $0x17] sm:$0x1] %v2790
        %2809 = vst [vmem:[%s401 + $0x1b] sm:$0x1] %v2792
        %2810 = vst [vmem:[%s401 + $0x1f] sm:$0x1] %v2794
        %v2811 = vsel %vm2743, %v426, 0.0
        %v2814 = vunpack.c.l.s4 1966171168
        %v2815 = vunpack.c.0.s8 %v2814
        %v2816 = vlaneseq
        %v2817 = vshrl.u32 %v2816, 7
        %v2818 = vsub.s32 %v2815, %v2817
        %v2819 = vrot.slane %v2811, %v2818
        %v2820 = vcombine.high %v2819, %v2819
        %v2822 = vunpack.c.l.s4 1966171168
        %v2823 = vunpack.c.0.s8 %v2822
        %v2824 = vlaneseq
        %v2825 = vshrl.u32 %v2824, 7
        %v2826 = vsub.s32 %v2823, %v2825
        %v2827 = vrot.slane %v2819, %v2826
        %v2829 = vunpack.c.l.s4 1966171168
        %v2830 = vunpack.c.0.s8 %v2829
        %v2831 = vlaneseq
        %v2832 = vshrl.u32 %v2831, 7
        %v2833 = vsub.s32 %v2830, %v2832
        %v2834 = vrot.slane %v2820, %v2833
        %v2835 = vcombine.high %v2827, %v2827
        %v2836 = vcombine.high %v2834, %v2834
        %2841 = vst [vmem:[%s1006 + $0x3] sm:$0x1] %v2827
        %2842 = vst [vmem:[%s1006 + $0x7] sm:$0x1] %v2834
        %2843 = vst [vmem:[%s1006 + $0xb] sm:$0x1] %v2835
        %2844 = vst [vmem:[%s1006 + $0xf] sm:$0x1] %v2836
        %v2845 = vsel %vm2743, %v2273, 0.0
        %v2848 = vunpack.c.l.s4 1966171168
        %v2849 = vunpack.c.0.s8 %v2848
        %v2850 = vlaneseq
        %v2851 = vshrl.u32 %v2850, 7
        %v2852 = vsub.s32 %v2849, %v2851
        %v2853 = vrot.slane %v2845, %v2852
        %v2854 = vcombine.high %v2853, %v2853
        %v2856 = vunpack.c.l.s4 1966171168
        %v2857 = vunpack.c.0.s8 %v2856
        %v2858 = vlaneseq
        %v2859 = vshrl.u32 %v2858, 7
        %v2860 = vsub.s32 %v2857, %v2859
        %v2861 = vrot.slane %v2853, %v2860
        %v2863 = vunpack.c.l.s4 1966171168
        %v2864 = vunpack.c.0.s8 %v2863
        %v2865 = vlaneseq
        %v2866 = vshrl.u32 %v2865, 7
        %v2867 = vsub.s32 %v2864, %v2866
        %v2868 = vrot.slane %v2854, %v2867
        %v2869 = vcombine.high %v2861, %v2861
        %v2870 = vcombine.high %v2868, %v2868
        %2875 = vst [vmem:[%s1041 + $0x3] sm:$0x1] %v2861
        %2876 = vst [vmem:[%s1041 + $0x7] sm:$0x1] %v2868
        %2877 = vst [vmem:[%s1041 + $0xb] sm:$0x1] %v2869
        %2878 = vst [vmem:[%s1041 + $0xf] sm:$0x1] %v2870
        %s2879 = sand.u32 %s214, 1
        %s2880 = scalar_lea.sflag [#allocation4], %s2879
        %s2881 = sand.u32 %s214, 1
        %s2882 = smul.addr %s2881, 64
        %s2883 = scalar_lea.vmem [#allocation8], %s2882
        // Predicated region
        $region57: #{tpu_custom_call.1} parent=43 // pred_check
          %p2884 = pneg %p224
        $region58: #{tpu_custom_call.1} parent=43 // pred_check_branch
          %2886 = sbr.rel (%p2884) target = $region60
        $region59: #{tpu_custom_call.1} parent=43 // pred_region
          %s2888 = ssub.s32 1024, 1024
          %2889 = vsyncadd %s2880, %s2888
          %s2890 = sadd.s32 %s30, %s31
          %s2891 = smul.addr %s29, 16
          %s2892 = sadd.s32 %s2890, %s2891
          %s2893 = smul.addr %s2892, 64
          %s2894 = scalar_lea.hbm %s6, %s2893
          %s2895 = sshll.u32 %s2883, 4
          %s2896 = int_to_ptr.vmem [resolvable:$true] %s2895
          %2901 = dma.vmem_to_hbm [thread:$0]  %s2896, 1024, %s2894, %s2880, 64, 64, 4
        $region60: #{tpu_custom_call.1} parent=43 // pred_fallthru
          _
      $region44: #{tpu_custom_call.1} parent=5 // pred_fallthru
        _
      %p2902 = scmp.le.s32.totalorder 2, %s19
      // Predicated region
      $region61: #{tpu_custom_call.1} parent=5 // pred_check
        %p2903 = pneg %p2902
      $region62: #{tpu_custom_call.1} parent=5 // pred_check_branch
        %2905 = sbr.rel (%p2903) target = $region64
      $region63: #{tpu_custom_call.1} parent=5 // pred_region
        %s2906 = ssub.s32 %s19, 2
        // Predicated region
        $region65: #{tpu_custom_call.1} parent=63 // pred_check
          %p2907 = pneg %p230
        $region66: #{tpu_custom_call.1} parent=63 // pred_check_branch
          %2909 = sbr.rel (%p2907) target = $region68
        $region67: #{tpu_custom_call.1} parent=63 // pred_region
          %s2910 = sand.u32 %s215, 1
          %s2911 = scalar_lea.sflag [#allocation4], %s2910
          %s2912 = sand.u32 %s215, 1
          %s2913 = smul.addr %s2912, 64
          %s2914 = scalar_lea.vmem [#allocation8], %s2913
          %2915 = dma.done %s2911, 1024
        $region68: #{tpu_custom_call.1} parent=63 // pred_fallthru
          _
      $region64: #{tpu_custom_call.1} parent=5 // pred_fallthru
        _
    $region6: #{tpu_custom_call.1} parent=1 // loop_footer
      %s23 = sadd.s32 1, %s19
    $region7: #{tpu_custom_call.1} parent=1 // loop_footer_branch
      %18 = sbr.rel target = $region3
    $region8: #{tpu_custom_call.1} parent=1 // loop_exit
      _
    %2916 = vsyncpa [#allocation3], 1
    %s2917 = scalar_lea.sflag [#allocation3], 1
    %2918 = vsyncpa %s2917, 1
    %2919 = vsyncpa [#allocation6], 1
    %s2920 = scalar_lea.sflag [#allocation6], 1
    %2921 = vsyncpa %s2920, 1
    %2922 = vsyncpa [#allocation4], 1
    %s2923 = scalar_lea.sflag [#allocation4], 1
    %2924 = vsyncpa %s2923, 1

</llo_original>
